<compile_context>
chip_gen: v6e
topology: v6e:2x2x1
jax: 0.10.0
libtpu: 0.0.40
codegen_flags: <defaults>
</compile_context>

<pallas_src>
import jax
import jax.numpy as jnp
from jax.experimental import pallas as pl
from jax.experimental.pallas import tpu as pltpu


def _high3_kernel(w_ref, b_ref, x_ref, o_ref):
    """One (batch image, output-row block) step of the k=2/stride=2 conv.

    w_ref : SMEM (Cout*Cin*2*2,) conv weight, flattened in OIHW order.
    b_ref : SMEM (Cout,) bias.
    x_ref : VMEM (1, Cin, 2*TH, W)  input rows feeding this output-row block.
    o_ref : VMEM (1, Cout, TH, Wo)  output block (NCHW layout).
    """
    _, cin, h_blk, w_in = x_ref.shape
    _, cout, th, wo = o_ref.shape
    f32 = jnp.float32

    # 0/1 selection matrices built in-kernel from iota (cheap VPU work):
    #   E[dy][p, h] = 1  iff  h == 2*p + dy   (vertical stride-2 pick)
    #   R[dx][w, q] = 1  iff  w == 2*q + dx   (horizontal stride-2 pick)
    row_p = jax.lax.broadcasted_iota(jnp.int32, (th, h_blk), 0)
    row_h = jax.lax.broadcasted_iota(jnp.int32, (th, h_blk), 1)
    col_w = jax.lax.broadcasted_iota(jnp.int32, (w_in, wo), 0)
    col_q = jax.lax.broadcasted_iota(jnp.int32, (w_in, wo), 1)
    E = [jnp.where(row_h == 2 * row_p + dy, 1.0, 0.0).astype(f32) for dy in (0, 1)]
    R = [jnp.where(col_w == 2 * col_q + dx, 1.0, 0.0).astype(f32) for dx in (0, 1)]

    accs = [jnp.zeros((th, wo), f32) for _ in range(cout)]

    for ci in range(cin):
        xc = x_ref[0, ci]                                # (2*TH, W), lane-dense
        # bf16-exact high/low split: every value is representable exactly by
        # (hi + lo) with both parts bf16-exact, so the selection matmuls below
        # are exact even if the MXU contracts f32 operands at bf16 precision.
        xc_hi = xc.astype(jnp.bfloat16).astype(f32)
        xc_lo = xc - xc_hi
        for dy in range(2):
            y_hi = jnp.dot(E[dy], xc_hi, preferred_element_type=f32)   # (TH, W)
            y_lo = jnp.dot(E[dy], xc_lo, preferred_element_type=f32)   # (TH, W)
            for dx in range(2):
                z = (jnp.dot(y_hi, R[dx], preferred_element_type=f32)
                     + jnp.dot(y_lo, R[dx], preferred_element_type=f32))  # (TH, Wo)
                for co in range(cout):
                    k = ((co * cin + ci) * 2 + dy) * 2 + dx
                    accs[co] = accs[co] + w_ref[k] * z    # VPU FMA, SMEM scalar

    for co in range(cout):
        o_ref[0, co] = (accs[co] + b_ref[co]).astype(o_ref.dtype)


def _pick_row_tile(ho: int) -> int:
    """Largest output-row tile that exactly divides Ho and satisfies the
    (8,128) block rule (tile == Ho, or a multiple of 8)."""
    if ho <= 256:
        return ho
    for t in range(256, 0, -8):
        if ho % t == 0:
            return t
    return ho  # fallback: full extent


def high3_forward(x_nchw, weight_oihw, bias):
    """Conv2d(3,3,kernel_size=2,stride=2) forward, NCHW in / NCHW out."""
    N, Cin, H, W = x_nchw.shape
    Cout = weight_oihw.shape[0]
    assert H % 2 == 0 and W % 2 == 0, "H and W must be even for k=2/stride=2"
    Ho, Wo = H // 2, W // 2

    th = _pick_row_tile(Ho)
    n_row_blocks = Ho // th

    x = x_nchw.astype(jnp.float32)
    w_flat = weight_oihw.reshape(-1).astype(jnp.float32)   # (Cout*Cin*4,)
    b_flat = bias.reshape(-1).astype(jnp.float32)          # (Cout,)

    # Advisory cost estimate (selection matmuls + FMA epilogue).
    flops = N * n_row_blocks * (
        12 * 2 * th * (2 * th) * W        # E @ x  (3 ci x 2 dy x 2 parts)
        + 24 * 2 * th * W * Wo            # y @ R  (x 2 dx)
        + Cout * Cin * 4 * 2 * th * Wo    # weighted accumulation
    )
    bytes_accessed = 4 * (x.size + N * Cout * Ho * Wo + w_flat.size + b_flat.size)

    out = pl.pallas_call(
        _high3_kernel,
        out_shape=jax.ShapeDtypeStruct((N, Cout, Ho, Wo), jnp.float32),
        grid=(N, n_row_blocks),
        in_specs=[
            pl.BlockSpec(memory_space=pltpu.MemorySpace.SMEM),           # weights
            pl.BlockSpec(memory_space=pltpu.MemorySpace.SMEM),           # bias
            pl.BlockSpec((1, Cin, 2 * th, W), lambda n, j: (n, 0, j, 0)),  # x
        ],
        out_specs=pl.BlockSpec((1, Cout, th, Wo), lambda n, j: (n, 0, j, 0)),
        compiler_params=pltpu.CompilerParams(
            dimension_semantics=("parallel", "parallel")),
        cost_estimate=pl.CostEstimate(
            flops=flops, transcendentals=0, bytes_accessed=bytes_accessed),
    )(w_flat, b_flat, x)
    return out


def make_high3_params():
    """Deterministic parameters matching High_3.__init__."""
    w = jnp.full((3, 3, 2, 2), 0.25, dtype=jnp.float32)
    w = w.at[0, 0, 1, 0].set(-0.25)
    w = w.at[0, 0, 0, 1].set(-0.25)
    # Conv2d bias is left at PyTorch's random default in the module; we pick a
    # fixed deterministic bias here (synthetic init, no checkpoint load).
    b = jnp.array([0.1, -0.2, 0.3], dtype=jnp.float32)
    return w, b


if __name__ == "__main__":
    key = jax.random.PRNGKey(0)
    # shapes consistent with the module: N=2, C=3 (fixed by the conv), 16x16
    x = jax.random.normal(key, (2, 3, 16, 16), dtype=jnp.float32)
    w, b = make_high3_params()

    out = high3_forward(x, w, b)
    out = jax.block_until_ready(out)

    # reference check against XLA's conv (same semantics as PyTorch Conv2d)
    ref = jax.lax.conv_general_dilated(
        x, w, window_strides=(2, 2), padding="VALID",
        dimension_numbers=("NCHW", "OIHW", "NCHW"),
        precision=jax.lax.Precision.HIGHEST,
    ) + b.reshape(1, 3, 1, 1)
    ref = jax.block_until_ready(ref)

    assert out.shape == (2, 3, 8, 8), out.shape
    assert jnp.allclose(out, ref, atol=5e-4, rtol=5e-4), (
        float(jnp.max(jnp.abs(out - ref))))

    print("KERNEL_OK")
</pallas_src>

<mosaic_0001>
module attributes {stable_mosaic.version = 11 : i64} {
  func.func @_high3_kernel(%arg0: i32, %arg1: i32, %arg2: memref<36xf32, #tpu.memory_space<smem>>, %arg3: memref<3xf32, #tpu.memory_space<smem>>, %arg4: memref<1x3x16x16xf32, #tpu.memory_space<vmem>>, %arg5: memref<1x3x8x8xf32, #tpu.memory_space<vmem>>) attributes {dimension_semantics = [#tpu.dimension_semantics<parallel>, #tpu.dimension_semantics<parallel>], iteration_bounds = array<i64: 2, 1>, scalar_prefetch = 0 : i64, scratch_operands = 0 : i64, tpu.core_type = #tpu.core_type<tc>, window_params = [{transform_indices = @transform_0, window_bounds = array<i64: 36>}, {transform_indices = @transform_1, window_bounds = array<i64: 3>}, {transform_indices = @transform_2, window_bounds = array<i64: 1, 3, 16, 16>}, {transform_indices = @transform_3, window_bounds = array<i64: 1, 3, 8, 8>}]} {
    %0 = tpu.iota {dimensions = array<i32: 0>} : vector<8x16xi32>
    %1 = tpu.iota {dimensions = array<i32: 1>} : vector<8x16xi32>
    %2 = tpu.iota {dimensions = array<i32: 0>} : vector<16x8xi32>
    %3 = tpu.iota {dimensions = array<i32: 1>} : vector<16x8xi32>
    %c2_i32 = arith.constant 2 : i32
    %4 = vector.broadcast %c2_i32 : i32 to vector<8x16xi32>
    %5 = arith.muli %4, %0 : vector<8x16xi32>
    %c0_i32 = arith.constant 0 : i32
    %6 = vector.broadcast %c0_i32 : i32 to vector<8x16xi32>
    %7 = arith.addi %5, %6 : vector<8x16xi32>
    %8 = arith.cmpi eq, %1, %7 : vector<8x16xi32>
    %cst = arith.constant 1.000000e+00 : f32
    %cst_0 = arith.constant 0.000000e+00 : f32
    %9 = vector.broadcast %cst : f32 to vector<8x16xf32>
    %10 = vector.broadcast %cst_0 : f32 to vector<8x16xf32>
    %11 = arith.select %8, %9, %10 : vector<8x16xi1>, vector<8x16xf32>
    %c2_i32_1 = arith.constant 2 : i32
    %12 = vector.broadcast %c2_i32_1 : i32 to vector<8x16xi32>
    %13 = arith.muli %12, %0 : vector<8x16xi32>
    %c1_i32 = arith.constant 1 : i32
    %14 = vector.broadcast %c1_i32 : i32 to vector<8x16xi32>
    %15 = arith.addi %13, %14 : vector<8x16xi32>
    %16 = arith.cmpi eq, %1, %15 : vector<8x16xi32>
    %cst_2 = arith.constant 1.000000e+00 : f32
    %cst_3 = arith.constant 0.000000e+00 : f32
    %17 = vector.broadcast %cst_2 : f32 to vector<8x16xf32>
    %18 = vector.broadcast %cst_3 : f32 to vector<8x16xf32>
    %19 = arith.select %16, %17, %18 : vector<8x16xi1>, vector<8x16xf32>
    %c2_i32_4 = arith.constant 2 : i32
    %20 = vector.broadcast %c2_i32_4 : i32 to vector<16x8xi32>
    %21 = arith.muli %20, %3 : vector<16x8xi32>
    %c0_i32_5 = arith.constant 0 : i32
    %22 = vector.broadcast %c0_i32_5 : i32 to vector<16x8xi32>
    %23 = arith.addi %21, %22 : vector<16x8xi32>
    %24 = arith.cmpi eq, %2, %23 : vector<16x8xi32>
    %cst_6 = arith.constant 1.000000e+00 : f32
    %cst_7 = arith.constant 0.000000e+00 : f32
    %25 = vector.broadcast %cst_6 : f32 to vector<16x8xf32>
    %26 = vector.broadcast %cst_7 : f32 to vector<16x8xf32>
    %27 = arith.select %24, %25, %26 : vector<16x8xi1>, vector<16x8xf32>
    %c2_i32_8 = arith.constant 2 : i32
    %28 = vector.broadcast %c2_i32_8 : i32 to vector<16x8xi32>
    %29 = arith.muli %28, %3 : vector<16x8xi32>
    %c1_i32_9 = arith.constant 1 : i32
    %30 = vector.broadcast %c1_i32_9 : i32 to vector<16x8xi32>
    %31 = arith.addi %29, %30 : vector<16x8xi32>
    %32 = arith.cmpi eq, %2, %31 : vector<16x8xi32>
    %cst_10 = arith.constant 1.000000e+00 : f32
    %cst_11 = arith.constant 0.000000e+00 : f32
    %33 = vector.broadcast %cst_10 : f32 to vector<16x8xf32>
    %34 = vector.broadcast %cst_11 : f32 to vector<16x8xf32>
    %35 = arith.select %32, %33, %34 : vector<16x8xi1>, vector<16x8xf32>
    %cst_12 = arith.constant 0.000000e+00 : f32
    %36 = vector.broadcast %cst_12 : f32 to vector<8x8xf32>
    %cst_13 = arith.constant 0.000000e+00 : f32
    %37 = vector.broadcast %cst_13 : f32 to vector<8x8xf32>
    %cst_14 = arith.constant 0.000000e+00 : f32
    %38 = vector.broadcast %cst_14 : f32 to vector<8x8xf32>
    %c0 = arith.constant 0 : index
    %c0_15 = arith.constant 0 : index
    %c0_16 = arith.constant 0 : index
    %c0_17 = arith.constant 0 : index
    %39 = vector.load %arg4[%c0, %c0_15, %c0_16, %c0_17] : memref<1x3x16x16xf32, #tpu.memory_space<vmem>>, vector<1x1x16x16xf32>
    %40 = vector.shape_cast %39 : vector<1x1x16x16xf32> to vector<16x16xf32>
    %41 = arith.truncf %40 : vector<16x16xf32> to vector<16x16xbf16>
    %42 = arith.extf %41 : vector<16x16xbf16> to vector<16x16xf32>
    %43 = arith.subf %40, %42 : vector<16x16xf32>
    %cst_18 = arith.constant dense<0.000000e+00> : vector<8x16xf32>
    %44 = tpu.matmul %11, %42, %cst_18 {dimension_numbers = #tpu.dot_dimension_numbers<[1], [0], [0], [1], [0, 0, 1, 1], [], []>} : vector<8x16xf32>, vector<16x16xf32>, vector<8x16xf32> -> vector<8x16xf32>
    %cst_19 = arith.constant dense<0.000000e+00> : vector<8x16xf32>
    %45 = tpu.matmul %11, %43, %cst_19 {dimension_numbers = #tpu.dot_dimension_numbers<[1], [0], [0], [1], [0, 0, 1, 1], [], []>} : vector<8x16xf32>, vector<16x16xf32>, vector<8x16xf32> -> vector<8x16xf32>
    %cst_20 = arith.constant dense<0.000000e+00> : vector<8x8xf32>
    %46 = tpu.matmul %44, %27, %cst_20 {dimension_numbers = #tpu.dot_dimension_numbers<[1], [0], [0], [1], [0, 0, 1, 1], [], []>} : vector<8x16xf32>, vector<16x8xf32>, vector<8x8xf32> -> vector<8x8xf32>
    %cst_21 = arith.constant dense<0.000000e+00> : vector<8x8xf32>
    %47 = tpu.matmul %45, %27, %cst_21 {dimension_numbers = #tpu.dot_dimension_numbers<[1], [0], [0], [1], [0, 0, 1, 1], [], []>} : vector<8x16xf32>, vector<16x8xf32>, vector<8x8xf32> -> vector<8x8xf32>
    %48 = arith.addf %46, %47 : vector<8x8xf32>
    %c0_22 = arith.constant 0 : index
    %49 = memref.load %arg2[%c0_22] : memref<36xf32, #tpu.memory_space<smem>>
    %50 = vector.broadcast %49 : f32 to vector<8x8xf32>
    %51 = arith.mulf %50, %48 : vector<8x8xf32>
    %52 = arith.addf %36, %51 : vector<8x8xf32>
    %c12 = arith.constant 12 : index
    %53 = memref.load %arg2[%c12] : memref<36xf32, #tpu.memory_space<smem>>
    %54 = vector.broadcast %53 : f32 to vector<8x8xf32>
    %55 = arith.mulf %54, %48 : vector<8x8xf32>
    %56 = arith.addf %37, %55 : vector<8x8xf32>
    %c24 = arith.constant 24 : index
    %57 = memref.load %arg2[%c24] : memref<36xf32, #tpu.memory_space<smem>>
    %58 = vector.broadcast %57 : f32 to vector<8x8xf32>
    %59 = arith.mulf %58, %48 : vector<8x8xf32>
    %60 = arith.addf %38, %59 : vector<8x8xf32>
    %cst_23 = arith.constant dense<0.000000e+00> : vector<8x8xf32>
    %61 = tpu.matmul %44, %35, %cst_23 {dimension_numbers = #tpu.dot_dimension_numbers<[1], [0], [0], [1], [0, 0, 1, 1], [], []>} : vector<8x16xf32>, vector<16x8xf32>, vector<8x8xf32> -> vector<8x8xf32>
    %cst_24 = arith.constant dense<0.000000e+00> : vector<8x8xf32>
    %62 = tpu.matmul %45, %35, %cst_24 {dimension_numbers = #tpu.dot_dimension_numbers<[1], [0], [0], [1], [0, 0, 1, 1], [], []>} : vector<8x16xf32>, vector<16x8xf32>, vector<8x8xf32> -> vector<8x8xf32>
    %63 = arith.addf %61, %62 : vector<8x8xf32>
    %c1 = arith.constant 1 : index
    %64 = memref.load %arg2[%c1] : memref<36xf32, #tpu.memory_space<smem>>
    %65 = vector.broadcast %64 : f32 to vector<8x8xf32>
    %66 = arith.mulf %65, %63 : vector<8x8xf32>
    %67 = arith.addf %52, %66 : vector<8x8xf32>
    %c13 = arith.constant 13 : index
    %68 = memref.load %arg2[%c13] : memref<36xf32, #tpu.memory_space<smem>>
    %69 = vector.broadcast %68 : f32 to vector<8x8xf32>
    %70 = arith.mulf %69, %63 : vector<8x8xf32>
    %71 = arith.addf %56, %70 : vector<8x8xf32>
    %c25 = arith.constant 25 : index
    %72 = memref.load %arg2[%c25] : memref<36xf32, #tpu.memory_space<smem>>
    %73 = vector.broadcast %72 : f32 to vector<8x8xf32>
    %74 = arith.mulf %73, %63 : vector<8x8xf32>
    %75 = arith.addf %60, %74 : vector<8x8xf32>
    %cst_25 = arith.constant dense<0.000000e+00> : vector<8x16xf32>
    %76 = tpu.matmul %19, %42, %cst_25 {dimension_numbers = #tpu.dot_dimension_numbers<[1], [0], [0], [1], [0, 0, 1, 1], [], []>} : vector<8x16xf32>, vector<16x16xf32>, vector<8x16xf32> -> vector<8x16xf32>
    %cst_26 = arith.constant dense<0.000000e+00> : vector<8x16xf32>
    %77 = tpu.matmul %19, %43, %cst_26 {dimension_numbers = #tpu.dot_dimension_numbers<[1], [0], [0], [1], [0, 0, 1, 1], [], []>} : vector<8x16xf32>, vector<16x16xf32>, vector<8x16xf32> -> vector<8x16xf32>
    %cst_27 = arith.constant dense<0.000000e+00> : vector<8x8xf32>
    %78 = tpu.matmul %76, %27, %cst_27 {dimension_numbers = #tpu.dot_dimension_numbers<[1], [0], [0], [1], [0, 0, 1, 1], [], []>} : vector<8x16xf32>, vector<16x8xf32>, vector<8x8xf32> -> vector<8x8xf32>
    %cst_28 = arith.constant dense<0.000000e+00> : vector<8x8xf32>
    %79 = tpu.matmul %77, %27, %cst_28 {dimension_numbers = #tpu.dot_dimension_numbers<[1], [0], [0], [1], [0, 0, 1, 1], [], []>} : vector<8x16xf32>, vector<16x8xf32>, vector<8x8xf32> -> vector<8x8xf32>
    %80 = arith.addf %78, %79 : vector<8x8xf32>
    %c2 = arith.constant 2 : index
    %81 = memref.load %arg2[%c2] : memref<36xf32, #tpu.memory_space<smem>>
    %82 = vector.broadcast %81 : f32 to vector<8x8xf32>
    %83 = arith.mulf %82, %80 : vector<8x8xf32>
    %84 = arith.addf %67, %83 : vector<8x8xf32>
    %c14 = arith.constant 14 : index
    %85 = memref.load %arg2[%c14] : memref<36xf32, #tpu.memory_space<smem>>
    %86 = vector.broadcast %85 : f32 to vector<8x8xf32>
    %87 = arith.mulf %86, %80 : vector<8x8xf32>
    %88 = arith.addf %71, %87 : vector<8x8xf32>
    %c26 = arith.constant 26 : index
    %89 = memref.load %arg2[%c26] : memref<36xf32, #tpu.memory_space<smem>>
    %90 = vector.broadcast %89 : f32 to vector<8x8xf32>
    %91 = arith.mulf %90, %80 : vector<8x8xf32>
    %92 = arith.addf %75, %91 : vector<8x8xf32>
    %cst_29 = arith.constant dense<0.000000e+00> : vector<8x8xf32>
    %93 = tpu.matmul %76, %35, %cst_29 {dimension_numbers = #tpu.dot_dimension_numbers<[1], [0], [0], [1], [0, 0, 1, 1], [], []>} : vector<8x16xf32>, vector<16x8xf32>, vector<8x8xf32> -> vector<8x8xf32>
    %cst_30 = arith.constant dense<0.000000e+00> : vector<8x8xf32>
    %94 = tpu.matmul %77, %35, %cst_30 {dimension_numbers = #tpu.dot_dimension_numbers<[1], [0], [0], [1], [0, 0, 1, 1], [], []>} : vector<8x16xf32>, vector<16x8xf32>, vector<8x8xf32> -> vector<8x8xf32>
    %95 = arith.addf %93, %94 : vector<8x8xf32>
    %c3 = arith.constant 3 : index
    %96 = memref.load %arg2[%c3] : memref<36xf32, #tpu.memory_space<smem>>
    %97 = vector.broadcast %96 : f32 to vector<8x8xf32>
    %98 = arith.mulf %97, %95 : vector<8x8xf32>
    %99 = arith.addf %84, %98 : vector<8x8xf32>
    %c15 = arith.constant 15 : index
    %100 = memref.load %arg2[%c15] : memref<36xf32, #tpu.memory_space<smem>>
    %101 = vector.broadcast %100 : f32 to vector<8x8xf32>
    %102 = arith.mulf %101, %95 : vector<8x8xf32>
    %103 = arith.addf %88, %102 : vector<8x8xf32>
    %c27 = arith.constant 27 : index
    %104 = memref.load %arg2[%c27] : memref<36xf32, #tpu.memory_space<smem>>
    %105 = vector.broadcast %104 : f32 to vector<8x8xf32>
    %106 = arith.mulf %105, %95 : vector<8x8xf32>
    %107 = arith.addf %92, %106 : vector<8x8xf32>
    %c0_31 = arith.constant 0 : index
    %c1_32 = arith.constant 1 : index
    %c0_33 = arith.constant 0 : index
    %c0_34 = arith.constant 0 : index
    %108 = vector.load %arg4[%c0_31, %c1_32, %c0_33, %c0_34] : memref<1x3x16x16xf32, #tpu.memory_space<vmem>>, vector<1x1x16x16xf32>
    %109 = vector.shape_cast %108 : vector<1x1x16x16xf32> to vector<16x16xf32>
    %110 = arith.truncf %109 : vector<16x16xf32> to vector<16x16xbf16>
    %111 = arith.extf %110 : vector<16x16xbf16> to vector<16x16xf32>
    %112 = arith.subf %109, %111 : vector<16x16xf32>
    %cst_35 = arith.constant dense<0.000000e+00> : vector<8x16xf32>
    %113 = tpu.matmul %11, %111, %cst_35 {dimension_numbers = #tpu.dot_dimension_numbers<[1], [0], [0], [1], [0, 0, 1, 1], [], []>} : vector<8x16xf32>, vector<16x16xf32>, vector<8x16xf32> -> vector<8x16xf32>
    %cst_36 = arith.constant dense<0.000000e+00> : vector<8x16xf32>
    %114 = tpu.matmul %11, %112, %cst_36 {dimension_numbers = #tpu.dot_dimension_numbers<[1], [0], [0], [1], [0, 0, 1, 1], [], []>} : vector<8x16xf32>, vector<16x16xf32>, vector<8x16xf32> -> vector<8x16xf32>
    %cst_37 = arith.constant dense<0.000000e+00> : vector<8x8xf32>
    %115 = tpu.matmul %113, %27, %cst_37 {dimension_numbers = #tpu.dot_dimension_numbers<[1], [0], [0], [1], [0, 0, 1, 1], [], []>} : vector<8x16xf32>, vector<16x8xf32>, vector<8x8xf32> -> vector<8x8xf32>
    %cst_38 = arith.constant dense<0.000000e+00> : vector<8x8xf32>
    %116 = tpu.matmul %114, %27, %cst_38 {dimension_numbers = #tpu.dot_dimension_numbers<[1], [0], [0], [1], [0, 0, 1, 1], [], []>} : vector<8x16xf32>, vector<16x8xf32>, vector<8x8xf32> -> vector<8x8xf32>
    %117 = arith.addf %115, %116 : vector<8x8xf32>
    %c4 = arith.constant 4 : index
    %118 = memref.load %arg2[%c4] : memref<36xf32, #tpu.memory_space<smem>>
    %119 = vector.broadcast %118 : f32 to vector<8x8xf32>
    %120 = arith.mulf %119, %117 : vector<8x8xf32>
    %121 = arith.addf %99, %120 : vector<8x8xf32>
    %c16 = arith.constant 16 : index
    %122 = memref.load %arg2[%c16] : memref<36xf32, #tpu.memory_space<smem>>
    %123 = vector.broadcast %122 : f32 to vector<8x8xf32>
    %124 = arith.mulf %123, %117 : vector<8x8xf32>
    %125 = arith.addf %103, %124 : vector<8x8xf32>
    %c28 = arith.constant 28 : index
    %126 = memref.load %arg2[%c28] : memref<36xf32, #tpu.memory_space<smem>>
    %127 = vector.broadcast %126 : f32 to vector<8x8xf32>
    %128 = arith.mulf %127, %117 : vector<8x8xf32>
    %129 = arith.addf %107, %128 : vector<8x8xf32>
    %cst_39 = arith.constant dense<0.000000e+00> : vector<8x8xf32>
    %130 = tpu.matmul %113, %35, %cst_39 {dimension_numbers = #tpu.dot_dimension_numbers<[1], [0], [0], [1], [0, 0, 1, 1], [], []>} : vector<8x16xf32>, vector<16x8xf32>, vector<8x8xf32> -> vector<8x8xf32>
    %cst_40 = arith.constant dense<0.000000e+00> : vector<8x8xf32>
    %131 = tpu.matmul %114, %35, %cst_40 {dimension_numbers = #tpu.dot_dimension_numbers<[1], [0], [0], [1], [0, 0, 1, 1], [], []>} : vector<8x16xf32>, vector<16x8xf32>, vector<8x8xf32> -> vector<8x8xf32>
    %132 = arith.addf %130, %131 : vector<8x8xf32>
    %c5 = arith.constant 5 : index
    %133 = memref.load %arg2[%c5] : memref<36xf32, #tpu.memory_space<smem>>
    %134 = vector.broadcast %133 : f32 to vector<8x8xf32>
    %135 = arith.mulf %134, %132 : vector<8x8xf32>
    %136 = arith.addf %121, %135 : vector<8x8xf32>
    %c17 = arith.constant 17 : index
    %137 = memref.load %arg2[%c17] : memref<36xf32, #tpu.memory_space<smem>>
    %138 = vector.broadcast %137 : f32 to vector<8x8xf32>
    %139 = arith.mulf %138, %132 : vector<8x8xf32>
    %140 = arith.addf %125, %139 : vector<8x8xf32>
    %c29 = arith.constant 29 : index
    %141 = memref.load %arg2[%c29] : memref<36xf32, #tpu.memory_space<smem>>
    %142 = vector.broadcast %141 : f32 to vector<8x8xf32>
    %143 = arith.mulf %142, %132 : vector<8x8xf32>
    %144 = arith.addf %129, %143 : vector<8x8xf32>
    %cst_41 = arith.constant dense<0.000000e+00> : vector<8x16xf32>
    %145 = tpu.matmul %19, %111, %cst_41 {dimension_numbers = #tpu.dot_dimension_numbers<[1], [0], [0], [1], [0, 0, 1, 1], [], []>} : vector<8x16xf32>, vector<16x16xf32>, vector<8x16xf32> -> vector<8x16xf32>
    %cst_42 = arith.constant dense<0.000000e+00> : vector<8x16xf32>
    %146 = tpu.matmul %19, %112, %cst_42 {dimension_numbers = #tpu.dot_dimension_numbers<[1], [0], [0], [1], [0, 0, 1, 1], [], []>} : vector<8x16xf32>, vector<16x16xf32>, vector<8x16xf32> -> vector<8x16xf32>
    %cst_43 = arith.constant dense<0.000000e+00> : vector<8x8xf32>
    %147 = tpu.matmul %145, %27, %cst_43 {dimension_numbers = #tpu.dot_dimension_numbers<[1], [0], [0], [1], [0, 0, 1, 1], [], []>} : vector<8x16xf32>, vector<16x8xf32>, vector<8x8xf32> -> vector<8x8xf32>
    %cst_44 = arith.constant dense<0.000000e+00> : vector<8x8xf32>
    %148 = tpu.matmul %146, %27, %cst_44 {dimension_numbers = #tpu.dot_dimension_numbers<[1], [0], [0], [1], [0, 0, 1, 1], [], []>} : vector<8x16xf32>, vector<16x8xf32>, vector<8x8xf32> -> vector<8x8xf32>
    %149 = arith.addf %147, %148 : vector<8x8xf32>
    %c6 = arith.constant 6 : index
    %150 = memref.load %arg2[%c6] : memref<36xf32, #tpu.memory_space<smem>>
    %151 = vector.broadcast %150 : f32 to vector<8x8xf32>
    %152 = arith.mulf %151, %149 : vector<8x8xf32>
    %153 = arith.addf %136, %152 : vector<8x8xf32>
    %c18 = arith.constant 18 : index
    %154 = memref.load %arg2[%c18] : memref<36xf32, #tpu.memory_space<smem>>
    %155 = vector.broadcast %154 : f32 to vector<8x8xf32>
    %156 = arith.mulf %155, %149 : vector<8x8xf32>
    %157 = arith.addf %140, %156 : vector<8x8xf32>
    %c30 = arith.constant 30 : index
    %158 = memref.load %arg2[%c30] : memref<36xf32, #tpu.memory_space<smem>>
    %159 = vector.broadcast %158 : f32 to vector<8x8xf32>
    %160 = arith.mulf %159, %149 : vector<8x8xf32>
    %161 = arith.addf %144, %160 : vector<8x8xf32>
    %cst_45 = arith.constant dense<0.000000e+00> : vector<8x8xf32>
    %162 = tpu.matmul %145, %35, %cst_45 {dimension_numbers = #tpu.dot_dimension_numbers<[1], [0], [0], [1], [0, 0, 1, 1], [], []>} : vector<8x16xf32>, vector<16x8xf32>, vector<8x8xf32> -> vector<8x8xf32>
    %cst_46 = arith.constant dense<0.000000e+00> : vector<8x8xf32>
    %163 = tpu.matmul %146, %35, %cst_46 {dimension_numbers = #tpu.dot_dimension_numbers<[1], [0], [0], [1], [0, 0, 1, 1], [], []>} : vector<8x16xf32>, vector<16x8xf32>, vector<8x8xf32> -> vector<8x8xf32>
    %164 = arith.addf %162, %163 : vector<8x8xf32>
    %c7 = arith.constant 7 : index
    %165 = memref.load %arg2[%c7] : memref<36xf32, #tpu.memory_space<smem>>
    %166 = vector.broadcast %165 : f32 to vector<8x8xf32>
    %167 = arith.mulf %166, %164 : vector<8x8xf32>
    %168 = arith.addf %153, %167 : vector<8x8xf32>
    %c19 = arith.constant 19 : index
    %169 = memref.load %arg2[%c19] : memref<36xf32, #tpu.memory_space<smem>>
    %170 = vector.broadcast %169 : f32 to vector<8x8xf32>
    %171 = arith.mulf %170, %164 : vector<8x8xf32>
    %172 = arith.addf %157, %171 : vector<8x8xf32>
    %c31 = arith.constant 31 : index
    %173 = memref.load %arg2[%c31] : memref<36xf32, #tpu.memory_space<smem>>
    %174 = vector.broadcast %173 : f32 to vector<8x8xf32>
    %175 = arith.mulf %174, %164 : vector<8x8xf32>
    %176 = arith.addf %161, %175 : vector<8x8xf32>
    %c0_47 = arith.constant 0 : index
    %c2_48 = arith.constant 2 : index
    %c0_49 = arith.constant 0 : index
    %c0_50 = arith.constant 0 : index
    %177 = vector.load %arg4[%c0_47, %c2_48, %c0_49, %c0_50] : memref<1x3x16x16xf32, #tpu.memory_space<vmem>>, vector<1x1x16x16xf32>
    %178 = vector.shape_cast %177 : vector<1x1x16x16xf32> to vector<16x16xf32>
    %179 = arith.truncf %178 : vector<16x16xf32> to vector<16x16xbf16>
    %180 = arith.extf %179 : vector<16x16xbf16> to vector<16x16xf32>
    %181 = arith.subf %178, %180 : vector<16x16xf32>
    %cst_51 = arith.constant dense<0.000000e+00> : vector<8x16xf32>
    %182 = tpu.matmul %11, %180, %cst_51 {dimension_numbers = #tpu.dot_dimension_numbers<[1], [0], [0], [1], [0, 0, 1, 1], [], []>} : vector<8x16xf32>, vector<16x16xf32>, vector<8x16xf32> -> vector<8x16xf32>
    %cst_52 = arith.constant dense<0.000000e+00> : vector<8x16xf32>
    %183 = tpu.matmul %11, %181, %cst_52 {dimension_numbers = #tpu.dot_dimension_numbers<[1], [0], [0], [1], [0, 0, 1, 1], [], []>} : vector<8x16xf32>, vector<16x16xf32>, vector<8x16xf32> -> vector<8x16xf32>
    %cst_53 = arith.constant dense<0.000000e+00> : vector<8x8xf32>
    %184 = tpu.matmul %182, %27, %cst_53 {dimension_numbers = #tpu.dot_dimension_numbers<[1], [0], [0], [1], [0, 0, 1, 1], [], []>} : vector<8x16xf32>, vector<16x8xf32>, vector<8x8xf32> -> vector<8x8xf32>
    %cst_54 = arith.constant dense<0.000000e+00> : vector<8x8xf32>
    %185 = tpu.matmul %183, %27, %cst_54 {dimension_numbers = #tpu.dot_dimension_numbers<[1], [0], [0], [1], [0, 0, 1, 1], [], []>} : vector<8x16xf32>, vector<16x8xf32>, vector<8x8xf32> -> vector<8x8xf32>
    %186 = arith.addf %184, %185 : vector<8x8xf32>
    %c8 = arith.constant 8 : index
    %187 = memref.load %arg2[%c8] : memref<36xf32, #tpu.memory_space<smem>>
    %188 = vector.broadcast %187 : f32 to vector<8x8xf32>
    %189 = arith.mulf %188, %186 : vector<8x8xf32>
    %190 = arith.addf %168, %189 : vector<8x8xf32>
    %c20 = arith.constant 20 : index
    %191 = memref.load %arg2[%c20] : memref<36xf32, #tpu.memory_space<smem>>
    %192 = vector.broadcast %191 : f32 to vector<8x8xf32>
    %193 = arith.mulf %192, %186 : vector<8x8xf32>
    %194 = arith.addf %172, %193 : vector<8x8xf32>
    %c32 = arith.constant 32 : index
    %195 = memref.load %arg2[%c32] : memref<36xf32, #tpu.memory_space<smem>>
    %196 = vector.broadcast %195 : f32 to vector<8x8xf32>
    %197 = arith.mulf %196, %186 : vector<8x8xf32>
    %198 = arith.addf %176, %197 : vector<8x8xf32>
    %cst_55 = arith.constant dense<0.000000e+00> : vector<8x8xf32>
    %199 = tpu.matmul %182, %35, %cst_55 {dimension_numbers = #tpu.dot_dimension_numbers<[1], [0], [0], [1], [0, 0, 1, 1], [], []>} : vector<8x16xf32>, vector<16x8xf32>, vector<8x8xf32> -> vector<8x8xf32>
    %cst_56 = arith.constant dense<0.000000e+00> : vector<8x8xf32>
    %200 = tpu.matmul %183, %35, %cst_56 {dimension_numbers = #tpu.dot_dimension_numbers<[1], [0], [0], [1], [0, 0, 1, 1], [], []>} : vector<8x16xf32>, vector<16x8xf32>, vector<8x8xf32> -> vector<8x8xf32>
    %201 = arith.addf %199, %200 : vector<8x8xf32>
    %c9 = arith.constant 9 : index
    %202 = memref.load %arg2[%c9] : memref<36xf32, #tpu.memory_space<smem>>
    %203 = vector.broadcast %202 : f32 to vector<8x8xf32>
    %204 = arith.mulf %203, %201 : vector<8x8xf32>
    %205 = arith.addf %190, %204 : vector<8x8xf32>
    %c21 = arith.constant 21 : index
    %206 = memref.load %arg2[%c21] : memref<36xf32, #tpu.memory_space<smem>>
    %207 = vector.broadcast %206 : f32 to vector<8x8xf32>
    %208 = arith.mulf %207, %201 : vector<8x8xf32>
    %209 = arith.addf %194, %208 : vector<8x8xf32>
    %c33 = arith.constant 33 : index
    %210 = memref.load %arg2[%c33] : memref<36xf32, #tpu.memory_space<smem>>
    %211 = vector.broadcast %210 : f32 to vector<8x8xf32>
    %212 = arith.mulf %211, %201 : vector<8x8xf32>
    %213 = arith.addf %198, %212 : vector<8x8xf32>
    %cst_57 = arith.constant dense<0.000000e+00> : vector<8x16xf32>
    %214 = tpu.matmul %19, %180, %cst_57 {dimension_numbers = #tpu.dot_dimension_numbers<[1], [0], [0], [1], [0, 0, 1, 1], [], []>} : vector<8x16xf32>, vector<16x16xf32>, vector<8x16xf32> -> vector<8x16xf32>
    %cst_58 = arith.constant dense<0.000000e+00> : vector<8x16xf32>
    %215 = tpu.matmul %19, %181, %cst_58 {dimension_numbers = #tpu.dot_dimension_numbers<[1], [0], [0], [1], [0, 0, 1, 1], [], []>} : vector<8x16xf32>, vector<16x16xf32>, vector<8x16xf32> -> vector<8x16xf32>
    %cst_59 = arith.constant dense<0.000000e+00> : vector<8x8xf32>
    %216 = tpu.matmul %214, %27, %cst_59 {dimension_numbers = #tpu.dot_dimension_numbers<[1], [0], [0], [1], [0, 0, 1, 1], [], []>} : vector<8x16xf32>, vector<16x8xf32>, vector<8x8xf32> -> vector<8x8xf32>
    %cst_60 = arith.constant dense<0.000000e+00> : vector<8x8xf32>
    %217 = tpu.matmul %215, %27, %cst_60 {dimension_numbers = #tpu.dot_dimension_numbers<[1], [0], [0], [1], [0, 0, 1, 1], [], []>} : vector<8x16xf32>, vector<16x8xf32>, vector<8x8xf32> -> vector<8x8xf32>
    %218 = arith.addf %216, %217 : vector<8x8xf32>
    %c10 = arith.constant 10 : index
    %219 = memref.load %arg2[%c10] : memref<36xf32, #tpu.memory_space<smem>>
    %220 = vector.broadcast %219 : f32 to vector<8x8xf32>
    %221 = arith.mulf %220, %218 : vector<8x8xf32>
    %222 = arith.addf %205, %221 : vector<8x8xf32>
    %c22 = arith.constant 22 : index
    %223 = memref.load %arg2[%c22] : memref<36xf32, #tpu.memory_space<smem>>
    %224 = vector.broadcast %223 : f32 to vector<8x8xf32>
    %225 = arith.mulf %224, %218 : vector<8x8xf32>
    %226 = arith.addf %209, %225 : vector<8x8xf32>
    %c34 = arith.constant 34 : index
    %227 = memref.load %arg2[%c34] : memref<36xf32, #tpu.memory_space<smem>>
    %228 = vector.broadcast %227 : f32 to vector<8x8xf32>
    %229 = arith.mulf %228, %218 : vector<8x8xf32>
    %230 = arith.addf %213, %229 : vector<8x8xf32>
    %cst_61 = arith.constant dense<0.000000e+00> : vector<8x8xf32>
    %231 = tpu.matmul %214, %35, %cst_61 {dimension_numbers = #tpu.dot_dimension_numbers<[1], [0], [0], [1], [0, 0, 1, 1], [], []>} : vector<8x16xf32>, vector<16x8xf32>, vector<8x8xf32> -> vector<8x8xf32>
    %cst_62 = arith.constant dense<0.000000e+00> : vector<8x8xf32>
    %232 = tpu.matmul %215, %35, %cst_62 {dimension_numbers = #tpu.dot_dimension_numbers<[1], [0], [0], [1], [0, 0, 1, 1], [], []>} : vector<8x16xf32>, vector<16x8xf32>, vector<8x8xf32> -> vector<8x8xf32>
    %233 = arith.addf %231, %232 : vector<8x8xf32>
    %c11 = arith.constant 11 : index
    %234 = memref.load %arg2[%c11] : memref<36xf32, #tpu.memory_space<smem>>
    %235 = vector.broadcast %234 : f32 to vector<8x8xf32>
    %236 = arith.mulf %235, %233 : vector<8x8xf32>
    %237 = arith.addf %222, %236 : vector<8x8xf32>
    %c23 = arith.constant 23 : index
    %238 = memref.load %arg2[%c23] : memref<36xf32, #tpu.memory_space<smem>>
    %239 = vector.broadcast %238 : f32 to vector<8x8xf32>
    %240 = arith.mulf %239, %233 : vector<8x8xf32>
    %241 = arith.addf %226, %240 : vector<8x8xf32>
    %c35 = arith.constant 35 : index
    %242 = memref.load %arg2[%c35] : memref<36xf32, #tpu.memory_space<smem>>
    %243 = vector.broadcast %242 : f32 to vector<8x8xf32>
    %244 = arith.mulf %243, %233 : vector<8x8xf32>
    %245 = arith.addf %230, %244 : vector<8x8xf32>
    %c0_63 = arith.constant 0 : index
    %246 = memref.load %arg3[%c0_63] : memref<3xf32, #tpu.memory_space<smem>>
    %247 = vector.broadcast %246 : f32 to vector<8x8xf32>
    %248 = arith.addf %237, %247 : vector<8x8xf32>
    %c0_64 = arith.constant 0 : index
    %c0_65 = arith.constant 0 : index
    %c0_66 = arith.constant 0 : index
    %c0_67 = arith.constant 0 : index
    %249 = vector.load %arg5[%c0_64, %c0_65, %c0_66, %c0_67] : memref<1x3x8x8xf32, #tpu.memory_space<vmem>>, vector<1x1x8x8xf32>
    %250 = vector.shape_cast %249 : vector<1x1x8x8xf32> to vector<8x8xf32>
    %251 = vector.shape_cast %248 : vector<8x8xf32> to vector<1x1x8x8xf32>
    tpu.vector_store %arg5[%c0_64, %c0_65, %c0_66, %c0_67], %251 {strides = array<i32>} : memref<1x3x8x8xf32, #tpu.memory_space<vmem>>, vector<1x1x8x8xf32>,
    %c1_68 = arith.constant 1 : index
    %252 = memref.load %arg3[%c1_68] : memref<3xf32, #tpu.memory_space<smem>>
    %253 = vector.broadcast %252 : f32 to vector<8x8xf32>
    %254 = arith.addf %241, %253 : vector<8x8xf32>
    %c0_69 = arith.constant 0 : index
    %c1_70 = arith.constant 1 : index
    %c0_71 = arith.constant 0 : index
    %c0_72 = arith.constant 0 : index
    %255 = vector.load %arg5[%c0_69, %c1_70, %c0_71, %c0_72] : memref<1x3x8x8xf32, #tpu.memory_space<vmem>>, vector<1x1x8x8xf32>
    %256 = vector.shape_cast %255 : vector<1x1x8x8xf32> to vector<8x8xf32>
    %257 = vector.shape_cast %254 : vector<8x8xf32> to vector<1x1x8x8xf32>
    tpu.vector_store %arg5[%c0_69, %c1_70, %c0_71, %c0_72], %257 {strides = array<i32>} : memref<1x3x8x8xf32, #tpu.memory_space<vmem>>, vector<1x1x8x8xf32>,
    %c2_73 = arith.constant 2 : index
    %258 = memref.load %arg3[%c2_73] : memref<3xf32, #tpu.memory_space<smem>>
    %259 = vector.broadcast %258 : f32 to vector<8x8xf32>
    %260 = arith.addf %245, %259 : vector<8x8xf32>
    %c0_74 = arith.constant 0 : index
    %c2_75 = arith.constant 2 : index
    %c0_76 = arith.constant 0 : index
    %c0_77 = arith.constant 0 : index
    %261 = vector.load %arg5[%c0_74, %c2_75, %c0_76, %c0_77] : memref<1x3x8x8xf32, #tpu.memory_space<vmem>>, vector<1x1x8x8xf32>
    %262 = vector.shape_cast %261 : vector<1x1x8x8xf32> to vector<8x8xf32>
    %263 = vector.shape_cast %260 : vector<8x8xf32> to vector<1x1x8x8xf32>
    tpu.vector_store %arg5[%c0_74, %c2_75, %c0_76, %c0_77], %263 {strides = array<i32>} : memref<1x3x8x8xf32, #tpu.memory_space<vmem>>, vector<1x1x8x8xf32>,
    return
  }
  func.func @transform_0(%arg0: i32, %arg1: i32) -> i32 {
    %c0_i32 = arith.constant 0 : i32
    %c0_i32_0 = arith.constant 0 : i32
    return %c0_i32 : i32
  }
  func.func @transform_1(%arg0: i32, %arg1: i32) -> i32 {
    %c0_i32 = arith.constant 0 : i32
    %c0_i32_0 = arith.constant 0 : i32
    return %c0_i32 : i32
  }
  func.func @transform_2(%arg0: i32, %arg1: i32) -> (i32, i32, i32, i32) {
    %c0_i32 = arith.constant 0 : i32
    %c0_i32_0 = arith.constant 0 : i32
    %c0_i32_1 = arith.constant 0 : i32
    return %arg0, %c0_i32, %arg1, %c0_i32_0 : i32, i32, i32, i32
  }
  func.func @transform_3(%arg0: i32, %arg1: i32) -> (i32, i32, i32, i32) {
    %c0_i32 = arith.constant 0 : i32
    %c0_i32_0 = arith.constant 0 : i32
    %c0_i32_1 = arith.constant 0 : i32
    return %arg0, %c0_i32, %arg1, %c0_i32_0 : i32, i32, i32, i32
  }
}

</mosaic_0001>

<llo_original>
// kernel: tpu_custom_call.1
$region0: #{tpu_custom_call.1}
  #allocation0 [shape = 'u32[]', space=smem, size = 0x4, offset = 0x4, fixed_abs, tag = 'smem constant byte address 0x4 - core index']
  #allocation1 [shape = 'u32[144,128]{1,0:T(1,128)}', space=vmem, size = 0x12000, scoped, tag = 'internal scratch']
  %s0 = inlined_call_operand.hbm [shape: f32[36], index: 0, kind: input, shape index: {}]
  %s1 = inlined_call_operand.vmem [shape: f32[3], index: 1, kind: input, shape index: {}]
  %s2 = inlined_call_operand.hbm [shape: f32[2,3,16,16], index: 2, kind: input, shape index: {}]
  %s3 = inlined_call_operand.hbm [shape: f32[2,3,8,8], index: 3, kind: output, shape index: {}]
  %s4 = sld [smem:[#allocation0]]
  $region57: #{tpu_custom_call.1} parent=0
    _
  %s6 = ssub.s32 1, %s4
  %s7 = scalar_select 0, %s6, %s4
  $region1: #{tpu_custom_call.1} parent=0
    #allocation2 [shape = 'u8[512]{0}', space=smem, size = 0x200, scoped, tag = 'input window, operand 0, single buffered']
    #allocation3 [shape = 's32[2]{0}', space=sflag, size = 0x8, scoped, tag = 'scoped memory for tpu_custom_call.1']
    #allocation4 [shape = 's32[2]{0}', space=sflag, size = 0x8, scoped, tag = 'scoped memory for tpu_custom_call.1']
    #allocation5 [shape = 's32[2]{0}', space=sflag, size = 0x8, scoped, tag = 'scoped memory for tpu_custom_call.1']
    #allocation6 [shape = 's32[2]{0}', space=sflag, size = 0x8, scoped, tag = 'scoped memory for tpu_custom_call.1']
    #allocation7 [shape = 'u8[512]{0}', space=smem, size = 0x200, scoped, tag = 'input window, operand 1, single buffered']
    #allocation8 [shape = 'u8[49152]{0}', space=vmem, size = 0xc000, scoped, tag = 'input window, operand 2']
    #allocation9 [shape = 'u8[24576]{0}', space=vmem, size = 0x6000, scoped, tag = 'output window, operand 0']
    %8 = vsyncpa [#allocation5], 0
    %9 = vsyncpa [#allocation6], 0
    %10 = vsyncpa [#allocation3], 0
    %s11 = scalar_lea.sflag [#allocation3], 1
    %12 = vsyncpa %s11, 0
    %13 = vsyncpa [#allocation4], 0
    %s14 = scalar_lea.sflag [#allocation4], 1
    %15 = vsyncpa %s14, 0
    loop: start=0, step=1, limit=4
    $region2: #{tpu_custom_call.1} parent=1 // loop_pre_header
      _
    $region3: #{tpu_custom_call.1} parent=1 // loop_header
      %s17 = sphi 0, %s21
      %p18 = scmp.ge.s32.totalorder %s17, 4
      %s24 = sphi 0, %s36
      %s25 = sphi 0, %s32
      %s26 = sphi 0, %s24
      %s27 = sphi 0, %s25
      %s28 = sphi 0, %s26
      %s29 = sphi 0, %s27
      %s37 = sphi 0, %s37
      %s39 = sphi 0, %s37
      %s40 = sphi 0, %s39
      %s54 = sphi 0, %s40
      %s58 = sphi 0, %s58
      %s60 = sphi 0, %s58
      %s61 = sphi 0, %s60
      %s75 = sphi 0, %s61
      %s83 = sphi 0, %s85
      %s86 = sphi 0, %s83
      %s87 = sphi 0, %s86
      %s103 = sphi 0, %s87
      %s111 = sphi 0, %s113
      %s114 = sphi 0, %s111
      %s115 = sphi 0, %s114
      %s131 = sphi 0, %s115
    $region4: #{tpu_custom_call.1} parent=1 // loop_header_branch
      %20 = sbr.rel (%p18) target = $region8
    $region5: #{tpu_custom_call.1} parent=1 // loop_body
      %s22 = ssub.s32 %s17, 1
      %s23 = ssub.s32 %s17, 2
      %s30 = sadd.s32 1, %s25
      %p31 = scmp.ge.s32.totalorder %s30, 1
      %s32 = scalar_select %p31, 0, %s30
      %s33 = sadd.s32 1, %s24
      %s34 = scalar_select %p31, %s33, %s24
      %p35 = scmp.ge.s32.totalorder %s34, 2
      %s36 = scalar_select %p35, 0, %s34
      %s38 = sadd.s32 %s37, 1
      %p41 = scmp.eq.s32.totalorder %s17, 1
      %p42 = scmp.ne.s32.totalorder %s37, %s39
      %p43 = scmp.eq.s32.totalorder %s17, 0
      %p44 = por %p42, %p43
      %p45 = scmp.ne.s32.totalorder %s37, %s39
      %p46 = scmp.eq.s32.totalorder %s22, 1
      %p47 = por %p45, %p46
      %p48 = scmp.ne.s32.totalorder %s39, %s40
      %p49 = scmp.eq.s32.totalorder %s22, 0
      %p50 = por %p48, %p49
      %p51 = scmp.ne.s32.totalorder %s39, %s40
      %p52 = scmp.eq.s32.totalorder %s23, 1
      %p53 = por %p51, %p52
      %p55 = scmp.ne.s32.totalorder %s40, %s54
      %p56 = scmp.eq.s32.totalorder %s23, 0
      %p57 = por %p55, %p56
      %s59 = sadd.s32 %s58, 1
      %p62 = scmp.eq.s32.totalorder %s17, 1
      %p63 = scmp.ne.s32.totalorder %s58, %s60
      %p64 = scmp.eq.s32.totalorder %s17, 0
      %p65 = por %p63, %p64
      %p66 = scmp.ne.s32.totalorder %s58, %s60
      %p67 = scmp.eq.s32.totalorder %s22, 1
      %p68 = por %p66, %p67
      %p69 = scmp.ne.s32.totalorder %s60, %s61
      %p70 = scmp.eq.s32.totalorder %s22, 0
      %p71 = por %p69, %p70
      %p72 = scmp.ne.s32.totalorder %s60, %s61
      %p73 = scmp.eq.s32.totalorder %s23, 1
      %p74 = por %p72, %p73
      %p76 = scmp.ne.s32.totalorder %s61, %s75
      %p77 = scmp.eq.s32.totalorder %s23, 0
      %p78 = por %p76, %p77
      %s79 = ssub.s32 %s24, %s36
      %s80 = ssub.s32 %s25, %s32
      %s81 = sor.u32 %s79, %s80
      %p82 = scmp.eq.s32.totalorder %s81, 0
      %s84 = sadd.s32 %s83, 1
      %s85 = scalar_select %p82, %s83, %s84
      %p88 = pneg %p82
      %p89 = scmp.eq.s32.totalorder %s17, 1
      %p90 = por %p88, %p89
      %p91 = scmp.ne.s32.totalorder %s83, %s86
      %p92 = scmp.eq.s32.totalorder %s17, 0
      %p93 = por %p91, %p92
      %p94 = scmp.ne.s32.totalorder %s83, %s86
      %p95 = scmp.eq.s32.totalorder %s22, 1
      %p96 = por %p94, %p95
      %p97 = scmp.ne.s32.totalorder %s86, %s87
      %p98 = scmp.eq.s32.totalorder %s22, 0
      %p99 = por %p97, %p98
      %p100 = scmp.ne.s32.totalorder %s86, %s87
      %p101 = scmp.eq.s32.totalorder %s23, 1
      %p102 = por %p100, %p101
      %p104 = scmp.ne.s32.totalorder %s87, %s103
      %p105 = scmp.eq.s32.totalorder %s23, 0
      %p106 = por %p104, %p105
      %s107 = ssub.s32 %s24, %s36
      %s108 = ssub.s32 %s25, %s32
      %s109 = sor.u32 %s107, %s108
      %p110 = scmp.eq.s32.totalorder %s109, 0
      %s112 = sadd.s32 %s111, 1
      %s113 = scalar_select %p110, %s111, %s112
      %p116 = pneg %p110
      %p117 = scmp.eq.s32.totalorder %s17, 1
      %p118 = por %p116, %p117
      %p119 = scmp.ne.s32.totalorder %s111, %s114
      %p120 = scmp.eq.s32.totalorder %s17, 0
      %p121 = por %p119, %p120
      %p122 = scmp.ne.s32.totalorder %s111, %s114
      %p123 = scmp.eq.s32.totalorder %s22, 1
      %p124 = por %p122, %p123
      %p125 = scmp.ne.s32.totalorder %s114, %s115
      %p126 = scmp.eq.s32.totalorder %s22, 0
      %p127 = por %p125, %p126
      %p128 = scmp.ne.s32.totalorder %s114, %s115
      %p129 = scmp.eq.s32.totalorder %s23, 1
      %p130 = por %p128, %p129
      %p132 = scmp.ne.s32.totalorder %s115, %s131
      %p133 = scmp.eq.s32.totalorder %s23, 0
      %p134 = por %p132, %p133
      %p135 = scmp.le.s32.totalorder 1, %s17
      %p136 = scmp.lt.s32.totalorder %s17, 3
      %p137 = pnand %p135, %p136
      %p138 = pneg %p137
      // Predicated region
      $region9: #{tpu_custom_call.1} parent=5 // pred_check
        _
      $region10: #{tpu_custom_call.1} parent=5 // pred_check_branch
        %140 = sbr.rel (%p137) target = $region12
      $region11: #{tpu_custom_call.1} parent=5 // pred_region
        %s141 = ssub.s32 %s17, 1
        // Predicated region
        $region13: #{tpu_custom_call.1} parent=11 // pred_check
          %p142 = pneg %p50
        $region14: #{tpu_custom_call.1} parent=11 // pred_check_branch
          %144 = sbr.rel (%p142) target = $region16
        $region15: #{tpu_custom_call.1} parent=11 // pred_region
          %s146 = ssub.s32 16, 16
          %147 = vsyncadd [#allocation5], %s146
          %150 = dma.hbm_to_smem %s0, 16, [#allocation2], [#allocation5]
        $region16: #{tpu_custom_call.1} parent=11 // pred_fallthru
          _
        // Predicated region
        $region17: #{tpu_custom_call.1} parent=11 // pred_check
          %p151 = pneg %p71
        $region18: #{tpu_custom_call.1} parent=11 // pred_check_branch
          %153 = sbr.rel (%p151) target = $region20
        $region19: #{tpu_custom_call.1} parent=11 // pred_region
          %s155 = ssub.s32 16, 16
          %156 = vsyncadd [#allocation6], %s155
          %s158 = sshll.u32 %s1, 4
          %s159 = int_to_ptr.vmem [resolvable:$true] %s158
          %161 = dma.vmem_to_smem %s159, 16, [#allocation7], [#allocation6]
        $region20: #{tpu_custom_call.1} parent=11 // pred_fallthru
          _
      $region12: #{tpu_custom_call.1} parent=5 // pred_fallthru
        _
      %p162 = scmp.lt.s32.totalorder %s17, 2
      // Predicated region
      $region21: #{tpu_custom_call.1} parent=5 // pred_check
        %p163 = pneg %p162
      $region22: #{tpu_custom_call.1} parent=5 // pred_check_branch
        %165 = sbr.rel (%p163) target = $region24
      $region23: #{tpu_custom_call.1} parent=5 // pred_region
        // Predicated region
        $region25: #{tpu_custom_call.1} parent=23 // pred_check
          %p166 = pneg %p93
        $region26: #{tpu_custom_call.1} parent=23 // pred_check_branch
          %168 = sbr.rel (%p166) target = $region28
        $region27: #{tpu_custom_call.1} parent=23 // pred_region
          %s169 = sand.u32 %s83, 1
          %s170 = scalar_lea.sflag [#allocation3], %s169
          %s171 = sand.u32 %s83, 1
          %s172 = smul.addr %s171, 48
          %s173 = scalar_lea.vmem [#allocation8], %s172
          %s174 = smul.u32 2, %s25
          %s176 = ssub.s32 768, 768
          %177 = vsyncadd %s170, %s176
          %s178 = smul.addr %s24, 6
          %s179 = sadd.s32 %s174, %s178
          %s180 = smul.addr %s179, 128
          %s181 = scalar_lea.hbm %s2, %s180
          %s182 = sshll.u32 %s173, 4
          %s183 = int_to_ptr.vmem [resolvable:$true] %s182
          %188 = dma.hbm_to_vmem [thread:$0]  %s181, 768, %s183, %s170, 128, 128, 8
        $region28: #{tpu_custom_call.1} parent=23 // pred_fallthru
          _
      $region24: #{tpu_custom_call.1} parent=5 // pred_fallthru
        _
      %p189 = scmp.le.s32.totalorder 1, %s17
      %p190 = scmp.lt.s32.totalorder %s17, 3
      %p191 = pnand %p189, %p190
      %p192 = pneg %p191
      // Predicated region
      $region29: #{tpu_custom_call.1} parent=5 // pred_check
        _
      $region30: #{tpu_custom_call.1} parent=5 // pred_check_branch
        %194 = sbr.rel (%p191) target = $region32
      $region31: #{tpu_custom_call.1} parent=5 // pred_region
        %s195 = ssub.s32 %s17, 1
        // Predicated region
        $region33: #{tpu_custom_call.1} parent=31 // pred_check
          %p196 = pneg %p50
        $region34: #{tpu_custom_call.1} parent=31 // pred_check_branch
          %198 = sbr.rel (%p196) target = $region36
        $region35: #{tpu_custom_call.1} parent=31 // pred_region
          %199 = dma.done [#allocation5], 16
        $region36: #{tpu_custom_call.1} parent=31 // pred_fallthru
          _
        // Predicated region
        $region37: #{tpu_custom_call.1} parent=31 // pred_check
          %p200 = pneg %p71
        $region38: #{tpu_custom_call.1} parent=31 // pred_check_branch
          %202 = sbr.rel (%p200) target = $region40
        $region39: #{tpu_custom_call.1} parent=31 // pred_region
          %203 = dma.done [#allocation6], 16
        $region40: #{tpu_custom_call.1} parent=31 // pred_fallthru
          _
        %s204 = sand.u32 %s86, 1
        %s205 = scalar_lea.sflag [#allocation3], %s204
        %s206 = sand.u32 %s86, 1
        %s207 = smul.addr %s206, 48
        %s208 = scalar_lea.vmem [#allocation8], %s207
        // Predicated region
        $region41: #{tpu_custom_call.1} parent=31 // pred_check
          %p209 = pneg %p99
        $region42: #{tpu_custom_call.1} parent=31 // pred_check_branch
          %211 = sbr.rel (%p209) target = $region44
        $region43: #{tpu_custom_call.1} parent=31 // pred_region
          %212 = dma.done %s205, 768
        $region44: #{tpu_custom_call.1} parent=31 // pred_fallthru
          _
        %213 = sfence
        %p214 = pneg %p50
        %p215 = pneg %p47
        %p216 = pneg %p71
        %p217 = pneg %p68
        %s218 = sand.u32 %s86, 1
        %s219 = scalar_lea.sflag [#allocation3], %s218
        %s220 = sand.u32 %s86, 1
        %s221 = smul.addr %s220, 48
        %s222 = scalar_lea.vmem [#allocation8], %s221
        %p223 = pneg %p99
        %p224 = pneg %p96
        %p225 = pneg %p127
        %p226 = pneg %p124
        %s227 = sand.u32 %s114, 1
        %s228 = scalar_lea.sflag [#allocation4], %s227
        %s229 = sand.u32 %s114, 1
        %s230 = smul.addr %s229, 24
        %s231 = scalar_lea.vmem [#allocation9], %s230
        %s232 = smul.u32 2, %s27
        %v233 = vlaneseq
        %v234 = vshrl.u32 %v233, 7
        %v235 = vlaneseq
        %v236 = vand.u32 %v235, 127
        %v237 = vadd.s32 %v234, 8
        %v238 = vmul.u32 %v234, 2
        %vm239 = vcmp.eq.s32.totalorder %v236, %v238
        %v240 = vsel %vm239, 1.0, 0.0
        %v241 = vadd.s32 %v238, 1
        %vm242 = vcmp.eq.s32.totalorder %v236, %v241
        %v243 = vsel %vm242, 1.0, 0.0
        %v244 = vmul.u32 %v236, 2
        %vm245 = vcmp.eq.s32.totalorder %v234, %v244
        %vm246 = vcmp.eq.s32.totalorder %v237, %v244
        %v247 = vsel %vm245, 1.0, 0.0
        %v248 = vsel %vm246, 1.0, 0.0
        %v249 = vadd.s32 %v244, 1
        %vm250 = vcmp.eq.s32.totalorder %v234, %v249
        %vm251 = vcmp.eq.s32.totalorder %v237, %v249
        %v252 = vsel %vm250, 1.0, 0.0
        %v253 = vsel %vm251, 1.0, 0.0
        %v254 = vld [vmem:[%s208] sm:$0xff]
        %v255 = vld [vmem:[%s208 + $0x8] sm:$0xff]
        %v256 = vpack.c.bf16 %v255, %v254
        %v257 = vunpack.c.l.bf16 %v256
        %v258 = vunpack.c.h.bf16 %v256
        %v259 = vsub.f32 %v254, %v257
        %v260 = vsub.f32 %v255, %v258
        %vm261 = vcmask 130048
        %v263 = vsel %vm261, %v240, 0
        %265 = vmatprep.subr.mxu0 0.0
        %266 = vmatpush1.msra.mxu0 0.0
        %267 = vmatprep.subr.mxu0 0.0
        %268 = vmatpush1.msra.mxu0 0.0
        %269 = vmatprep.subr.mxu0 0.0
        %270 = vmatpush1.msra.mxu0 0.0
        %271 = vmatprep.subr.mxu0 0.0
        %272 = vmatpush1.msra.mxu0 0.0
        %273 = vmatprep.subr.mxu0 0.0
        %274 = vmatpush1.msra.mxu0 0.0
        %275 = vmatprep.subr.mxu0 0.0
        %276 = vmatpush1.msra.mxu0 0.0
        %277 = vmatprep.subr.mxu0 0.0
        %278 = vmatpush1.msra.mxu0 0.0
        %279 = vmatprep.subr.mxu0 0.0
        %280 = vmatpush1.msra.mxu0 0.0
        %281 = vmatprep.subr.mxu0 0.0
        %282 = vmatpush1.msra.mxu0 0.0
        %283 = vmatprep.subr.mxu0 0.0
        %284 = vmatpush1.msra.mxu0 0.0
        %285 = vmatprep.subr.mxu0 0.0
        %286 = vmatpush1.msra.mxu0 0.0
        %287 = vmatprep.subr.mxu0 0.0
        %288 = vmatpush1.msra.mxu0 0.0
        %289 = vmatprep.subr.mxu0 0.0
        %290 = vmatpush1.msra.mxu0 0.0
        %291 = vmatprep.subr.mxu0 0.0
        %292 = vmatpush1.msra.mxu0 0.0
        %293 = vmatprep.subr.mxu0 0.0
        %294 = vmatpush1.msra.mxu0 %v258
        %295 = vmatprep.subr.mxu0 0.0
        %296 = vmatpush1.msra.mxu0 %v257
        %297 = vmatprep.subr.mxu0 0.0
        %298 = vmatpush2.msra.mxu0 0.0
        %299 = vmatprep.subr.mxu0 0.0
        %300 = vmatpush2.msra.mxu0 0.0
        %301 = vmatprep.subr.mxu0 0.0
        %302 = vmatpush2.msra.mxu0 0.0
        %303 = vmatprep.subr.mxu0 0.0
        %304 = vmatpush2.msra.mxu0 0.0
        %305 = vmatprep.subr.mxu0 0.0
        %306 = vmatpush2.msra.mxu0 0.0
        %307 = vmatprep.subr.mxu0 0.0
        %308 = vmatpush2.msra.mxu0 0.0
        %309 = vmatprep.subr.mxu0 0.0
        %310 = vmatpush2.msra.mxu0 0.0
        %311 = vmatprep.subr.mxu0 0.0
        %312 = vmatpush2.msra.mxu0 0.0
        %313 = vmatprep.subr.mxu0 0.0
        %314 = vmatpush2.msra.mxu0 0.0
        %315 = vmatprep.subr.mxu0 0.0
        %316 = vmatpush2.msra.mxu0 0.0
        %317 = vmatprep.subr.mxu0 0.0
        %318 = vmatpush2.msra.mxu0 0.0
        %319 = vmatprep.subr.mxu0 0.0
        %320 = vmatpush2.msra.mxu0 0.0
        %321 = vmatprep.subr.mxu0 0.0
        %322 = vmatpush2.msra.mxu0 0.0
        %323 = vmatprep.subr.mxu0 0.0
        %324 = vmatpush2.msra.mxu0 0.0
        %325 = vmatprep.subr.mxu0 0.0
        %326 = vmatpush2.msra.mxu0 0.0
        %327 = vmatprep.subr.mxu0 0.0
        %328 = vmatpush2.msra.mxu0 0.0
        %329 = vmatprep.mubr.f32.mxu0 0.0
        %330 = vmatmul.mubr.f32.gmra.mxu0 %v263
        %v331 = vpop.f32.mrf.mxu0
        %v332 = vadd.f32 0.0, %v331
        %v333 = vpop.f32.mrf.mxu0
        %334 = vdwg.mxu0
        %335 = vmatprep.subr.mxu0 0.0
        %336 = vmatpush1.msra.mxu0 0.0
        %337 = vmatprep.subr.mxu0 0.0
        %338 = vmatpush1.msra.mxu0 0.0
        %339 = vmatprep.subr.mxu0 0.0
        %340 = vmatpush1.msra.mxu0 0.0
        %341 = vmatprep.subr.mxu0 0.0
        %342 = vmatpush1.msra.mxu0 0.0
        %343 = vmatprep.subr.mxu0 0.0
        %344 = vmatpush1.msra.mxu0 0.0
        %345 = vmatprep.subr.mxu0 0.0
        %346 = vmatpush1.msra.mxu0 0.0
        %347 = vmatprep.subr.mxu0 0.0
        %348 = vmatpush1.msra.mxu0 0.0
        %349 = vmatprep.subr.mxu0 0.0
        %350 = vmatpush1.msra.mxu0 0.0
        %351 = vmatprep.subr.mxu0 0.0
        %352 = vmatpush1.msra.mxu0 0.0
        %353 = vmatprep.subr.mxu0 0.0
        %354 = vmatpush1.msra.mxu0 0.0
        %355 = vmatprep.subr.mxu0 0.0
        %356 = vmatpush1.msra.mxu0 0.0
        %357 = vmatprep.subr.mxu0 0.0
        %358 = vmatpush1.msra.mxu0 0.0
        %359 = vmatprep.subr.mxu0 0.0
        %360 = vmatpush1.msra.mxu0 0.0
        %361 = vmatprep.subr.mxu0 0.0
        %362 = vmatpush1.msra.mxu0 0.0
        %363 = vmatprep.subr.mxu0 0.0
        %364 = vmatpush1.msra.mxu0 %v260
        %365 = vmatprep.subr.mxu0 0.0
        %366 = vmatpush1.msra.mxu0 %v259
        %367 = vmatprep.subr.mxu0 0.0
        %368 = vmatpush2.msra.mxu0 0.0
        %369 = vmatprep.subr.mxu0 0.0
        %370 = vmatpush2.msra.mxu0 0.0
        %371 = vmatprep.subr.mxu0 0.0
        %372 = vmatpush2.msra.mxu0 0.0
        %373 = vmatprep.subr.mxu0 0.0
        %374 = vmatpush2.msra.mxu0 0.0
        %375 = vmatprep.subr.mxu0 0.0
        %376 = vmatpush2.msra.mxu0 0.0
        %377 = vmatprep.subr.mxu0 0.0
        %378 = vmatpush2.msra.mxu0 0.0
        %379 = vmatprep.subr.mxu0 0.0
        %380 = vmatpush2.msra.mxu0 0.0
        %381 = vmatprep.subr.mxu0 0.0
        %382 = vmatpush2.msra.mxu0 0.0
        %383 = vmatprep.subr.mxu0 0.0
        %384 = vmatpush2.msra.mxu0 0.0
        %385 = vmatprep.subr.mxu0 0.0
        %386 = vmatpush2.msra.mxu0 0.0
        %387 = vmatprep.subr.mxu0 0.0
        %388 = vmatpush2.msra.mxu0 0.0
        %389 = vmatprep.subr.mxu0 0.0
        %390 = vmatpush2.msra.mxu0 0.0
        %391 = vmatprep.subr.mxu0 0.0
        %392 = vmatpush2.msra.mxu0 0.0
        %393 = vmatprep.subr.mxu0 0.0
        %394 = vmatpush2.msra.mxu0 0.0
        %395 = vmatprep.subr.mxu0 0.0
        %396 = vmatpush2.msra.mxu0 0.0
        %397 = vmatprep.subr.mxu0 0.0
        %398 = vmatpush2.msra.mxu0 0.0
        %399 = vmatprep.mubr.f32.mxu0 0.0
        %400 = vmatmul.mubr.f32.gmra.mxu0 %v263
        %v401 = vpop.f32.mrf.mxu0
        %v402 = vadd.f32 0.0, %v401
        %v403 = vpop.f32.mrf.mxu0
        %404 = vdwg.mxu0
        %v406 = vsel %vm261, %v402, 0
        %408 = vmatprep.subr.mxu0 0.0
        %409 = vmatpush1.msra.mxu0 0.0
        %410 = vmatprep.subr.mxu0 0.0
        %411 = vmatpush1.msra.mxu0 0.0
        %412 = vmatprep.subr.mxu0 0.0
        %413 = vmatpush1.msra.mxu0 0.0
        %414 = vmatprep.subr.mxu0 0.0
        %415 = vmatpush1.msra.mxu0 0.0
        %416 = vmatprep.subr.mxu0 0.0
        %417 = vmatpush1.msra.mxu0 0.0
        %418 = vmatprep.subr.mxu0 0.0
        %419 = vmatpush1.msra.mxu0 0.0
        %420 = vmatprep.subr.mxu0 0.0
        %421 = vmatpush1.msra.mxu0 0.0
        %422 = vmatprep.subr.mxu0 0.0
        %423 = vmatpush1.msra.mxu0 0.0
        %424 = vmatprep.subr.mxu0 0.0
        %425 = vmatpush1.msra.mxu0 0.0
        %426 = vmatprep.subr.mxu0 0.0
        %427 = vmatpush1.msra.mxu0 0.0
        %428 = vmatprep.subr.mxu0 0.0
        %429 = vmatpush1.msra.mxu0 0.0
        %430 = vmatprep.subr.mxu0 0.0
        %431 = vmatpush1.msra.mxu0 0.0
        %432 = vmatprep.subr.mxu0 0.0
        %433 = vmatpush1.msra.mxu0 0.0
        %434 = vmatprep.subr.mxu0 0.0
        %435 = vmatpush1.msra.mxu0 0.0
        %436 = vmatprep.subr.mxu0 0.0
        %437 = vmatpush1.msra.mxu0 %v248
        %438 = vmatprep.subr.mxu0 0.0
        %439 = vmatpush1.msra.mxu0 %v247
        %440 = vmatprep.subr.mxu0 0.0
        %441 = vmatpush2.msra.mxu0 0.0
        %442 = vmatprep.subr.mxu0 0.0
        %443 = vmatpush2.msra.mxu0 0.0
        %444 = vmatprep.subr.mxu0 0.0
        %445 = vmatpush2.msra.mxu0 0.0
        %446 = vmatprep.subr.mxu0 0.0
        %447 = vmatpush2.msra.mxu0 0.0
        %448 = vmatprep.subr.mxu0 0.0
        %449 = vmatpush2.msra.mxu0 0.0
        %450 = vmatprep.subr.mxu0 0.0
        %451 = vmatpush2.msra.mxu0 0.0
        %452 = vmatprep.subr.mxu0 0.0
        %453 = vmatpush2.msra.mxu0 0.0
        %454 = vmatprep.subr.mxu0 0.0
        %455 = vmatpush2.msra.mxu0 0.0
        %456 = vmatprep.subr.mxu0 0.0
        %457 = vmatpush2.msra.mxu0 0.0
        %458 = vmatprep.subr.mxu0 0.0
        %459 = vmatpush2.msra.mxu0 0.0
        %460 = vmatprep.subr.mxu0 0.0
        %461 = vmatpush2.msra.mxu0 0.0
        %462 = vmatprep.subr.mxu0 0.0
        %463 = vmatpush2.msra.mxu0 0.0
        %464 = vmatprep.subr.mxu0 0.0
        %465 = vmatpush2.msra.mxu0 0.0
        %466 = vmatprep.subr.mxu0 0.0
        %467 = vmatpush2.msra.mxu0 0.0
        %468 = vmatprep.subr.mxu0 0.0
        %469 = vmatpush2.msra.mxu0 0.0
        %470 = vmatprep.subr.mxu0 0.0
        %471 = vmatpush2.msra.mxu0 0.0
        %472 = vmatprep.mubr.f32.mxu0 0.0
        %473 = vmatmul.mubr.f32.gmra.mxu0 %v406
        %v474 = vpop.f32.mrf.mxu0
        %v475 = vadd.f32 0.0, %v474
        %v476 = vpop.f32.mrf.mxu0
        %477 = vdwg.mxu0
        %v479 = vsel %vm261, %v332, 0
        %481 = vmatprep.subr.mxu0 0.0
        %482 = vmatpush1.msra.mxu0 0.0
        %483 = vmatprep.subr.mxu0 0.0
        %484 = vmatpush1.msra.mxu0 0.0
        %485 = vmatprep.subr.mxu0 0.0
        %486 = vmatpush1.msra.mxu0 0.0
        %487 = vmatprep.subr.mxu0 0.0
        %488 = vmatpush1.msra.mxu0 0.0
        %489 = vmatprep.subr.mxu0 0.0
        %490 = vmatpush1.msra.mxu0 0.0
        %491 = vmatprep.subr.mxu0 0.0
        %492 = vmatpush1.msra.mxu0 0.0
        %493 = vmatprep.subr.mxu0 0.0
        %494 = vmatpush1.msra.mxu0 0.0
        %495 = vmatprep.subr.mxu0 0.0
        %496 = vmatpush1.msra.mxu0 0.0
        %497 = vmatprep.subr.mxu0 0.0
        %498 = vmatpush1.msra.mxu0 0.0
        %499 = vmatprep.subr.mxu0 0.0
        %500 = vmatpush1.msra.mxu0 0.0
        %501 = vmatprep.subr.mxu0 0.0
        %502 = vmatpush1.msra.mxu0 0.0
        %503 = vmatprep.subr.mxu0 0.0
        %504 = vmatpush1.msra.mxu0 0.0
        %505 = vmatprep.subr.mxu0 0.0
        %506 = vmatpush1.msra.mxu0 0.0
        %507 = vmatprep.subr.mxu0 0.0
        %508 = vmatpush1.msra.mxu0 0.0
        %509 = vmatprep.subr.mxu0 0.0
        %510 = vmatpush1.msra.mxu0 %v248
        %511 = vmatprep.subr.mxu0 0.0
        %512 = vmatpush1.msra.mxu0 %v247
        %513 = vmatprep.subr.mxu0 0.0
        %514 = vmatpush2.msra.mxu0 0.0
        %515 = vmatprep.subr.mxu0 0.0
        %516 = vmatpush2.msra.mxu0 0.0
        %517 = vmatprep.subr.mxu0 0.0
        %518 = vmatpush2.msra.mxu0 0.0
        %519 = vmatprep.subr.mxu0 0.0
        %520 = vmatpush2.msra.mxu0 0.0
        %521 = vmatprep.subr.mxu0 0.0
        %522 = vmatpush2.msra.mxu0 0.0
        %523 = vmatprep.subr.mxu0 0.0
        %524 = vmatpush2.msra.mxu0 0.0
        %525 = vmatprep.subr.mxu0 0.0
        %526 = vmatpush2.msra.mxu0 0.0
        %527 = vmatprep.subr.mxu0 0.0
        %528 = vmatpush2.msra.mxu0 0.0
        %529 = vmatprep.subr.mxu0 0.0
        %530 = vmatpush2.msra.mxu0 0.0
        %531 = vmatprep.subr.mxu0 0.0
        %532 = vmatpush2.msra.mxu0 0.0
        %533 = vmatprep.subr.mxu0 0.0
        %534 = vmatpush2.msra.mxu0 0.0
        %535 = vmatprep.subr.mxu0 0.0
        %536 = vmatpush2.msra.mxu0 0.0
        %537 = vmatprep.subr.mxu0 0.0
        %538 = vmatpush2.msra.mxu0 0.0
        %539 = vmatprep.subr.mxu0 0.0
        %540 = vmatpush2.msra.mxu0 0.0
        %541 = vmatprep.subr.mxu0 0.0
        %542 = vmatpush2.msra.mxu0 0.0
        %543 = vmatprep.subr.mxu0 0.0
        %544 = vmatpush2.msra.mxu0 0.0
        %545 = vmatprep.mubr.f32.mxu0 0.0
        %546 = vmatmul.mubr.f32.gmra.mxu0 %v479
        %v547 = vpop.f32.mrf.mxu0
        %v548 = vadd.f32 %v475, %v547
        %v549 = vpop.f32.mrf.mxu0
        %550 = vdwg.mxu0
        %s551 = sld [smem:[#allocation2]]
        %v552 = vstv %s551
        %v553 = vmul.f32 %v552, %v548
        %v554 = vadd.f32 %v553, 0.0
        %s555 = sld [smem:[#allocation2 + $0xc]]
        %v556 = vstv %s555
        %v557 = vmul.f32 %v556, %v548
        %v558 = vadd.f32 %v557, 0.0
        %s559 = sld [smem:[#allocation2 + $0x18]]
        %v560 = vstv %s559
        %v561 = vmul.f32 %v560, %v548
        %v562 = vadd.f32 %v561, 0.0
        %563 = vmatprep.subr.mxu0 0.0
        %564 = vmatpush1.msra.mxu0 0.0
        %565 = vmatprep.subr.mxu0 0.0
        %566 = vmatpush1.msra.mxu0 0.0
        %567 = vmatprep.subr.mxu0 0.0
        %568 = vmatpush1.msra.mxu0 0.0
        %569 = vmatprep.subr.mxu0 0.0
        %570 = vmatpush1.msra.mxu0 0.0
        %571 = vmatprep.subr.mxu0 0.0
        %572 = vmatpush1.msra.mxu0 0.0
        %573 = vmatprep.subr.mxu0 0.0
        %574 = vmatpush1.msra.mxu0 0.0
        %575 = vmatprep.subr.mxu0 0.0
        %576 = vmatpush1.msra.mxu0 0.0
        %577 = vmatprep.subr.mxu0 0.0
        %578 = vmatpush1.msra.mxu0 0.0
        %579 = vmatprep.subr.mxu0 0.0
        %580 = vmatpush1.msra.mxu0 0.0
        %581 = vmatprep.subr.mxu0 0.0
        %582 = vmatpush1.msra.mxu0 0.0
        %583 = vmatprep.subr.mxu0 0.0
        %584 = vmatpush1.msra.mxu0 0.0
        %585 = vmatprep.subr.mxu0 0.0
        %586 = vmatpush1.msra.mxu0 0.0
        %587 = vmatprep.subr.mxu0 0.0
        %588 = vmatpush1.msra.mxu0 0.0
        %589 = vmatprep.subr.mxu0 0.0
        %590 = vmatpush1.msra.mxu0 0.0
        %591 = vmatprep.subr.mxu0 0.0
        %592 = vmatpush1.msra.mxu0 %v253
        %593 = vmatprep.subr.mxu0 0.0
        %594 = vmatpush1.msra.mxu0 %v252
        %595 = vmatprep.subr.mxu0 0.0
        %596 = vmatpush2.msra.mxu0 0.0
        %597 = vmatprep.subr.mxu0 0.0
        %598 = vmatpush2.msra.mxu0 0.0
        %599 = vmatprep.subr.mxu0 0.0
        %600 = vmatpush2.msra.mxu0 0.0
        %601 = vmatprep.subr.mxu0 0.0
        %602 = vmatpush2.msra.mxu0 0.0
        %603 = vmatprep.subr.mxu0 0.0
        %604 = vmatpush2.msra.mxu0 0.0
        %605 = vmatprep.subr.mxu0 0.0
        %606 = vmatpush2.msra.mxu0 0.0
        %607 = vmatprep.subr.mxu0 0.0
        %608 = vmatpush2.msra.mxu0 0.0
        %609 = vmatprep.subr.mxu0 0.0
        %610 = vmatpush2.msra.mxu0 0.0
        %611 = vmatprep.subr.mxu0 0.0
        %612 = vmatpush2.msra.mxu0 0.0
        %613 = vmatprep.subr.mxu0 0.0
        %614 = vmatpush2.msra.mxu0 0.0
        %615 = vmatprep.subr.mxu0 0.0
        %616 = vmatpush2.msra.mxu0 0.0
        %617 = vmatprep.subr.mxu0 0.0
        %618 = vmatpush2.msra.mxu0 0.0
        %619 = vmatprep.subr.mxu0 0.0
        %620 = vmatpush2.msra.mxu0 0.0
        %621 = vmatprep.subr.mxu0 0.0
        %622 = vmatpush2.msra.mxu0 0.0
        %623 = vmatprep.subr.mxu0 0.0
        %624 = vmatpush2.msra.mxu0 0.0
        %625 = vmatprep.subr.mxu0 0.0
        %626 = vmatpush2.msra.mxu0 0.0
        %627 = vmatprep.mubr.f32.mxu0 0.0
        %628 = vmatmul.mubr.f32.gmra.mxu0 %v406
        %v629 = vpop.f32.mrf.mxu0
        %v630 = vadd.f32 0.0, %v629
        %v631 = vpop.f32.mrf.mxu0
        %632 = vdwg.mxu0
        %633 = vmatprep.subr.mxu0 0.0
        %634 = vmatpush1.msra.mxu0 0.0
        %635 = vmatprep.subr.mxu0 0.0
        %636 = vmatpush1.msra.mxu0 0.0
        %637 = vmatprep.subr.mxu0 0.0
        %638 = vmatpush1.msra.mxu0 0.0
        %639 = vmatprep.subr.mxu0 0.0
        %640 = vmatpush1.msra.mxu0 0.0
        %641 = vmatprep.subr.mxu0 0.0
        %642 = vmatpush1.msra.mxu0 0.0
        %643 = vmatprep.subr.mxu0 0.0
        %644 = vmatpush1.msra.mxu0 0.0
        %645 = vmatprep.subr.mxu0 0.0
        %646 = vmatpush1.msra.mxu0 0.0
        %647 = vmatprep.subr.mxu0 0.0
        %648 = vmatpush1.msra.mxu0 0.0
        %649 = vmatprep.subr.mxu0 0.0
        %650 = vmatpush1.msra.mxu0 0.0
        %651 = vmatprep.subr.mxu0 0.0
        %652 = vmatpush1.msra.mxu0 0.0
        %653 = vmatprep.subr.mxu0 0.0
        %654 = vmatpush1.msra.mxu0 0.0
        %655 = vmatprep.subr.mxu0 0.0
        %656 = vmatpush1.msra.mxu0 0.0
        %657 = vmatprep.subr.mxu0 0.0
        %658 = vmatpush1.msra.mxu0 0.0
        %659 = vmatprep.subr.mxu0 0.0
        %660 = vmatpush1.msra.mxu0 0.0
        %661 = vmatprep.subr.mxu0 0.0
        %662 = vmatpush1.msra.mxu0 %v253
        %663 = vmatprep.subr.mxu0 0.0
        %664 = vmatpush1.msra.mxu0 %v252
        %665 = vmatprep.subr.mxu0 0.0
        %666 = vmatpush2.msra.mxu0 0.0
        %667 = vmatprep.subr.mxu0 0.0
        %668 = vmatpush2.msra.mxu0 0.0
        %669 = vmatprep.subr.mxu0 0.0
        %670 = vmatpush2.msra.mxu0 0.0
        %671 = vmatprep.subr.mxu0 0.0
        %672 = vmatpush2.msra.mxu0 0.0
        %673 = vmatprep.subr.mxu0 0.0
        %674 = vmatpush2.msra.mxu0 0.0
        %675 = vmatprep.subr.mxu0 0.0
        %676 = vmatpush2.msra.mxu0 0.0
        %677 = vmatprep.subr.mxu0 0.0
        %678 = vmatpush2.msra.mxu0 0.0
        %679 = vmatprep.subr.mxu0 0.0
        %680 = vmatpush2.msra.mxu0 0.0
        %681 = vmatprep.subr.mxu0 0.0
        %682 = vmatpush2.msra.mxu0 0.0
        %683 = vmatprep.subr.mxu0 0.0
        %684 = vmatpush2.msra.mxu0 0.0
        %685 = vmatprep.subr.mxu0 0.0
        %686 = vmatpush2.msra.mxu0 0.0
        %687 = vmatprep.subr.mxu0 0.0
        %688 = vmatpush2.msra.mxu0 0.0
        %689 = vmatprep.subr.mxu0 0.0
        %690 = vmatpush2.msra.mxu0 0.0
        %691 = vmatprep.subr.mxu0 0.0
        %692 = vmatpush2.msra.mxu0 0.0
        %693 = vmatprep.subr.mxu0 0.0
        %694 = vmatpush2.msra.mxu0 0.0
        %695 = vmatprep.subr.mxu0 0.0
        %696 = vmatpush2.msra.mxu0 0.0
        %697 = vmatprep.mubr.f32.mxu0 0.0
        %698 = vmatmul.mubr.f32.gmra.mxu0 %v479
        %v699 = vpop.f32.mrf.mxu0
        %v700 = vadd.f32 %v630, %v699
        %v701 = vpop.f32.mrf.mxu0
        %702 = vdwg.mxu0
        %s703 = sld [smem:[#allocation2 + $0x1]]
        %v704 = vstv %s703
        %v705 = vmul.f32 %v704, %v700
        %v706 = vadd.f32 %v554, %v705
        %s707 = sld [smem:[#allocation2 + $0xd]]
        %v708 = vstv %s707
        %v709 = vmul.f32 %v708, %v700
        %v710 = vadd.f32 %v558, %v709
        %s711 = sld [smem:[#allocation2 + $0x19]]
        %v712 = vstv %s711
        %v713 = vmul.f32 %v712, %v700
        %v714 = vadd.f32 %v562, %v713
        %v716 = vsel %vm261, %v243, 0
        %718 = vmatprep.subr.mxu0 0.0
        %719 = vmatpush1.msra.mxu0 0.0
        %720 = vmatprep.subr.mxu0 0.0
        %721 = vmatpush1.msra.mxu0 0.0
        %722 = vmatprep.subr.mxu0 0.0
        %723 = vmatpush1.msra.mxu0 0.0
        %724 = vmatprep.subr.mxu0 0.0
        %725 = vmatpush1.msra.mxu0 0.0
        %726 = vmatprep.subr.mxu0 0.0
        %727 = vmatpush1.msra.mxu0 0.0
        %728 = vmatprep.subr.mxu0 0.0
        %729 = vmatpush1.msra.mxu0 0.0
        %730 = vmatprep.subr.mxu0 0.0
        %731 = vmatpush1.msra.mxu0 0.0
        %732 = vmatprep.subr.mxu0 0.0
        %733 = vmatpush1.msra.mxu0 0.0
        %734 = vmatprep.subr.mxu0 0.0
        %735 = vmatpush1.msra.mxu0 0.0
        %736 = vmatprep.subr.mxu0 0.0
        %737 = vmatpush1.msra.mxu0 0.0
        %738 = vmatprep.subr.mxu0 0.0
        %739 = vmatpush1.msra.mxu0 0.0
        %740 = vmatprep.subr.mxu0 0.0
        %741 = vmatpush1.msra.mxu0 0.0
        %742 = vmatprep.subr.mxu0 0.0
        %743 = vmatpush1.msra.mxu0 0.0
        %744 = vmatprep.subr.mxu0 0.0
        %745 = vmatpush1.msra.mxu0 0.0
        %746 = vmatprep.subr.mxu0 0.0
        %747 = vmatpush1.msra.mxu0 %v258
        %748 = vmatprep.subr.mxu0 0.0
        %749 = vmatpush1.msra.mxu0 %v257
        %750 = vmatprep.subr.mxu0 0.0
        %751 = vmatpush2.msra.mxu0 0.0
        %752 = vmatprep.subr.mxu0 0.0
        %753 = vmatpush2.msra.mxu0 0.0
        %754 = vmatprep.subr.mxu0 0.0
        %755 = vmatpush2.msra.mxu0 0.0
        %756 = vmatprep.subr.mxu0 0.0
        %757 = vmatpush2.msra.mxu0 0.0
        %758 = vmatprep.subr.mxu0 0.0
        %759 = vmatpush2.msra.mxu0 0.0
        %760 = vmatprep.subr.mxu0 0.0
        %761 = vmatpush2.msra.mxu0 0.0
        %762 = vmatprep.subr.mxu0 0.0
        %763 = vmatpush2.msra.mxu0 0.0
        %764 = vmatprep.subr.mxu0 0.0
        %765 = vmatpush2.msra.mxu0 0.0
        %766 = vmatprep.subr.mxu0 0.0
        %767 = vmatpush2.msra.mxu0 0.0
        %768 = vmatprep.subr.mxu0 0.0
        %769 = vmatpush2.msra.mxu0 0.0
        %770 = vmatprep.subr.mxu0 0.0
        %771 = vmatpush2.msra.mxu0 0.0
        %772 = vmatprep.subr.mxu0 0.0
        %773 = vmatpush2.msra.mxu0 0.0
        %774 = vmatprep.subr.mxu0 0.0
        %775 = vmatpush2.msra.mxu0 0.0
        %776 = vmatprep.subr.mxu0 0.0
        %777 = vmatpush2.msra.mxu0 0.0
        %778 = vmatprep.subr.mxu0 0.0
        %779 = vmatpush2.msra.mxu0 0.0
        %780 = vmatprep.subr.mxu0 0.0
        %781 = vmatpush2.msra.mxu0 0.0
        %782 = vmatprep.mubr.f32.mxu0 0.0
        %783 = vmatmul.mubr.f32.gmra.mxu0 %v716
        %v784 = vpop.f32.mrf.mxu0
        %v785 = vadd.f32 0.0, %v784
        %v786 = vpop.f32.mrf.mxu0
        %787 = vdwg.mxu0
        %788 = vmatprep.subr.mxu0 0.0
        %789 = vmatpush1.msra.mxu0 0.0
        %790 = vmatprep.subr.mxu0 0.0
        %791 = vmatpush1.msra.mxu0 0.0
        %792 = vmatprep.subr.mxu0 0.0
        %793 = vmatpush1.msra.mxu0 0.0
        %794 = vmatprep.subr.mxu0 0.0
        %795 = vmatpush1.msra.mxu0 0.0
        %796 = vmatprep.subr.mxu0 0.0
        %797 = vmatpush1.msra.mxu0 0.0
        %798 = vmatprep.subr.mxu0 0.0
        %799 = vmatpush1.msra.mxu0 0.0
        %800 = vmatprep.subr.mxu0 0.0
        %801 = vmatpush1.msra.mxu0 0.0
        %802 = vmatprep.subr.mxu0 0.0
        %803 = vmatpush1.msra.mxu0 0.0
        %804 = vmatprep.subr.mxu0 0.0
        %805 = vmatpush1.msra.mxu0 0.0
        %806 = vmatprep.subr.mxu0 0.0
        %807 = vmatpush1.msra.mxu0 0.0
        %808 = vmatprep.subr.mxu0 0.0
        %809 = vmatpush1.msra.mxu0 0.0
        %810 = vmatprep.subr.mxu0 0.0
        %811 = vmatpush1.msra.mxu0 0.0
        %812 = vmatprep.subr.mxu0 0.0
        %813 = vmatpush1.msra.mxu0 0.0
        %814 = vmatprep.subr.mxu0 0.0
        %815 = vmatpush1.msra.mxu0 0.0
        %816 = vmatprep.subr.mxu0 0.0
        %817 = vmatpush1.msra.mxu0 %v260
        %818 = vmatprep.subr.mxu0 0.0
        %819 = vmatpush1.msra.mxu0 %v259
        %820 = vmatprep.subr.mxu0 0.0
        %821 = vmatpush2.msra.mxu0 0.0
        %822 = vmatprep.subr.mxu0 0.0
        %823 = vmatpush2.msra.mxu0 0.0
        %824 = vmatprep.subr.mxu0 0.0
        %825 = vmatpush2.msra.mxu0 0.0
        %826 = vmatprep.subr.mxu0 0.0
        %827 = vmatpush2.msra.mxu0 0.0
        %828 = vmatprep.subr.mxu0 0.0
        %829 = vmatpush2.msra.mxu0 0.0
        %830 = vmatprep.subr.mxu0 0.0
        %831 = vmatpush2.msra.mxu0 0.0
        %832 = vmatprep.subr.mxu0 0.0
        %833 = vmatpush2.msra.mxu0 0.0
        %834 = vmatprep.subr.mxu0 0.0
        %835 = vmatpush2.msra.mxu0 0.0
        %836 = vmatprep.subr.mxu0 0.0
        %837 = vmatpush2.msra.mxu0 0.0
        %838 = vmatprep.subr.mxu0 0.0
        %839 = vmatpush2.msra.mxu0 0.0
        %840 = vmatprep.subr.mxu0 0.0
        %841 = vmatpush2.msra.mxu0 0.0
        %842 = vmatprep.subr.mxu0 0.0
        %843 = vmatpush2.msra.mxu0 0.0
        %844 = vmatprep.subr.mxu0 0.0
        %845 = vmatpush2.msra.mxu0 0.0
        %846 = vmatprep.subr.mxu0 0.0
        %847 = vmatpush2.msra.mxu0 0.0
        %848 = vmatprep.subr.mxu0 0.0
        %849 = vmatpush2.msra.mxu0 0.0
        %850 = vmatprep.subr.mxu0 0.0
        %851 = vmatpush2.msra.mxu0 0.0
        %852 = vmatprep.mubr.f32.mxu0 0.0
        %853 = vmatmul.mubr.f32.gmra.mxu0 %v716
        %v854 = vpop.f32.mrf.mxu0
        %v855 = vadd.f32 0.0, %v854
        %v856 = vpop.f32.mrf.mxu0
        %857 = vdwg.mxu0
        %v859 = vsel %vm261, %v855, 0
        %861 = vmatprep.subr.mxu0 0.0
        %862 = vmatpush1.msra.mxu0 0.0
        %863 = vmatprep.subr.mxu0 0.0
        %864 = vmatpush1.msra.mxu0 0.0
        %865 = vmatprep.subr.mxu0 0.0
        %866 = vmatpush1.msra.mxu0 0.0
        %867 = vmatprep.subr.mxu0 0.0
        %868 = vmatpush1.msra.mxu0 0.0
        %869 = vmatprep.subr.mxu0 0.0
        %870 = vmatpush1.msra.mxu0 0.0
        %871 = vmatprep.subr.mxu0 0.0
        %872 = vmatpush1.msra.mxu0 0.0
        %873 = vmatprep.subr.mxu0 0.0
        %874 = vmatpush1.msra.mxu0 0.0
        %875 = vmatprep.subr.mxu0 0.0
        %876 = vmatpush1.msra.mxu0 0.0
        %877 = vmatprep.subr.mxu0 0.0
        %878 = vmatpush1.msra.mxu0 0.0
        %879 = vmatprep.subr.mxu0 0.0
        %880 = vmatpush1.msra.mxu0 0.0
        %881 = vmatprep.subr.mxu0 0.0
        %882 = vmatpush1.msra.mxu0 0.0
        %883 = vmatprep.subr.mxu0 0.0
        %884 = vmatpush1.msra.mxu0 0.0
        %885 = vmatprep.subr.mxu0 0.0
        %886 = vmatpush1.msra.mxu0 0.0
        %887 = vmatprep.subr.mxu0 0.0
        %888 = vmatpush1.msra.mxu0 0.0
        %889 = vmatprep.subr.mxu0 0.0
        %890 = vmatpush1.msra.mxu0 %v248
        %891 = vmatprep.subr.mxu0 0.0
        %892 = vmatpush1.msra.mxu0 %v247
        %893 = vmatprep.subr.mxu0 0.0
        %894 = vmatpush2.msra.mxu0 0.0
        %895 = vmatprep.subr.mxu0 0.0
        %896 = vmatpush2.msra.mxu0 0.0
        %897 = vmatprep.subr.mxu0 0.0
        %898 = vmatpush2.msra.mxu0 0.0
        %899 = vmatprep.subr.mxu0 0.0
        %900 = vmatpush2.msra.mxu0 0.0
        %901 = vmatprep.subr.mxu0 0.0
        %902 = vmatpush2.msra.mxu0 0.0
        %903 = vmatprep.subr.mxu0 0.0
        %904 = vmatpush2.msra.mxu0 0.0
        %905 = vmatprep.subr.mxu0 0.0
        %906 = vmatpush2.msra.mxu0 0.0
        %907 = vmatprep.subr.mxu0 0.0
        %908 = vmatpush2.msra.mxu0 0.0
        %909 = vmatprep.subr.mxu0 0.0
        %910 = vmatpush2.msra.mxu0 0.0
        %911 = vmatprep.subr.mxu0 0.0
        %912 = vmatpush2.msra.mxu0 0.0
        %913 = vmatprep.subr.mxu0 0.0
        %914 = vmatpush2.msra.mxu0 0.0
        %915 = vmatprep.subr.mxu0 0.0
        %916 = vmatpush2.msra.mxu0 0.0
        %917 = vmatprep.subr.mxu0 0.0
        %918 = vmatpush2.msra.mxu0 0.0
        %919 = vmatprep.subr.mxu0 0.0
        %920 = vmatpush2.msra.mxu0 0.0
        %921 = vmatprep.subr.mxu0 0.0
        %922 = vmatpush2.msra.mxu0 0.0
        %923 = vmatprep.subr.mxu0 0.0
        %924 = vmatpush2.msra.mxu0 0.0
        %925 = vmatprep.mubr.f32.mxu0 0.0
        %926 = vmatmul.mubr.f32.gmra.mxu0 %v859
        %v927 = vpop.f32.mrf.mxu0
        %v928 = vadd.f32 0.0, %v927
        %v929 = vpop.f32.mrf.mxu0
        %930 = vdwg.mxu0
        %v932 = vsel %vm261, %v785, 0
        %934 = vmatprep.subr.mxu0 0.0
        %935 = vmatpush1.msra.mxu0 0.0
        %936 = vmatprep.subr.mxu0 0.0
        %937 = vmatpush1.msra.mxu0 0.0
        %938 = vmatprep.subr.mxu0 0.0
        %939 = vmatpush1.msra.mxu0 0.0
        %940 = vmatprep.subr.mxu0 0.0
        %941 = vmatpush1.msra.mxu0 0.0
        %942 = vmatprep.subr.mxu0 0.0
        %943 = vmatpush1.msra.mxu0 0.0
        %944 = vmatprep.subr.mxu0 0.0
        %945 = vmatpush1.msra.mxu0 0.0
        %946 = vmatprep.subr.mxu0 0.0
        %947 = vmatpush1.msra.mxu0 0.0
        %948 = vmatprep.subr.mxu0 0.0
        %949 = vmatpush1.msra.mxu0 0.0
        %950 = vmatprep.subr.mxu0 0.0
        %951 = vmatpush1.msra.mxu0 0.0
        %952 = vmatprep.subr.mxu0 0.0
        %953 = vmatpush1.msra.mxu0 0.0
        %954 = vmatprep.subr.mxu0 0.0
        %955 = vmatpush1.msra.mxu0 0.0
        %956 = vmatprep.subr.mxu0 0.0
        %957 = vmatpush1.msra.mxu0 0.0
        %958 = vmatprep.subr.mxu0 0.0
        %959 = vmatpush1.msra.mxu0 0.0
        %960 = vmatprep.subr.mxu0 0.0
        %961 = vmatpush1.msra.mxu0 0.0
        %962 = vmatprep.subr.mxu0 0.0
        %963 = vmatpush1.msra.mxu0 %v248
        %964 = vmatprep.subr.mxu0 0.0
        %965 = vmatpush1.msra.mxu0 %v247
        %966 = vmatprep.subr.mxu0 0.0
        %967 = vmatpush2.msra.mxu0 0.0
        %968 = vmatprep.subr.mxu0 0.0
        %969 = vmatpush2.msra.mxu0 0.0
        %970 = vmatprep.subr.mxu0 0.0
        %971 = vmatpush2.msra.mxu0 0.0
        %972 = vmatprep.subr.mxu0 0.0
        %973 = vmatpush2.msra.mxu0 0.0
        %974 = vmatprep.subr.mxu0 0.0
        %975 = vmatpush2.msra.mxu0 0.0
        %976 = vmatprep.subr.mxu0 0.0
        %977 = vmatpush2.msra.mxu0 0.0
        %978 = vmatprep.subr.mxu0 0.0
        %979 = vmatpush2.msra.mxu0 0.0
        %980 = vmatprep.subr.mxu0 0.0
        %981 = vmatpush2.msra.mxu0 0.0
        %982 = vmatprep.subr.mxu0 0.0
        %983 = vmatpush2.msra.mxu0 0.0
        %984 = vmatprep.subr.mxu0 0.0
        %985 = vmatpush2.msra.mxu0 0.0
        %986 = vmatprep.subr.mxu0 0.0
        %987 = vmatpush2.msra.mxu0 0.0
        %988 = vmatprep.subr.mxu0 0.0
        %989 = vmatpush2.msra.mxu0 0.0
        %990 = vmatprep.subr.mxu0 0.0
        %991 = vmatpush2.msra.mxu0 0.0
        %992 = vmatprep.subr.mxu0 0.0
        %993 = vmatpush2.msra.mxu0 0.0
        %994 = vmatprep.subr.mxu0 0.0
        %995 = vmatpush2.msra.mxu0 0.0
        %996 = vmatprep.subr.mxu0 0.0
        %997 = vmatpush2.msra.mxu0 0.0
        %998 = vmatprep.mubr.f32.mxu0 0.0
        %999 = vmatmul.mubr.f32.gmra.mxu0 %v932
        %v1000 = vpop.f32.mrf.mxu0
        %v1001 = vadd.f32 %v928, %v1000
        %v1002 = vpop.f32.mrf.mxu0
        %1003 = vdwg.mxu0
        %s1004 = sld [smem:[#allocation2 + $0x2]]
        %v1005 = vstv %s1004
        %v1006 = vmul.f32 %v1005, %v1001
        %v1007 = vadd.f32 %v706, %v1006
        %s1008 = sld [smem:[#allocation2 + $0xe]]
        %v1009 = vstv %s1008
        %v1010 = vmul.f32 %v1009, %v1001
        %v1011 = vadd.f32 %v710, %v1010
        %s1012 = sld [smem:[#allocation2 + $0x1a]]
        %v1013 = vstv %s1012
        %v1014 = vmul.f32 %v1013, %v1001
        %v1015 = vadd.f32 %v714, %v1014
        %1016 = vmatprep.subr.mxu0 0.0
        %1017 = vmatpush1.msra.mxu0 0.0
        %1018 = vmatprep.subr.mxu0 0.0
        %1019 = vmatpush1.msra.mxu0 0.0
        %1020 = vmatprep.subr.mxu0 0.0
        %1021 = vmatpush1.msra.mxu0 0.0
        %1022 = vmatprep.subr.mxu0 0.0
        %1023 = vmatpush1.msra.mxu0 0.0
        %1024 = vmatprep.subr.mxu0 0.0
        %1025 = vmatpush1.msra.mxu0 0.0
        %1026 = vmatprep.subr.mxu0 0.0
        %1027 = vmatpush1.msra.mxu0 0.0
        %1028 = vmatprep.subr.mxu0 0.0
        %1029 = vmatpush1.msra.mxu0 0.0
        %1030 = vmatprep.subr.mxu0 0.0
        %1031 = vmatpush1.msra.mxu0 0.0
        %1032 = vmatprep.subr.mxu0 0.0
        %1033 = vmatpush1.msra.mxu0 0.0
        %1034 = vmatprep.subr.mxu0 0.0
        %1035 = vmatpush1.msra.mxu0 0.0
        %1036 = vmatprep.subr.mxu0 0.0
        %1037 = vmatpush1.msra.mxu0 0.0
        %1038 = vmatprep.subr.mxu0 0.0
        %1039 = vmatpush1.msra.mxu0 0.0
        %1040 = vmatprep.subr.mxu0 0.0
        %1041 = vmatpush1.msra.mxu0 0.0
        %1042 = vmatprep.subr.mxu0 0.0
        %1043 = vmatpush1.msra.mxu0 0.0
        %1044 = vmatprep.subr.mxu0 0.0
        %1045 = vmatpush1.msra.mxu0 %v253
        %1046 = vmatprep.subr.mxu0 0.0
        %1047 = vmatpush1.msra.mxu0 %v252
        %1048 = vmatprep.subr.mxu0 0.0
        %1049 = vmatpush2.msra.mxu0 0.0
        %1050 = vmatprep.subr.mxu0 0.0
        %1051 = vmatpush2.msra.mxu0 0.0
        %1052 = vmatprep.subr.mxu0 0.0
        %1053 = vmatpush2.msra.mxu0 0.0
        %1054 = vmatprep.subr.mxu0 0.0
        %1055 = vmatpush2.msra.mxu0 0.0
        %1056 = vmatprep.subr.mxu0 0.0
        %1057 = vmatpush2.msra.mxu0 0.0
        %1058 = vmatprep.subr.mxu0 0.0
        %1059 = vmatpush2.msra.mxu0 0.0
        %1060 = vmatprep.subr.mxu0 0.0
        %1061 = vmatpush2.msra.mxu0 0.0
        %1062 = vmatprep.subr.mxu0 0.0
        %1063 = vmatpush2.msra.mxu0 0.0
        %1064 = vmatprep.subr.mxu0 0.0
        %1065 = vmatpush2.msra.mxu0 0.0
        %1066 = vmatprep.subr.mxu0 0.0
        %1067 = vmatpush2.msra.mxu0 0.0
        %1068 = vmatprep.subr.mxu0 0.0
        %1069 = vmatpush2.msra.mxu0 0.0
        %1070 = vmatprep.subr.mxu0 0.0
        %1071 = vmatpush2.msra.mxu0 0.0
        %1072 = vmatprep.subr.mxu0 0.0
        %1073 = vmatpush2.msra.mxu0 0.0
        %1074 = vmatprep.subr.mxu0 0.0
        %1075 = vmatpush2.msra.mxu0 0.0
        %1076 = vmatprep.subr.mxu0 0.0
        %1077 = vmatpush2.msra.mxu0 0.0
        %1078 = vmatprep.subr.mxu0 0.0
        %1079 = vmatpush2.msra.mxu0 0.0
        %1080 = vmatprep.mubr.f32.mxu0 0.0
        %1081 = vmatmul.mubr.f32.gmra.mxu0 %v859
        %v1082 = vpop.f32.mrf.mxu0
        %v1083 = vadd.f32 0.0, %v1082
        %v1084 = vpop.f32.mrf.mxu0
        %1085 = vdwg.mxu0
        %1086 = vmatprep.subr.mxu0 0.0
        %1087 = vmatpush1.msra.mxu0 0.0
        %1088 = vmatprep.subr.mxu0 0.0
        %1089 = vmatpush1.msra.mxu0 0.0
        %1090 = vmatprep.subr.mxu0 0.0
        %1091 = vmatpush1.msra.mxu0 0.0
        %1092 = vmatprep.subr.mxu0 0.0
        %1093 = vmatpush1.msra.mxu0 0.0
        %1094 = vmatprep.subr.mxu0 0.0
        %1095 = vmatpush1.msra.mxu0 0.0
        %1096 = vmatprep.subr.mxu0 0.0
        %1097 = vmatpush1.msra.mxu0 0.0
        %1098 = vmatprep.subr.mxu0 0.0
        %1099 = vmatpush1.msra.mxu0 0.0
        %1100 = vmatprep.subr.mxu0 0.0
        %1101 = vmatpush1.msra.mxu0 0.0
        %1102 = vmatprep.subr.mxu0 0.0
        %1103 = vmatpush1.msra.mxu0 0.0
        %1104 = vmatprep.subr.mxu0 0.0
        %1105 = vmatpush1.msra.mxu0 0.0
        %1106 = vmatprep.subr.mxu0 0.0
        %1107 = vmatpush1.msra.mxu0 0.0
        %1108 = vmatprep.subr.mxu0 0.0
        %1109 = vmatpush1.msra.mxu0 0.0
        %1110 = vmatprep.subr.mxu0 0.0
        %1111 = vmatpush1.msra.mxu0 0.0
        %1112 = vmatprep.subr.mxu0 0.0
        %1113 = vmatpush1.msra.mxu0 0.0
        %1114 = vmatprep.subr.mxu0 0.0
        %1115 = vmatpush1.msra.mxu0 %v253
        %1116 = vmatprep.subr.mxu0 0.0
        %1117 = vmatpush1.msra.mxu0 %v252
        %1118 = vmatprep.subr.mxu0 0.0
        %1119 = vmatpush2.msra.mxu0 0.0
        %1120 = vmatprep.subr.mxu0 0.0
        %1121 = vmatpush2.msra.mxu0 0.0
        %1122 = vmatprep.subr.mxu0 0.0
        %1123 = vmatpush2.msra.mxu0 0.0
        %1124 = vmatprep.subr.mxu0 0.0
        %1125 = vmatpush2.msra.mxu0 0.0
        %1126 = vmatprep.subr.mxu0 0.0
        %1127 = vmatpush2.msra.mxu0 0.0
        %1128 = vmatprep.subr.mxu0 0.0
        %1129 = vmatpush2.msra.mxu0 0.0
        %1130 = vmatprep.subr.mxu0 0.0
        %1131 = vmatpush2.msra.mxu0 0.0
        %1132 = vmatprep.subr.mxu0 0.0
        %1133 = vmatpush2.msra.mxu0 0.0
        %1134 = vmatprep.subr.mxu0 0.0
        %1135 = vmatpush2.msra.mxu0 0.0
        %1136 = vmatprep.subr.mxu0 0.0
        %1137 = vmatpush2.msra.mxu0 0.0
        %1138 = vmatprep.subr.mxu0 0.0
        %1139 = vmatpush2.msra.mxu0 0.0
        %1140 = vmatprep.subr.mxu0 0.0
        %1141 = vmatpush2.msra.mxu0 0.0
        %1142 = vmatprep.subr.mxu0 0.0
        %1143 = vmatpush2.msra.mxu0 0.0
        %1144 = vmatprep.subr.mxu0 0.0
        %1145 = vmatpush2.msra.mxu0 0.0
        %1146 = vmatprep.subr.mxu0 0.0
        %1147 = vmatpush2.msra.mxu0 0.0
        %1148 = vmatprep.subr.mxu0 0.0
        %1149 = vmatpush2.msra.mxu0 0.0
        %1150 = vmatprep.mubr.f32.mxu0 0.0
        %1151 = vmatmul.mubr.f32.gmra.mxu0 %v932
        %v1152 = vpop.f32.mrf.mxu0
        %v1153 = vadd.f32 %v1083, %v1152
        %v1154 = vpop.f32.mrf.mxu0
        %1155 = vdwg.mxu0
        %s1156 = sld [smem:[#allocation2 + $0x3]]
        %v1157 = vstv %s1156
        %v1158 = vmul.f32 %v1157, %v1153
        %v1159 = vadd.f32 %v1007, %v1158
        %s1160 = sld [smem:[#allocation2 + $0xf]]
        %v1161 = vstv %s1160
        %v1162 = vmul.f32 %v1161, %v1153
        %v1163 = vadd.f32 %v1011, %v1162
        %s1164 = sld [smem:[#allocation2 + $0x1b]]
        %v1165 = vstv %s1164
        %v1166 = vmul.f32 %v1165, %v1153
        %v1167 = vadd.f32 %v1015, %v1166
        %s1168 = scalar_lea.vmem %s208, 16 [#allocation8]
        %v1169 = vld [vmem:[%s1168] sm:$0xff]
        %v1170 = vld [vmem:[%s1168 + $0x8] sm:$0xff]
        %v1171 = vpack.c.bf16 %v1170, %v1169
        %v1172 = vunpack.c.l.bf16 %v1171
        %v1173 = vunpack.c.h.bf16 %v1171
        %v1174 = vsub.f32 %v1169, %v1172
        %v1175 = vsub.f32 %v1170, %v1173
        %1176 = vmatprep.subr.mxu0 0.0
        %1177 = vmatpush1.msra.mxu0 0.0
        %1178 = vmatprep.subr.mxu0 0.0
        %1179 = vmatpush1.msra.mxu0 0.0
        %1180 = vmatprep.subr.mxu0 0.0
        %1181 = vmatpush1.msra.mxu0 0.0
        %1182 = vmatprep.subr.mxu0 0.0
        %1183 = vmatpush1.msra.mxu0 0.0
        %1184 = vmatprep.subr.mxu0 0.0
        %1185 = vmatpush1.msra.mxu0 0.0
        %1186 = vmatprep.subr.mxu0 0.0
        %1187 = vmatpush1.msra.mxu0 0.0
        %1188 = vmatprep.subr.mxu0 0.0
        %1189 = vmatpush1.msra.mxu0 0.0
        %1190 = vmatprep.subr.mxu0 0.0
        %1191 = vmatpush1.msra.mxu0 0.0
        %1192 = vmatprep.subr.mxu0 0.0
        %1193 = vmatpush1.msra.mxu0 0.0
        %1194 = vmatprep.subr.mxu0 0.0
        %1195 = vmatpush1.msra.mxu0 0.0
        %1196 = vmatprep.subr.mxu0 0.0
        %1197 = vmatpush1.msra.mxu0 0.0
        %1198 = vmatprep.subr.mxu0 0.0
        %1199 = vmatpush1.msra.mxu0 0.0
        %1200 = vmatprep.subr.mxu0 0.0
        %1201 = vmatpush1.msra.mxu0 0.0
        %1202 = vmatprep.subr.mxu0 0.0
        %1203 = vmatpush1.msra.mxu0 0.0
        %1204 = vmatprep.subr.mxu0 0.0
        %1205 = vmatpush1.msra.mxu0 %v1173
        %1206 = vmatprep.subr.mxu0 0.0
        %1207 = vmatpush1.msra.mxu0 %v1172
        %1208 = vmatprep.subr.mxu0 0.0
        %1209 = vmatpush2.msra.mxu0 0.0
        %1210 = vmatprep.subr.mxu0 0.0
        %1211 = vmatpush2.msra.mxu0 0.0
        %1212 = vmatprep.subr.mxu0 0.0
        %1213 = vmatpush2.msra.mxu0 0.0
        %1214 = vmatprep.subr.mxu0 0.0
        %1215 = vmatpush2.msra.mxu0 0.0
        %1216 = vmatprep.subr.mxu0 0.0
        %1217 = vmatpush2.msra.mxu0 0.0
        %1218 = vmatprep.subr.mxu0 0.0
        %1219 = vmatpush2.msra.mxu0 0.0
        %1220 = vmatprep.subr.mxu0 0.0
        %1221 = vmatpush2.msra.mxu0 0.0
        %1222 = vmatprep.subr.mxu0 0.0
        %1223 = vmatpush2.msra.mxu0 0.0
        %1224 = vmatprep.subr.mxu0 0.0
        %1225 = vmatpush2.msra.mxu0 0.0
        %1226 = vmatprep.subr.mxu0 0.0
        %1227 = vmatpush2.msra.mxu0 0.0
        %1228 = vmatprep.subr.mxu0 0.0
        %1229 = vmatpush2.msra.mxu0 0.0
        %1230 = vmatprep.subr.mxu0 0.0
        %1231 = vmatpush2.msra.mxu0 0.0
        %1232 = vmatprep.subr.mxu0 0.0
        %1233 = vmatpush2.msra.mxu0 0.0
        %1234 = vmatprep.subr.mxu0 0.0
        %1235 = vmatpush2.msra.mxu0 0.0
        %1236 = vmatprep.subr.mxu0 0.0
        %1237 = vmatpush2.msra.mxu0 0.0
        %1238 = vmatprep.subr.mxu0 0.0
        %1239 = vmatpush2.msra.mxu0 0.0
        %1240 = vmatprep.mubr.f32.mxu0 0.0
        %1241 = vmatmul.mubr.f32.gmra.mxu0 %v263
        %v1242 = vpop.f32.mrf.mxu0
        %v1243 = vadd.f32 0.0, %v1242
        %v1244 = vpop.f32.mrf.mxu0
        %1245 = vdwg.mxu0
        %1246 = vmatprep.subr.mxu0 0.0
        %1247 = vmatpush1.msra.mxu0 0.0
        %1248 = vmatprep.subr.mxu0 0.0
        %1249 = vmatpush1.msra.mxu0 0.0
        %1250 = vmatprep.subr.mxu0 0.0
        %1251 = vmatpush1.msra.mxu0 0.0
        %1252 = vmatprep.subr.mxu0 0.0
        %1253 = vmatpush1.msra.mxu0 0.0
        %1254 = vmatprep.subr.mxu0 0.0
        %1255 = vmatpush1.msra.mxu0 0.0
        %1256 = vmatprep.subr.mxu0 0.0
        %1257 = vmatpush1.msra.mxu0 0.0
        %1258 = vmatprep.subr.mxu0 0.0
        %1259 = vmatpush1.msra.mxu0 0.0
        %1260 = vmatprep.subr.mxu0 0.0
        %1261 = vmatpush1.msra.mxu0 0.0
        %1262 = vmatprep.subr.mxu0 0.0
        %1263 = vmatpush1.msra.mxu0 0.0
        %1264 = vmatprep.subr.mxu0 0.0
        %1265 = vmatpush1.msra.mxu0 0.0
        %1266 = vmatprep.subr.mxu0 0.0
        %1267 = vmatpush1.msra.mxu0 0.0
        %1268 = vmatprep.subr.mxu0 0.0
        %1269 = vmatpush1.msra.mxu0 0.0
        %1270 = vmatprep.subr.mxu0 0.0
        %1271 = vmatpush1.msra.mxu0 0.0
        %1272 = vmatprep.subr.mxu0 0.0
        %1273 = vmatpush1.msra.mxu0 0.0
        %1274 = vmatprep.subr.mxu0 0.0
        %1275 = vmatpush1.msra.mxu0 %v1175
        %1276 = vmatprep.subr.mxu0 0.0
        %1277 = vmatpush1.msra.mxu0 %v1174
        %1278 = vmatprep.subr.mxu0 0.0
        %1279 = vmatpush2.msra.mxu0 0.0
        %1280 = vmatprep.subr.mxu0 0.0
        %1281 = vmatpush2.msra.mxu0 0.0
        %1282 = vmatprep.subr.mxu0 0.0
        %1283 = vmatpush2.msra.mxu0 0.0
        %1284 = vmatprep.subr.mxu0 0.0
        %1285 = vmatpush2.msra.mxu0 0.0
        %1286 = vmatprep.subr.mxu0 0.0
        %1287 = vmatpush2.msra.mxu0 0.0
        %1288 = vmatprep.subr.mxu0 0.0
        %1289 = vmatpush2.msra.mxu0 0.0
        %1290 = vmatprep.subr.mxu0 0.0
        %1291 = vmatpush2.msra.mxu0 0.0
        %1292 = vmatprep.subr.mxu0 0.0
        %1293 = vmatpush2.msra.mxu0 0.0
        %1294 = vmatprep.subr.mxu0 0.0
        %1295 = vmatpush2.msra.mxu0 0.0
        %1296 = vmatprep.subr.mxu0 0.0
        %1297 = vmatpush2.msra.mxu0 0.0
        %1298 = vmatprep.subr.mxu0 0.0
        %1299 = vmatpush2.msra.mxu0 0.0
        %1300 = vmatprep.subr.mxu0 0.0
        %1301 = vmatpush2.msra.mxu0 0.0
        %1302 = vmatprep.subr.mxu0 0.0
        %1303 = vmatpush2.msra.mxu0 0.0
        %1304 = vmatprep.subr.mxu0 0.0
        %1305 = vmatpush2.msra.mxu0 0.0
        %1306 = vmatprep.subr.mxu0 0.0
        %1307 = vmatpush2.msra.mxu0 0.0
        %1308 = vmatprep.subr.mxu0 0.0
        %1309 = vmatpush2.msra.mxu0 0.0
        %1310 = vmatprep.mubr.f32.mxu0 0.0
        %1311 = vmatmul.mubr.f32.gmra.mxu0 %v263
        %v1312 = vpop.f32.mrf.mxu0
        %v1313 = vadd.f32 0.0, %v1312
        %v1314 = vpop.f32.mrf.mxu0
        %1315 = vdwg.mxu0
        %v1317 = vsel %vm261, %v1313, 0
        %1319 = vmatprep.subr.mxu0 0.0
        %1320 = vmatpush1.msra.mxu0 0.0
        %1321 = vmatprep.subr.mxu0 0.0
        %1322 = vmatpush1.msra.mxu0 0.0
        %1323 = vmatprep.subr.mxu0 0.0
        %1324 = vmatpush1.msra.mxu0 0.0
        %1325 = vmatprep.subr.mxu0 0.0
        %1326 = vmatpush1.msra.mxu0 0.0
        %1327 = vmatprep.subr.mxu0 0.0
        %1328 = vmatpush1.msra.mxu0 0.0
        %1329 = vmatprep.subr.mxu0 0.0
        %1330 = vmatpush1.msra.mxu0 0.0
        %1331 = vmatprep.subr.mxu0 0.0
        %1332 = vmatpush1.msra.mxu0 0.0
        %1333 = vmatprep.subr.mxu0 0.0
        %1334 = vmatpush1.msra.mxu0 0.0
        %1335 = vmatprep.subr.mxu0 0.0
        %1336 = vmatpush1.msra.mxu0 0.0
        %1337 = vmatprep.subr.mxu0 0.0
        %1338 = vmatpush1.msra.mxu0 0.0
        %1339 = vmatprep.subr.mxu0 0.0
        %1340 = vmatpush1.msra.mxu0 0.0
        %1341 = vmatprep.subr.mxu0 0.0
        %1342 = vmatpush1.msra.mxu0 0.0
        %1343 = vmatprep.subr.mxu0 0.0
        %1344 = vmatpush1.msra.mxu0 0.0
        %1345 = vmatprep.subr.mxu0 0.0
        %1346 = vmatpush1.msra.mxu0 0.0
        %1347 = vmatprep.subr.mxu0 0.0
        %1348 = vmatpush1.msra.mxu0 %v248
        %1349 = vmatprep.subr.mxu0 0.0
        %1350 = vmatpush1.msra.mxu0 %v247
        %1351 = vmatprep.subr.mxu0 0.0
        %1352 = vmatpush2.msra.mxu0 0.0
        %1353 = vmatprep.subr.mxu0 0.0
        %1354 = vmatpush2.msra.mxu0 0.0
        %1355 = vmatprep.subr.mxu0 0.0
        %1356 = vmatpush2.msra.mxu0 0.0
        %1357 = vmatprep.subr.mxu0 0.0
        %1358 = vmatpush2.msra.mxu0 0.0
        %1359 = vmatprep.subr.mxu0 0.0
        %1360 = vmatpush2.msra.mxu0 0.0
        %1361 = vmatprep.subr.mxu0 0.0
        %1362 = vmatpush2.msra.mxu0 0.0
        %1363 = vmatprep.subr.mxu0 0.0
        %1364 = vmatpush2.msra.mxu0 0.0
        %1365 = vmatprep.subr.mxu0 0.0
        %1366 = vmatpush2.msra.mxu0 0.0
        %1367 = vmatprep.subr.mxu0 0.0
        %1368 = vmatpush2.msra.mxu0 0.0
        %1369 = vmatprep.subr.mxu0 0.0
        %1370 = vmatpush2.msra.mxu0 0.0
        %1371 = vmatprep.subr.mxu0 0.0
        %1372 = vmatpush2.msra.mxu0 0.0
        %1373 = vmatprep.subr.mxu0 0.0
        %1374 = vmatpush2.msra.mxu0 0.0
        %1375 = vmatprep.subr.mxu0 0.0
        %1376 = vmatpush2.msra.mxu0 0.0
        %1377 = vmatprep.subr.mxu0 0.0
        %1378 = vmatpush2.msra.mxu0 0.0
        %1379 = vmatprep.subr.mxu0 0.0
        %1380 = vmatpush2.msra.mxu0 0.0
        %1381 = vmatprep.subr.mxu0 0.0
        %1382 = vmatpush2.msra.mxu0 0.0
        %1383 = vmatprep.mubr.f32.mxu0 0.0
        %1384 = vmatmul.mubr.f32.gmra.mxu0 %v1317
        %v1385 = vpop.f32.mrf.mxu0
        %v1386 = vadd.f32 0.0, %v1385
        %v1387 = vpop.f32.mrf.mxu0
        %1388 = vdwg.mxu0
        %v1390 = vsel %vm261, %v1243, 0
        %1392 = vmatprep.subr.mxu0 0.0
        %1393 = vmatpush1.msra.mxu0 0.0
        %1394 = vmatprep.subr.mxu0 0.0
        %1395 = vmatpush1.msra.mxu0 0.0
        %1396 = vmatprep.subr.mxu0 0.0
        %1397 = vmatpush1.msra.mxu0 0.0
        %1398 = vmatprep.subr.mxu0 0.0
        %1399 = vmatpush1.msra.mxu0 0.0
        %1400 = vmatprep.subr.mxu0 0.0
        %1401 = vmatpush1.msra.mxu0 0.0
        %1402 = vmatprep.subr.mxu0 0.0
        %1403 = vmatpush1.msra.mxu0 0.0
        %1404 = vmatprep.subr.mxu0 0.0
        %1405 = vmatpush1.msra.mxu0 0.0
        %1406 = vmatprep.subr.mxu0 0.0
        %1407 = vmatpush1.msra.mxu0 0.0
        %1408 = vmatprep.subr.mxu0 0.0
        %1409 = vmatpush1.msra.mxu0 0.0
        %1410 = vmatprep.subr.mxu0 0.0
        %1411 = vmatpush1.msra.mxu0 0.0
        %1412 = vmatprep.subr.mxu0 0.0
        %1413 = vmatpush1.msra.mxu0 0.0
        %1414 = vmatprep.subr.mxu0 0.0
        %1415 = vmatpush1.msra.mxu0 0.0
        %1416 = vmatprep.subr.mxu0 0.0
        %1417 = vmatpush1.msra.mxu0 0.0
        %1418 = vmatprep.subr.mxu0 0.0
        %1419 = vmatpush1.msra.mxu0 0.0
        %1420 = vmatprep.subr.mxu0 0.0
        %1421 = vmatpush1.msra.mxu0 %v248
        %1422 = vmatprep.subr.mxu0 0.0
        %1423 = vmatpush1.msra.mxu0 %v247
        %1424 = vmatprep.subr.mxu0 0.0
        %1425 = vmatpush2.msra.mxu0 0.0
        %1426 = vmatprep.subr.mxu0 0.0
        %1427 = vmatpush2.msra.mxu0 0.0
        %1428 = vmatprep.subr.mxu0 0.0
        %1429 = vmatpush2.msra.mxu0 0.0
        %1430 = vmatprep.subr.mxu0 0.0
        %1431 = vmatpush2.msra.mxu0 0.0
        %1432 = vmatprep.subr.mxu0 0.0
        %1433 = vmatpush2.msra.mxu0 0.0
        %1434 = vmatprep.subr.mxu0 0.0
        %1435 = vmatpush2.msra.mxu0 0.0
        %1436 = vmatprep.subr.mxu0 0.0
        %1437 = vmatpush2.msra.mxu0 0.0
        %1438 = vmatprep.subr.mxu0 0.0
        %1439 = vmatpush2.msra.mxu0 0.0
        %1440 = vmatprep.subr.mxu0 0.0
        %1441 = vmatpush2.msra.mxu0 0.0
        %1442 = vmatprep.subr.mxu0 0.0
        %1443 = vmatpush2.msra.mxu0 0.0
        %1444 = vmatprep.subr.mxu0 0.0
        %1445 = vmatpush2.msra.mxu0 0.0
        %1446 = vmatprep.subr.mxu0 0.0
        %1447 = vmatpush2.msra.mxu0 0.0
        %1448 = vmatprep.subr.mxu0 0.0
        %1449 = vmatpush2.msra.mxu0 0.0
        %1450 = vmatprep.subr.mxu0 0.0
        %1451 = vmatpush2.msra.mxu0 0.0
        %1452 = vmatprep.subr.mxu0 0.0
        %1453 = vmatpush2.msra.mxu0 0.0
        %1454 = vmatprep.subr.mxu0 0.0
        %1455 = vmatpush2.msra.mxu0 0.0
        %1456 = vmatprep.mubr.f32.mxu0 0.0
        %1457 = vmatmul.mubr.f32.gmra.mxu0 %v1390
        %v1458 = vpop.f32.mrf.mxu0
        %v1459 = vadd.f32 %v1386, %v1458
        %v1460 = vpop.f32.mrf.mxu0
        %1461 = vdwg.mxu0
        %s1462 = sld [smem:[#allocation2 + $0x4]]
        %v1463 = vstv %s1462
        %v1464 = vmul.f32 %v1463, %v1459
        %v1465 = vadd.f32 %v1159, %v1464
        %s1466 = sld [smem:[#allocation2 + $0x10]]
        %v1467 = vstv %s1466
        %v1468 = vmul.f32 %v1467, %v1459
        %v1469 = vadd.f32 %v1163, %v1468
        %s1470 = sld [smem:[#allocation2 + $0x1c]]
        %v1471 = vstv %s1470
        %v1472 = vmul.f32 %v1471, %v1459
        %v1473 = vadd.f32 %v1167, %v1472
        %1474 = vmatprep.subr.mxu0 0.0
        %1475 = vmatpush1.msra.mxu0 0.0
        %1476 = vmatprep.subr.mxu0 0.0
        %1477 = vmatpush1.msra.mxu0 0.0
        %1478 = vmatprep.subr.mxu0 0.0
        %1479 = vmatpush1.msra.mxu0 0.0
        %1480 = vmatprep.subr.mxu0 0.0
        %1481 = vmatpush1.msra.mxu0 0.0
        %1482 = vmatprep.subr.mxu0 0.0
        %1483 = vmatpush1.msra.mxu0 0.0
        %1484 = vmatprep.subr.mxu0 0.0
        %1485 = vmatpush1.msra.mxu0 0.0
        %1486 = vmatprep.subr.mxu0 0.0
        %1487 = vmatpush1.msra.mxu0 0.0
        %1488 = vmatprep.subr.mxu0 0.0
        %1489 = vmatpush1.msra.mxu0 0.0
        %1490 = vmatprep.subr.mxu0 0.0
        %1491 = vmatpush1.msra.mxu0 0.0
        %1492 = vmatprep.subr.mxu0 0.0
        %1493 = vmatpush1.msra.mxu0 0.0
        %1494 = vmatprep.subr.mxu0 0.0
        %1495 = vmatpush1.msra.mxu0 0.0
        %1496 = vmatprep.subr.mxu0 0.0
        %1497 = vmatpush1.msra.mxu0 0.0
        %1498 = vmatprep.subr.mxu0 0.0
        %1499 = vmatpush1.msra.mxu0 0.0
        %1500 = vmatprep.subr.mxu0 0.0
        %1501 = vmatpush1.msra.mxu0 0.0
        %1502 = vmatprep.subr.mxu0 0.0
        %1503 = vmatpush1.msra.mxu0 %v253
        %1504 = vmatprep.subr.mxu0 0.0
        %1505 = vmatpush1.msra.mxu0 %v252
        %1506 = vmatprep.subr.mxu0 0.0
        %1507 = vmatpush2.msra.mxu0 0.0
        %1508 = vmatprep.subr.mxu0 0.0
        %1509 = vmatpush2.msra.mxu0 0.0
        %1510 = vmatprep.subr.mxu0 0.0
        %1511 = vmatpush2.msra.mxu0 0.0
        %1512 = vmatprep.subr.mxu0 0.0
        %1513 = vmatpush2.msra.mxu0 0.0
        %1514 = vmatprep.subr.mxu0 0.0
        %1515 = vmatpush2.msra.mxu0 0.0
        %1516 = vmatprep.subr.mxu0 0.0
        %1517 = vmatpush2.msra.mxu0 0.0
        %1518 = vmatprep.subr.mxu0 0.0
        %1519 = vmatpush2.msra.mxu0 0.0
        %1520 = vmatprep.subr.mxu0 0.0
        %1521 = vmatpush2.msra.mxu0 0.0
        %1522 = vmatprep.subr.mxu0 0.0
        %1523 = vmatpush2.msra.mxu0 0.0
        %1524 = vmatprep.subr.mxu0 0.0
        %1525 = vmatpush2.msra.mxu0 0.0
        %1526 = vmatprep.subr.mxu0 0.0
        %1527 = vmatpush2.msra.mxu0 0.0
        %1528 = vmatprep.subr.mxu0 0.0
        %1529 = vmatpush2.msra.mxu0 0.0
        %1530 = vmatprep.subr.mxu0 0.0
        %1531 = vmatpush2.msra.mxu0 0.0
        %1532 = vmatprep.subr.mxu0 0.0
        %1533 = vmatpush2.msra.mxu0 0.0
        %1534 = vmatprep.subr.mxu0 0.0
        %1535 = vmatpush2.msra.mxu0 0.0
        %1536 = vmatprep.subr.mxu0 0.0
        %1537 = vmatpush2.msra.mxu0 0.0
        %1538 = vmatprep.mubr.f32.mxu0 0.0
        %1539 = vmatmul.mubr.f32.gmra.mxu0 %v1317
        %v1540 = vpop.f32.mrf.mxu0
        %v1541 = vadd.f32 0.0, %v1540
        %v1542 = vpop.f32.mrf.mxu0
        %1543 = vdwg.mxu0
        %1544 = vmatprep.subr.mxu0 0.0
        %1545 = vmatpush1.msra.mxu0 0.0
        %1546 = vmatprep.subr.mxu0 0.0
        %1547 = vmatpush1.msra.mxu0 0.0
        %1548 = vmatprep.subr.mxu0 0.0
        %1549 = vmatpush1.msra.mxu0 0.0
        %1550 = vmatprep.subr.mxu0 0.0
        %1551 = vmatpush1.msra.mxu0 0.0
        %1552 = vmatprep.subr.mxu0 0.0
        %1553 = vmatpush1.msra.mxu0 0.0
        %1554 = vmatprep.subr.mxu0 0.0
        %1555 = vmatpush1.msra.mxu0 0.0
        %1556 = vmatprep.subr.mxu0 0.0
        %1557 = vmatpush1.msra.mxu0 0.0
        %1558 = vmatprep.subr.mxu0 0.0
        %1559 = vmatpush1.msra.mxu0 0.0
        %1560 = vmatprep.subr.mxu0 0.0
        %1561 = vmatpush1.msra.mxu0 0.0
        %1562 = vmatprep.subr.mxu0 0.0
        %1563 = vmatpush1.msra.mxu0 0.0
        %1564 = vmatprep.subr.mxu0 0.0
        %1565 = vmatpush1.msra.mxu0 0.0
        %1566 = vmatprep.subr.mxu0 0.0
        %1567 = vmatpush1.msra.mxu0 0.0
        %1568 = vmatprep.subr.mxu0 0.0
        %1569 = vmatpush1.msra.mxu0 0.0
        %1570 = vmatprep.subr.mxu0 0.0
        %1571 = vmatpush1.msra.mxu0 0.0
        %1572 = vmatprep.subr.mxu0 0.0
        %1573 = vmatpush1.msra.mxu0 %v253
        %1574 = vmatprep.subr.mxu0 0.0
        %1575 = vmatpush1.msra.mxu0 %v252
        %1576 = vmatprep.subr.mxu0 0.0
        %1577 = vmatpush2.msra.mxu0 0.0
        %1578 = vmatprep.subr.mxu0 0.0
        %1579 = vmatpush2.msra.mxu0 0.0
        %1580 = vmatprep.subr.mxu0 0.0
        %1581 = vmatpush2.msra.mxu0 0.0
        %1582 = vmatprep.subr.mxu0 0.0
        %1583 = vmatpush2.msra.mxu0 0.0
        %1584 = vmatprep.subr.mxu0 0.0
        %1585 = vmatpush2.msra.mxu0 0.0
        %1586 = vmatprep.subr.mxu0 0.0
        %1587 = vmatpush2.msra.mxu0 0.0
        %1588 = vmatprep.subr.mxu0 0.0
        %1589 = vmatpush2.msra.mxu0 0.0
        %1590 = vmatprep.subr.mxu0 0.0
        %1591 = vmatpush2.msra.mxu0 0.0
        %1592 = vmatprep.subr.mxu0 0.0
        %1593 = vmatpush2.msra.mxu0 0.0
        %1594 = vmatprep.subr.mxu0 0.0
        %1595 = vmatpush2.msra.mxu0 0.0
        %1596 = vmatprep.subr.mxu0 0.0
        %1597 = vmatpush2.msra.mxu0 0.0
        %1598 = vmatprep.subr.mxu0 0.0
        %1599 = vmatpush2.msra.mxu0 0.0
        %1600 = vmatprep.subr.mxu0 0.0
        %1601 = vmatpush2.msra.mxu0 0.0
        %1602 = vmatprep.subr.mxu0 0.0
        %1603 = vmatpush2.msra.mxu0 0.0
        %1604 = vmatprep.subr.mxu0 0.0
        %1605 = vmatpush2.msra.mxu0 0.0
        %1606 = vmatprep.subr.mxu0 0.0
        %1607 = vmatpush2.msra.mxu0 0.0
        %1608 = vmatprep.mubr.f32.mxu0 0.0
        %1609 = vmatmul.mubr.f32.gmra.mxu0 %v1390
        %v1610 = vpop.f32.mrf.mxu0
        %v1611 = vadd.f32 %v1541, %v1610
        %v1612 = vpop.f32.mrf.mxu0
        %1613 = vdwg.mxu0
        %s1614 = sld [smem:[#allocation2 + $0x5]]
        %v1615 = vstv %s1614
        %v1616 = vmul.f32 %v1615, %v1611
        %v1617 = vadd.f32 %v1465, %v1616
        %s1618 = sld [smem:[#allocation2 + $0x11]]
        %v1619 = vstv %s1618
        %v1620 = vmul.f32 %v1619, %v1611
        %v1621 = vadd.f32 %v1469, %v1620
        %s1622 = sld [smem:[#allocation2 + $0x1d]]
        %v1623 = vstv %s1622
        %v1624 = vmul.f32 %v1623, %v1611
        %v1625 = vadd.f32 %v1473, %v1624
        %1626 = vmatprep.subr.mxu0 0.0
        %1627 = vmatpush1.msra.mxu0 0.0
        %1628 = vmatprep.subr.mxu0 0.0
        %1629 = vmatpush1.msra.mxu0 0.0
        %1630 = vmatprep.subr.mxu0 0.0
        %1631 = vmatpush1.msra.mxu0 0.0
        %1632 = vmatprep.subr.mxu0 0.0
        %1633 = vmatpush1.msra.mxu0 0.0
        %1634 = vmatprep.subr.mxu0 0.0
        %1635 = vmatpush1.msra.mxu0 0.0
        %1636 = vmatprep.subr.mxu0 0.0
        %1637 = vmatpush1.msra.mxu0 0.0
        %1638 = vmatprep.subr.mxu0 0.0
        %1639 = vmatpush1.msra.mxu0 0.0
        %1640 = vmatprep.subr.mxu0 0.0
        %1641 = vmatpush1.msra.mxu0 0.0
        %1642 = vmatprep.subr.mxu0 0.0
        %1643 = vmatpush1.msra.mxu0 0.0
        %1644 = vmatprep.subr.mxu0 0.0
        %1645 = vmatpush1.msra.mxu0 0.0
        %1646 = vmatprep.subr.mxu0 0.0
        %1647 = vmatpush1.msra.mxu0 0.0
        %1648 = vmatprep.subr.mxu0 0.0
        %1649 = vmatpush1.msra.mxu0 0.0
        %1650 = vmatprep.subr.mxu0 0.0
        %1651 = vmatpush1.msra.mxu0 0.0
        %1652 = vmatprep.subr.mxu0 0.0
        %1653 = vmatpush1.msra.mxu0 0.0
        %1654 = vmatprep.subr.mxu0 0.0
        %1655 = vmatpush1.msra.mxu0 %v1173
        %1656 = vmatprep.subr.mxu0 0.0
        %1657 = vmatpush1.msra.mxu0 %v1172
        %1658 = vmatprep.subr.mxu0 0.0
        %1659 = vmatpush2.msra.mxu0 0.0
        %1660 = vmatprep.subr.mxu0 0.0
        %1661 = vmatpush2.msra.mxu0 0.0
        %1662 = vmatprep.subr.mxu0 0.0
        %1663 = vmatpush2.msra.mxu0 0.0
        %1664 = vmatprep.subr.mxu0 0.0
        %1665 = vmatpush2.msra.mxu0 0.0
        %1666 = vmatprep.subr.mxu0 0.0
        %1667 = vmatpush2.msra.mxu0 0.0
        %1668 = vmatprep.subr.mxu0 0.0
        %1669 = vmatpush2.msra.mxu0 0.0
        %1670 = vmatprep.subr.mxu0 0.0
        %1671 = vmatpush2.msra.mxu0 0.0
        %1672 = vmatprep.subr.mxu0 0.0
        %1673 = vmatpush2.msra.mxu0 0.0
        %1674 = vmatprep.subr.mxu0 0.0
        %1675 = vmatpush2.msra.mxu0 0.0
        %1676 = vmatprep.subr.mxu0 0.0
        %1677 = vmatpush2.msra.mxu0 0.0
        %1678 = vmatprep.subr.mxu0 0.0
        %1679 = vmatpush2.msra.mxu0 0.0
        %1680 = vmatprep.subr.mxu0 0.0
        %1681 = vmatpush2.msra.mxu0 0.0
        %1682 = vmatprep.subr.mxu0 0.0
        %1683 = vmatpush2.msra.mxu0 0.0
        %1684 = vmatprep.subr.mxu0 0.0
        %1685 = vmatpush2.msra.mxu0 0.0
        %1686 = vmatprep.subr.mxu0 0.0
        %1687 = vmatpush2.msra.mxu0 0.0
        %1688 = vmatprep.subr.mxu0 0.0
        %1689 = vmatpush2.msra.mxu0 0.0
        %1690 = vmatprep.mubr.f32.mxu0 0.0
        %1691 = vmatmul.mubr.f32.gmra.mxu0 %v716
        %v1692 = vpop.f32.mrf.mxu0
        %v1693 = vadd.f32 0.0, %v1692
        %v1694 = vpop.f32.mrf.mxu0
        %1695 = vdwg.mxu0
        %1696 = vmatprep.subr.mxu0 0.0
        %1697 = vmatpush1.msra.mxu0 0.0
        %1698 = vmatprep.subr.mxu0 0.0
        %1699 = vmatpush1.msra.mxu0 0.0
        %1700 = vmatprep.subr.mxu0 0.0
        %1701 = vmatpush1.msra.mxu0 0.0
        %1702 = vmatprep.subr.mxu0 0.0
        %1703 = vmatpush1.msra.mxu0 0.0
        %1704 = vmatprep.subr.mxu0 0.0
        %1705 = vmatpush1.msra.mxu0 0.0
        %1706 = vmatprep.subr.mxu0 0.0
        %1707 = vmatpush1.msra.mxu0 0.0
        %1708 = vmatprep.subr.mxu0 0.0
        %1709 = vmatpush1.msra.mxu0 0.0
        %1710 = vmatprep.subr.mxu0 0.0
        %1711 = vmatpush1.msra.mxu0 0.0
        %1712 = vmatprep.subr.mxu0 0.0
        %1713 = vmatpush1.msra.mxu0 0.0
        %1714 = vmatprep.subr.mxu0 0.0
        %1715 = vmatpush1.msra.mxu0 0.0
        %1716 = vmatprep.subr.mxu0 0.0
        %1717 = vmatpush1.msra.mxu0 0.0
        %1718 = vmatprep.subr.mxu0 0.0
        %1719 = vmatpush1.msra.mxu0 0.0
        %1720 = vmatprep.subr.mxu0 0.0
        %1721 = vmatpush1.msra.mxu0 0.0
        %1722 = vmatprep.subr.mxu0 0.0
        %1723 = vmatpush1.msra.mxu0 0.0
        %1724 = vmatprep.subr.mxu0 0.0
        %1725 = vmatpush1.msra.mxu0 %v1175
        %1726 = vmatprep.subr.mxu0 0.0
        %1727 = vmatpush1.msra.mxu0 %v1174
        %1728 = vmatprep.subr.mxu0 0.0
        %1729 = vmatpush2.msra.mxu0 0.0
        %1730 = vmatprep.subr.mxu0 0.0
        %1731 = vmatpush2.msra.mxu0 0.0
        %1732 = vmatprep.subr.mxu0 0.0
        %1733 = vmatpush2.msra.mxu0 0.0
        %1734 = vmatprep.subr.mxu0 0.0
        %1735 = vmatpush2.msra.mxu0 0.0
        %1736 = vmatprep.subr.mxu0 0.0
        %1737 = vmatpush2.msra.mxu0 0.0
        %1738 = vmatprep.subr.mxu0 0.0
        %1739 = vmatpush2.msra.mxu0 0.0
        %1740 = vmatprep.subr.mxu0 0.0
        %1741 = vmatpush2.msra.mxu0 0.0
        %1742 = vmatprep.subr.mxu0 0.0
        %1743 = vmatpush2.msra.mxu0 0.0
        %1744 = vmatprep.subr.mxu0 0.0
        %1745 = vmatpush2.msra.mxu0 0.0
        %1746 = vmatprep.subr.mxu0 0.0
        %1747 = vmatpush2.msra.mxu0 0.0
        %1748 = vmatprep.subr.mxu0 0.0
        %1749 = vmatpush2.msra.mxu0 0.0
        %1750 = vmatprep.subr.mxu0 0.0
        %1751 = vmatpush2.msra.mxu0 0.0
        %1752 = vmatprep.subr.mxu0 0.0
        %1753 = vmatpush2.msra.mxu0 0.0
        %1754 = vmatprep.subr.mxu0 0.0
        %1755 = vmatpush2.msra.mxu0 0.0
        %1756 = vmatprep.subr.mxu0 0.0
        %1757 = vmatpush2.msra.mxu0 0.0
        %1758 = vmatprep.subr.mxu0 0.0
        %1759 = vmatpush2.msra.mxu0 0.0
        %1760 = vmatprep.mubr.f32.mxu0 0.0
        %1761 = vmatmul.mubr.f32.gmra.mxu0 %v716
        %v1762 = vpop.f32.mrf.mxu0
        %v1763 = vadd.f32 0.0, %v1762
        %v1764 = vpop.f32.mrf.mxu0
        %1765 = vdwg.mxu0
        %v1767 = vsel %vm261, %v1763, 0
        %1769 = vmatprep.subr.mxu0 0.0
        %1770 = vmatpush1.msra.mxu0 0.0
        %1771 = vmatprep.subr.mxu0 0.0
        %1772 = vmatpush1.msra.mxu0 0.0
        %1773 = vmatprep.subr.mxu0 0.0
        %1774 = vmatpush1.msra.mxu0 0.0
        %1775 = vmatprep.subr.mxu0 0.0
        %1776 = vmatpush1.msra.mxu0 0.0
        %1777 = vmatprep.subr.mxu0 0.0
        %1778 = vmatpush1.msra.mxu0 0.0
        %1779 = vmatprep.subr.mxu0 0.0
        %1780 = vmatpush1.msra.mxu0 0.0
        %1781 = vmatprep.subr.mxu0 0.0
        %1782 = vmatpush1.msra.mxu0 0.0
        %1783 = vmatprep.subr.mxu0 0.0
        %1784 = vmatpush1.msra.mxu0 0.0
        %1785 = vmatprep.subr.mxu0 0.0
        %1786 = vmatpush1.msra.mxu0 0.0
        %1787 = vmatprep.subr.mxu0 0.0
        %1788 = vmatpush1.msra.mxu0 0.0
        %1789 = vmatprep.subr.mxu0 0.0
        %1790 = vmatpush1.msra.mxu0 0.0
        %1791 = vmatprep.subr.mxu0 0.0
        %1792 = vmatpush1.msra.mxu0 0.0
        %1793 = vmatprep.subr.mxu0 0.0
        %1794 = vmatpush1.msra.mxu0 0.0
        %1795 = vmatprep.subr.mxu0 0.0
        %1796 = vmatpush1.msra.mxu0 0.0
        %1797 = vmatprep.subr.mxu0 0.0
        %1798 = vmatpush1.msra.mxu0 %v248
        %1799 = vmatprep.subr.mxu0 0.0
        %1800 = vmatpush1.msra.mxu0 %v247
        %1801 = vmatprep.subr.mxu0 0.0
        %1802 = vmatpush2.msra.mxu0 0.0
        %1803 = vmatprep.subr.mxu0 0.0
        %1804 = vmatpush2.msra.mxu0 0.0
        %1805 = vmatprep.subr.mxu0 0.0
        %1806 = vmatpush2.msra.mxu0 0.0
        %1807 = vmatprep.subr.mxu0 0.0
        %1808 = vmatpush2.msra.mxu0 0.0
        %1809 = vmatprep.subr.mxu0 0.0
        %1810 = vmatpush2.msra.mxu0 0.0
        %1811 = vmatprep.subr.mxu0 0.0
        %1812 = vmatpush2.msra.mxu0 0.0
        %1813 = vmatprep.subr.mxu0 0.0
        %1814 = vmatpush2.msra.mxu0 0.0
        %1815 = vmatprep.subr.mxu0 0.0
        %1816 = vmatpush2.msra.mxu0 0.0
        %1817 = vmatprep.subr.mxu0 0.0
        %1818 = vmatpush2.msra.mxu0 0.0
        %1819 = vmatprep.subr.mxu0 0.0
        %1820 = vmatpush2.msra.mxu0 0.0
        %1821 = vmatprep.subr.mxu0 0.0
        %1822 = vmatpush2.msra.mxu0 0.0
        %1823 = vmatprep.subr.mxu0 0.0
        %1824 = vmatpush2.msra.mxu0 0.0
        %1825 = vmatprep.subr.mxu0 0.0
        %1826 = vmatpush2.msra.mxu0 0.0
        %1827 = vmatprep.subr.mxu0 0.0
        %1828 = vmatpush2.msra.mxu0 0.0
        %1829 = vmatprep.subr.mxu0 0.0
        %1830 = vmatpush2.msra.mxu0 0.0
        %1831 = vmatprep.subr.mxu0 0.0
        %1832 = vmatpush2.msra.mxu0 0.0
        %1833 = vmatprep.mubr.f32.mxu0 0.0
        %1834 = vmatmul.mubr.f32.gmra.mxu0 %v1767
        %v1835 = vpop.f32.mrf.mxu0
        %v1836 = vadd.f32 0.0, %v1835
        %v1837 = vpop.f32.mrf.mxu0
        %1838 = vdwg.mxu0
        %v1840 = vsel %vm261, %v1693, 0
        %1842 = vmatprep.subr.mxu0 0.0
        %1843 = vmatpush1.msra.mxu0 0.0
        %1844 = vmatprep.subr.mxu0 0.0
        %1845 = vmatpush1.msra.mxu0 0.0
        %1846 = vmatprep.subr.mxu0 0.0
        %1847 = vmatpush1.msra.mxu0 0.0
        %1848 = vmatprep.subr.mxu0 0.0
        %1849 = vmatpush1.msra.mxu0 0.0
        %1850 = vmatprep.subr.mxu0 0.0
        %1851 = vmatpush1.msra.mxu0 0.0
        %1852 = vmatprep.subr.mxu0 0.0
        %1853 = vmatpush1.msra.mxu0 0.0
        %1854 = vmatprep.subr.mxu0 0.0
        %1855 = vmatpush1.msra.mxu0 0.0
        %1856 = vmatprep.subr.mxu0 0.0
        %1857 = vmatpush1.msra.mxu0 0.0
        %1858 = vmatprep.subr.mxu0 0.0
        %1859 = vmatpush1.msra.mxu0 0.0
        %1860 = vmatprep.subr.mxu0 0.0
        %1861 = vmatpush1.msra.mxu0 0.0
        %1862 = vmatprep.subr.mxu0 0.0
        %1863 = vmatpush1.msra.mxu0 0.0
        %1864 = vmatprep.subr.mxu0 0.0
        %1865 = vmatpush1.msra.mxu0 0.0
        %1866 = vmatprep.subr.mxu0 0.0
        %1867 = vmatpush1.msra.mxu0 0.0
        %1868 = vmatprep.subr.mxu0 0.0
        %1869 = vmatpush1.msra.mxu0 0.0
        %1870 = vmatprep.subr.mxu0 0.0
        %1871 = vmatpush1.msra.mxu0 %v248
        %1872 = vmatprep.subr.mxu0 0.0
        %1873 = vmatpush1.msra.mxu0 %v247
        %1874 = vmatprep.subr.mxu0 0.0
        %1875 = vmatpush2.msra.mxu0 0.0
        %1876 = vmatprep.subr.mxu0 0.0
        %1877 = vmatpush2.msra.mxu0 0.0
        %1878 = vmatprep.subr.mxu0 0.0
        %1879 = vmatpush2.msra.mxu0 0.0
        %1880 = vmatprep.subr.mxu0 0.0
        %1881 = vmatpush2.msra.mxu0 0.0
        %1882 = vmatprep.subr.mxu0 0.0
        %1883 = vmatpush2.msra.mxu0 0.0
        %1884 = vmatprep.subr.mxu0 0.0
        %1885 = vmatpush2.msra.mxu0 0.0
        %1886 = vmatprep.subr.mxu0 0.0
        %1887 = vmatpush2.msra.mxu0 0.0
        %1888 = vmatprep.subr.mxu0 0.0
        %1889 = vmatpush2.msra.mxu0 0.0
        %1890 = vmatprep.subr.mxu0 0.0
        %1891 = vmatpush2.msra.mxu0 0.0
        %1892 = vmatprep.subr.mxu0 0.0
        %1893 = vmatpush2.msra.mxu0 0.0
        %1894 = vmatprep.subr.mxu0 0.0
        %1895 = vmatpush2.msra.mxu0 0.0
        %1896 = vmatprep.subr.mxu0 0.0
        %1897 = vmatpush2.msra.mxu0 0.0
        %1898 = vmatprep.subr.mxu0 0.0
        %1899 = vmatpush2.msra.mxu0 0.0
        %1900 = vmatprep.subr.mxu0 0.0
        %1901 = vmatpush2.msra.mxu0 0.0
        %1902 = vmatprep.subr.mxu0 0.0
        %1903 = vmatpush2.msra.mxu0 0.0
        %1904 = vmatprep.subr.mxu0 0.0
        %1905 = vmatpush2.msra.mxu0 0.0
        %1906 = vmatprep.mubr.f32.mxu0 0.0
        %1907 = vmatmul.mubr.f32.gmra.mxu0 %v1840
        %v1908 = vpop.f32.mrf.mxu0
        %v1909 = vadd.f32 %v1836, %v1908
        %v1910 = vpop.f32.mrf.mxu0
        %1911 = vdwg.mxu0
        %s1912 = sld [smem:[#allocation2 + $0x6]]
        %v1913 = vstv %s1912
        %v1914 = vmul.f32 %v1913, %v1909
        %v1915 = vadd.f32 %v1617, %v1914
        %s1916 = sld [smem:[#allocation2 + $0x12]]
        %v1917 = vstv %s1916
        %v1918 = vmul.f32 %v1917, %v1909
        %v1919 = vadd.f32 %v1621, %v1918
        %s1920 = sld [smem:[#allocation2 + $0x1e]]
        %v1921 = vstv %s1920
        %v1922 = vmul.f32 %v1921, %v1909
        %v1923 = vadd.f32 %v1625, %v1922
        %1924 = vmatprep.subr.mxu0 0.0
        %1925 = vmatpush1.msra.mxu0 0.0
        %1926 = vmatprep.subr.mxu0 0.0
        %1927 = vmatpush1.msra.mxu0 0.0
        %1928 = vmatprep.subr.mxu0 0.0
        %1929 = vmatpush1.msra.mxu0 0.0
        %1930 = vmatprep.subr.mxu0 0.0
        %1931 = vmatpush1.msra.mxu0 0.0
        %1932 = vmatprep.subr.mxu0 0.0
        %1933 = vmatpush1.msra.mxu0 0.0
        %1934 = vmatprep.subr.mxu0 0.0
        %1935 = vmatpush1.msra.mxu0 0.0
        %1936 = vmatprep.subr.mxu0 0.0
        %1937 = vmatpush1.msra.mxu0 0.0
        %1938 = vmatprep.subr.mxu0 0.0
        %1939 = vmatpush1.msra.mxu0 0.0
        %1940 = vmatprep.subr.mxu0 0.0
        %1941 = vmatpush1.msra.mxu0 0.0
        %1942 = vmatprep.subr.mxu0 0.0
        %1943 = vmatpush1.msra.mxu0 0.0
        %1944 = vmatprep.subr.mxu0 0.0
        %1945 = vmatpush1.msra.mxu0 0.0
        %1946 = vmatprep.subr.mxu0 0.0
        %1947 = vmatpush1.msra.mxu0 0.0
        %1948 = vmatprep.subr.mxu0 0.0
        %1949 = vmatpush1.msra.mxu0 0.0
        %1950 = vmatprep.subr.mxu0 0.0
        %1951 = vmatpush1.msra.mxu0 0.0
        %1952 = vmatprep.subr.mxu0 0.0
        %1953 = vmatpush1.msra.mxu0 %v253
        %1954 = vmatprep.subr.mxu0 0.0
        %1955 = vmatpush1.msra.mxu0 %v252
        %1956 = vmatprep.subr.mxu0 0.0
        %1957 = vmatpush2.msra.mxu0 0.0
        %1958 = vmatprep.subr.mxu0 0.0
        %1959 = vmatpush2.msra.mxu0 0.0
        %1960 = vmatprep.subr.mxu0 0.0
        %1961 = vmatpush2.msra.mxu0 0.0
        %1962 = vmatprep.subr.mxu0 0.0
        %1963 = vmatpush2.msra.mxu0 0.0
        %1964 = vmatprep.subr.mxu0 0.0
        %1965 = vmatpush2.msra.mxu0 0.0
        %1966 = vmatprep.subr.mxu0 0.0
        %1967 = vmatpush2.msra.mxu0 0.0
        %1968 = vmatprep.subr.mxu0 0.0
        %1969 = vmatpush2.msra.mxu0 0.0
        %1970 = vmatprep.subr.mxu0 0.0
        %1971 = vmatpush2.msra.mxu0 0.0
        %1972 = vmatprep.subr.mxu0 0.0
        %1973 = vmatpush2.msra.mxu0 0.0
        %1974 = vmatprep.subr.mxu0 0.0
        %1975 = vmatpush2.msra.mxu0 0.0
        %1976 = vmatprep.subr.mxu0 0.0
        %1977 = vmatpush2.msra.mxu0 0.0
        %1978 = vmatprep.subr.mxu0 0.0
        %1979 = vmatpush2.msra.mxu0 0.0
        %1980 = vmatprep.subr.mxu0 0.0
        %1981 = vmatpush2.msra.mxu0 0.0
        %1982 = vmatprep.subr.mxu0 0.0
        %1983 = vmatpush2.msra.mxu0 0.0
        %1984 = vmatprep.subr.mxu0 0.0
        %1985 = vmatpush2.msra.mxu0 0.0
        %1986 = vmatprep.subr.mxu0 0.0
        %1987 = vmatpush2.msra.mxu0 0.0
        %1988 = vmatprep.mubr.f32.mxu0 0.0
        %1989 = vmatmul.mubr.f32.gmra.mxu0 %v1767
        %v1990 = vpop.f32.mrf.mxu0
        %v1991 = vadd.f32 0.0, %v1990
        %v1992 = vpop.f32.mrf.mxu0
        %1993 = vdwg.mxu0
        %1994 = vmatprep.subr.mxu0 0.0
        %1995 = vmatpush1.msra.mxu0 0.0
        %1996 = vmatprep.subr.mxu0 0.0
        %1997 = vmatpush1.msra.mxu0 0.0
        %1998 = vmatprep.subr.mxu0 0.0
        %1999 = vmatpush1.msra.mxu0 0.0
        %2000 = vmatprep.subr.mxu0 0.0
        %2001 = vmatpush1.msra.mxu0 0.0
        %2002 = vmatprep.subr.mxu0 0.0
        %2003 = vmatpush1.msra.mxu0 0.0
        %2004 = vmatprep.subr.mxu0 0.0
        %2005 = vmatpush1.msra.mxu0 0.0
        %2006 = vmatprep.subr.mxu0 0.0
        %2007 = vmatpush1.msra.mxu0 0.0
        %2008 = vmatprep.subr.mxu0 0.0
        %2009 = vmatpush1.msra.mxu0 0.0
        %2010 = vmatprep.subr.mxu0 0.0
        %2011 = vmatpush1.msra.mxu0 0.0
        %2012 = vmatprep.subr.mxu0 0.0
        %2013 = vmatpush1.msra.mxu0 0.0
        %2014 = vmatprep.subr.mxu0 0.0
        %2015 = vmatpush1.msra.mxu0 0.0
        %2016 = vmatprep.subr.mxu0 0.0
        %2017 = vmatpush1.msra.mxu0 0.0
        %2018 = vmatprep.subr.mxu0 0.0
        %2019 = vmatpush1.msra.mxu0 0.0
        %2020 = vmatprep.subr.mxu0 0.0
        %2021 = vmatpush1.msra.mxu0 0.0
        %2022 = vmatprep.subr.mxu0 0.0
        %2023 = vmatpush1.msra.mxu0 %v253
        %2024 = vmatprep.subr.mxu0 0.0
        %2025 = vmatpush1.msra.mxu0 %v252
        %2026 = vmatprep.subr.mxu0 0.0
        %2027 = vmatpush2.msra.mxu0 0.0
        %2028 = vmatprep.subr.mxu0 0.0
        %2029 = vmatpush2.msra.mxu0 0.0
        %2030 = vmatprep.subr.mxu0 0.0
        %2031 = vmatpush2.msra.mxu0 0.0
        %2032 = vmatprep.subr.mxu0 0.0
        %2033 = vmatpush2.msra.mxu0 0.0
        %2034 = vmatprep.subr.mxu0 0.0
        %2035 = vmatpush2.msra.mxu0 0.0
        %2036 = vmatprep.subr.mxu0 0.0
        %2037 = vmatpush2.msra.mxu0 0.0
        %2038 = vmatprep.subr.mxu0 0.0
        %2039 = vmatpush2.msra.mxu0 0.0
        %2040 = vmatprep.subr.mxu0 0.0
        %2041 = vmatpush2.msra.mxu0 0.0
        %2042 = vmatprep.subr.mxu0 0.0
        %2043 = vmatpush2.msra.mxu0 0.0
        %2044 = vmatprep.subr.mxu0 0.0
        %2045 = vmatpush2.msra.mxu0 0.0
        %2046 = vmatprep.subr.mxu0 0.0
        %2047 = vmatpush2.msra.mxu0 0.0
        %2048 = vmatprep.subr.mxu0 0.0
        %2049 = vmatpush2.msra.mxu0 0.0
        %2050 = vmatprep.subr.mxu0 0.0
        %2051 = vmatpush2.msra.mxu0 0.0
        %2052 = vmatprep.subr.mxu0 0.0
        %2053 = vmatpush2.msra.mxu0 0.0
        %2054 = vmatprep.subr.mxu0 0.0
        %2055 = vmatpush2.msra.mxu0 0.0
        %2056 = vmatprep.subr.mxu0 0.0
        %2057 = vmatpush2.msra.mxu0 0.0
        %2058 = vmatprep.mubr.f32.mxu0 0.0
        %2059 = vmatmul.mubr.f32.gmra.mxu0 %v1840
        %v2060 = vpop.f32.mrf.mxu0
        %v2061 = vadd.f32 %v1991, %v2060
        %v2062 = vpop.f32.mrf.mxu0
        %2063 = vdwg.mxu0
        %s2064 = sld [smem:[#allocation2 + $0x7]]
        %v2065 = vstv %s2064
        %v2066 = vmul.f32 %v2065, %v2061
        %v2067 = vadd.f32 %v1915, %v2066
        %s2068 = sld [smem:[#allocation2 + $0x13]]
        %v2069 = vstv %s2068
        %v2070 = vmul.f32 %v2069, %v2061
        %v2071 = vadd.f32 %v1919, %v2070
        %s2072 = sld [smem:[#allocation2 + $0x1f]]
        %v2073 = vstv %s2072
        %v2074 = vmul.f32 %v2073, %v2061
        %v2075 = vadd.f32 %v1923, %v2074
        %s2076 = scalar_lea.vmem %s208, 32 [#allocation8]
        %v2077 = vld [vmem:[%s2076] sm:$0xff]
        %v2078 = vld [vmem:[%s2076 + $0x8] sm:$0xff]
        %v2079 = vpack.c.bf16 %v2078, %v2077
        %v2080 = vunpack.c.l.bf16 %v2079
        %v2081 = vunpack.c.h.bf16 %v2079
        %v2082 = vsub.f32 %v2077, %v2080
        %v2083 = vsub.f32 %v2078, %v2081
        %2084 = vmatprep.subr.mxu0 0.0
        %2085 = vmatpush1.msra.mxu0 0.0
        %2086 = vmatprep.subr.mxu0 0.0
        %2087 = vmatpush1.msra.mxu0 0.0
        %2088 = vmatprep.subr.mxu0 0.0
        %2089 = vmatpush1.msra.mxu0 0.0
        %2090 = vmatprep.subr.mxu0 0.0
        %2091 = vmatpush1.msra.mxu0 0.0
        %2092 = vmatprep.subr.mxu0 0.0
        %2093 = vmatpush1.msra.mxu0 0.0
        %2094 = vmatprep.subr.mxu0 0.0
        %2095 = vmatpush1.msra.mxu0 0.0
        %2096 = vmatprep.subr.mxu0 0.0
        %2097 = vmatpush1.msra.mxu0 0.0
        %2098 = vmatprep.subr.mxu0 0.0
        %2099 = vmatpush1.msra.mxu0 0.0
        %2100 = vmatprep.subr.mxu0 0.0
        %2101 = vmatpush1.msra.mxu0 0.0
        %2102 = vmatprep.subr.mxu0 0.0
        %2103 = vmatpush1.msra.mxu0 0.0
        %2104 = vmatprep.subr.mxu0 0.0
        %2105 = vmatpush1.msra.mxu0 0.0
        %2106 = vmatprep.subr.mxu0 0.0
        %2107 = vmatpush1.msra.mxu0 0.0
        %2108 = vmatprep.subr.mxu0 0.0
        %2109 = vmatpush1.msra.mxu0 0.0
        %2110 = vmatprep.subr.mxu0 0.0
        %2111 = vmatpush1.msra.mxu0 0.0
        %2112 = vmatprep.subr.mxu0 0.0
        %2113 = vmatpush1.msra.mxu0 %v2081
        %2114 = vmatprep.subr.mxu0 0.0
        %2115 = vmatpush1.msra.mxu0 %v2080
        %2116 = vmatprep.subr.mxu0 0.0
        %2117 = vmatpush2.msra.mxu0 0.0
        %2118 = vmatprep.subr.mxu0 0.0
        %2119 = vmatpush2.msra.mxu0 0.0
        %2120 = vmatprep.subr.mxu0 0.0
        %2121 = vmatpush2.msra.mxu0 0.0
        %2122 = vmatprep.subr.mxu0 0.0
        %2123 = vmatpush2.msra.mxu0 0.0
        %2124 = vmatprep.subr.mxu0 0.0
        %2125 = vmatpush2.msra.mxu0 0.0
        %2126 = vmatprep.subr.mxu0 0.0
        %2127 = vmatpush2.msra.mxu0 0.0
        %2128 = vmatprep.subr.mxu0 0.0
        %2129 = vmatpush2.msra.mxu0 0.0
        %2130 = vmatprep.subr.mxu0 0.0
        %2131 = vmatpush2.msra.mxu0 0.0
        %2132 = vmatprep.subr.mxu0 0.0
        %2133 = vmatpush2.msra.mxu0 0.0
        %2134 = vmatprep.subr.mxu0 0.0
        %2135 = vmatpush2.msra.mxu0 0.0
        %2136 = vmatprep.subr.mxu0 0.0
        %2137 = vmatpush2.msra.mxu0 0.0
        %2138 = vmatprep.subr.mxu0 0.0
        %2139 = vmatpush2.msra.mxu0 0.0
        %2140 = vmatprep.subr.mxu0 0.0
        %2141 = vmatpush2.msra.mxu0 0.0
        %2142 = vmatprep.subr.mxu0 0.0
        %2143 = vmatpush2.msra.mxu0 0.0
        %2144 = vmatprep.subr.mxu0 0.0
        %2145 = vmatpush2.msra.mxu0 0.0
        %2146 = vmatprep.subr.mxu0 0.0
        %2147 = vmatpush2.msra.mxu0 0.0
        %2148 = vmatprep.mubr.f32.mxu0 0.0
        %2149 = vmatmul.mubr.f32.gmra.mxu0 %v263
        %v2150 = vpop.f32.mrf.mxu0
        %v2151 = vadd.f32 0.0, %v2150
        %v2152 = vpop.f32.mrf.mxu0
        %2153 = vdwg.mxu0
        %2154 = vmatprep.subr.mxu0 0.0
        %2155 = vmatpush1.msra.mxu0 0.0
        %2156 = vmatprep.subr.mxu0 0.0
        %2157 = vmatpush1.msra.mxu0 0.0
        %2158 = vmatprep.subr.mxu0 0.0
        %2159 = vmatpush1.msra.mxu0 0.0
        %2160 = vmatprep.subr.mxu0 0.0
        %2161 = vmatpush1.msra.mxu0 0.0
        %2162 = vmatprep.subr.mxu0 0.0
        %2163 = vmatpush1.msra.mxu0 0.0
        %2164 = vmatprep.subr.mxu0 0.0
        %2165 = vmatpush1.msra.mxu0 0.0
        %2166 = vmatprep.subr.mxu0 0.0
        %2167 = vmatpush1.msra.mxu0 0.0
        %2168 = vmatprep.subr.mxu0 0.0
        %2169 = vmatpush1.msra.mxu0 0.0
        %2170 = vmatprep.subr.mxu0 0.0
        %2171 = vmatpush1.msra.mxu0 0.0
        %2172 = vmatprep.subr.mxu0 0.0
        %2173 = vmatpush1.msra.mxu0 0.0
        %2174 = vmatprep.subr.mxu0 0.0
        %2175 = vmatpush1.msra.mxu0 0.0
        %2176 = vmatprep.subr.mxu0 0.0
        %2177 = vmatpush1.msra.mxu0 0.0
        %2178 = vmatprep.subr.mxu0 0.0
        %2179 = vmatpush1.msra.mxu0 0.0
        %2180 = vmatprep.subr.mxu0 0.0
        %2181 = vmatpush1.msra.mxu0 0.0
        %2182 = vmatprep.subr.mxu0 0.0
        %2183 = vmatpush1.msra.mxu0 %v2083
        %2184 = vmatprep.subr.mxu0 0.0
        %2185 = vmatpush1.msra.mxu0 %v2082
        %2186 = vmatprep.subr.mxu0 0.0
        %2187 = vmatpush2.msra.mxu0 0.0
        %2188 = vmatprep.subr.mxu0 0.0
        %2189 = vmatpush2.msra.mxu0 0.0
        %2190 = vmatprep.subr.mxu0 0.0
        %2191 = vmatpush2.msra.mxu0 0.0
        %2192 = vmatprep.subr.mxu0 0.0
        %2193 = vmatpush2.msra.mxu0 0.0
        %2194 = vmatprep.subr.mxu0 0.0
        %2195 = vmatpush2.msra.mxu0 0.0
        %2196 = vmatprep.subr.mxu0 0.0
        %2197 = vmatpush2.msra.mxu0 0.0
        %2198 = vmatprep.subr.mxu0 0.0
        %2199 = vmatpush2.msra.mxu0 0.0
        %2200 = vmatprep.subr.mxu0 0.0
        %2201 = vmatpush2.msra.mxu0 0.0
        %2202 = vmatprep.subr.mxu0 0.0
        %2203 = vmatpush2.msra.mxu0 0.0
        %2204 = vmatprep.subr.mxu0 0.0
        %2205 = vmatpush2.msra.mxu0 0.0
        %2206 = vmatprep.subr.mxu0 0.0
        %2207 = vmatpush2.msra.mxu0 0.0
        %2208 = vmatprep.subr.mxu0 0.0
        %2209 = vmatpush2.msra.mxu0 0.0
        %2210 = vmatprep.subr.mxu0 0.0
        %2211 = vmatpush2.msra.mxu0 0.0
        %2212 = vmatprep.subr.mxu0 0.0
        %2213 = vmatpush2.msra.mxu0 0.0
        %2214 = vmatprep.subr.mxu0 0.0
        %2215 = vmatpush2.msra.mxu0 0.0
        %2216 = vmatprep.subr.mxu0 0.0
        %2217 = vmatpush2.msra.mxu0 0.0
        %2218 = vmatprep.mubr.f32.mxu0 0.0
        %2219 = vmatmul.mubr.f32.gmra.mxu0 %v263
        %v2220 = vpop.f32.mrf.mxu0
        %v2221 = vadd.f32 0.0, %v2220
        %v2222 = vpop.f32.mrf.mxu0
        %2223 = vdwg.mxu0
        %v2225 = vsel %vm261, %v2221, 0
        %2227 = vmatprep.subr.mxu0 0.0
        %2228 = vmatpush1.msra.mxu0 0.0
        %2229 = vmatprep.subr.mxu0 0.0
        %2230 = vmatpush1.msra.mxu0 0.0
        %2231 = vmatprep.subr.mxu0 0.0
        %2232 = vmatpush1.msra.mxu0 0.0
        %2233 = vmatprep.subr.mxu0 0.0
        %2234 = vmatpush1.msra.mxu0 0.0
        %2235 = vmatprep.subr.mxu0 0.0
        %2236 = vmatpush1.msra.mxu0 0.0
        %2237 = vmatprep.subr.mxu0 0.0
        %2238 = vmatpush1.msra.mxu0 0.0
        %2239 = vmatprep.subr.mxu0 0.0
        %2240 = vmatpush1.msra.mxu0 0.0
        %2241 = vmatprep.subr.mxu0 0.0
        %2242 = vmatpush1.msra.mxu0 0.0
        %2243 = vmatprep.subr.mxu0 0.0
        %2244 = vmatpush1.msra.mxu0 0.0
        %2245 = vmatprep.subr.mxu0 0.0
        %2246 = vmatpush1.msra.mxu0 0.0
        %2247 = vmatprep.subr.mxu0 0.0
        %2248 = vmatpush1.msra.mxu0 0.0
        %2249 = vmatprep.subr.mxu0 0.0
        %2250 = vmatpush1.msra.mxu0 0.0
        %2251 = vmatprep.subr.mxu0 0.0
        %2252 = vmatpush1.msra.mxu0 0.0
        %2253 = vmatprep.subr.mxu0 0.0
        %2254 = vmatpush1.msra.mxu0 0.0
        %2255 = vmatprep.subr.mxu0 0.0
        %2256 = vmatpush1.msra.mxu0 %v248
        %2257 = vmatprep.subr.mxu0 0.0
        %2258 = vmatpush1.msra.mxu0 %v247
        %2259 = vmatprep.subr.mxu0 0.0
        %2260 = vmatpush2.msra.mxu0 0.0
        %2261 = vmatprep.subr.mxu0 0.0
        %2262 = vmatpush2.msra.mxu0 0.0
        %2263 = vmatprep.subr.mxu0 0.0
        %2264 = vmatpush2.msra.mxu0 0.0
        %2265 = vmatprep.subr.mxu0 0.0
        %2266 = vmatpush2.msra.mxu0 0.0
        %2267 = vmatprep.subr.mxu0 0.0
        %2268 = vmatpush2.msra.mxu0 0.0
        %2269 = vmatprep.subr.mxu0 0.0
        %2270 = vmatpush2.msra.mxu0 0.0
        %2271 = vmatprep.subr.mxu0 0.0
        %2272 = vmatpush2.msra.mxu0 0.0
        %2273 = vmatprep.subr.mxu0 0.0
        %2274 = vmatpush2.msra.mxu0 0.0
        %2275 = vmatprep.subr.mxu0 0.0
        %2276 = vmatpush2.msra.mxu0 0.0
        %2277 = vmatprep.subr.mxu0 0.0
        %2278 = vmatpush2.msra.mxu0 0.0
        %2279 = vmatprep.subr.mxu0 0.0
        %2280 = vmatpush2.msra.mxu0 0.0
        %2281 = vmatprep.subr.mxu0 0.0
        %2282 = vmatpush2.msra.mxu0 0.0
        %2283 = vmatprep.subr.mxu0 0.0
        %2284 = vmatpush2.msra.mxu0 0.0
        %2285 = vmatprep.subr.mxu0 0.0
        %2286 = vmatpush2.msra.mxu0 0.0
        %2287 = vmatprep.subr.mxu0 0.0
        %2288 = vmatpush2.msra.mxu0 0.0
        %2289 = vmatprep.subr.mxu0 0.0
        %2290 = vmatpush2.msra.mxu0 0.0
        %2291 = vmatprep.mubr.f32.mxu0 0.0
        %2292 = vmatmul.mubr.f32.gmra.mxu0 %v2225
        %v2293 = vpop.f32.mrf.mxu0
        %v2294 = vadd.f32 0.0, %v2293
        %v2295 = vpop.f32.mrf.mxu0
        %2296 = vdwg.mxu0
        %v2298 = vsel %vm261, %v2151, 0
        %2300 = vmatprep.subr.mxu0 0.0
        %2301 = vmatpush1.msra.mxu0 0.0
        %2302 = vmatprep.subr.mxu0 0.0
        %2303 = vmatpush1.msra.mxu0 0.0
        %2304 = vmatprep.subr.mxu0 0.0
        %2305 = vmatpush1.msra.mxu0 0.0
        %2306 = vmatprep.subr.mxu0 0.0
        %2307 = vmatpush1.msra.mxu0 0.0
        %2308 = vmatprep.subr.mxu0 0.0
        %2309 = vmatpush1.msra.mxu0 0.0
        %2310 = vmatprep.subr.mxu0 0.0
        %2311 = vmatpush1.msra.mxu0 0.0
        %2312 = vmatprep.subr.mxu0 0.0
        %2313 = vmatpush1.msra.mxu0 0.0
        %2314 = vmatprep.subr.mxu0 0.0
        %2315 = vmatpush1.msra.mxu0 0.0
        %2316 = vmatprep.subr.mxu0 0.0
        %2317 = vmatpush1.msra.mxu0 0.0
        %2318 = vmatprep.subr.mxu0 0.0
        %2319 = vmatpush1.msra.mxu0 0.0
        %2320 = vmatprep.subr.mxu0 0.0
        %2321 = vmatpush1.msra.mxu0 0.0
        %2322 = vmatprep.subr.mxu0 0.0
        %2323 = vmatpush1.msra.mxu0 0.0
        %2324 = vmatprep.subr.mxu0 0.0
        %2325 = vmatpush1.msra.mxu0 0.0
        %2326 = vmatprep.subr.mxu0 0.0
        %2327 = vmatpush1.msra.mxu0 0.0
        %2328 = vmatprep.subr.mxu0 0.0
        %2329 = vmatpush1.msra.mxu0 %v248
        %2330 = vmatprep.subr.mxu0 0.0
        %2331 = vmatpush1.msra.mxu0 %v247
        %2332 = vmatprep.subr.mxu0 0.0
        %2333 = vmatpush2.msra.mxu0 0.0
        %2334 = vmatprep.subr.mxu0 0.0
        %2335 = vmatpush2.msra.mxu0 0.0
        %2336 = vmatprep.subr.mxu0 0.0
        %2337 = vmatpush2.msra.mxu0 0.0
        %2338 = vmatprep.subr.mxu0 0.0
        %2339 = vmatpush2.msra.mxu0 0.0
        %2340 = vmatprep.subr.mxu0 0.0
        %2341 = vmatpush2.msra.mxu0 0.0
        %2342 = vmatprep.subr.mxu0 0.0
        %2343 = vmatpush2.msra.mxu0 0.0
        %2344 = vmatprep.subr.mxu0 0.0
        %2345 = vmatpush2.msra.mxu0 0.0
        %2346 = vmatprep.subr.mxu0 0.0
        %2347 = vmatpush2.msra.mxu0 0.0
        %2348 = vmatprep.subr.mxu0 0.0
        %2349 = vmatpush2.msra.mxu0 0.0
        %2350 = vmatprep.subr.mxu0 0.0
        %2351 = vmatpush2.msra.mxu0 0.0
        %2352 = vmatprep.subr.mxu0 0.0
        %2353 = vmatpush2.msra.mxu0 0.0
        %2354 = vmatprep.subr.mxu0 0.0
        %2355 = vmatpush2.msra.mxu0 0.0
        %2356 = vmatprep.subr.mxu0 0.0
        %2357 = vmatpush2.msra.mxu0 0.0
        %2358 = vmatprep.subr.mxu0 0.0
        %2359 = vmatpush2.msra.mxu0 0.0
        %2360 = vmatprep.subr.mxu0 0.0
        %2361 = vmatpush2.msra.mxu0 0.0
        %2362 = vmatprep.subr.mxu0 0.0
        %2363 = vmatpush2.msra.mxu0 0.0
        %2364 = vmatprep.mubr.f32.mxu0 0.0
        %2365 = vmatmul.mubr.f32.gmra.mxu0 %v2298
        %v2366 = vpop.f32.mrf.mxu0
        %v2367 = vadd.f32 %v2294, %v2366
        %v2368 = vpop.f32.mrf.mxu0
        %2369 = vdwg.mxu0
        %s2370 = sld [smem:[#allocation2 + $0x8]]
        %v2371 = vstv %s2370
        %v2372 = vmul.f32 %v2371, %v2367
        %v2373 = vadd.f32 %v2067, %v2372
        %s2374 = sld [smem:[#allocation2 + $0x14]]
        %v2375 = vstv %s2374
        %v2376 = vmul.f32 %v2375, %v2367
        %v2377 = vadd.f32 %v2071, %v2376
        %s2378 = sld [smem:[#allocation2 + $0x20]]
        %v2379 = vstv %s2378
        %v2380 = vmul.f32 %v2379, %v2367
        %v2381 = vadd.f32 %v2075, %v2380
        %2382 = vmatprep.subr.mxu0 0.0
        %2383 = vmatpush1.msra.mxu0 0.0
        %2384 = vmatprep.subr.mxu0 0.0
        %2385 = vmatpush1.msra.mxu0 0.0
        %2386 = vmatprep.subr.mxu0 0.0
        %2387 = vmatpush1.msra.mxu0 0.0
        %2388 = vmatprep.subr.mxu0 0.0
        %2389 = vmatpush1.msra.mxu0 0.0
        %2390 = vmatprep.subr.mxu0 0.0
        %2391 = vmatpush1.msra.mxu0 0.0
        %2392 = vmatprep.subr.mxu0 0.0
        %2393 = vmatpush1.msra.mxu0 0.0
        %2394 = vmatprep.subr.mxu0 0.0
        %2395 = vmatpush1.msra.mxu0 0.0
        %2396 = vmatprep.subr.mxu0 0.0
        %2397 = vmatpush1.msra.mxu0 0.0
        %2398 = vmatprep.subr.mxu0 0.0
        %2399 = vmatpush1.msra.mxu0 0.0
        %2400 = vmatprep.subr.mxu0 0.0
        %2401 = vmatpush1.msra.mxu0 0.0
        %2402 = vmatprep.subr.mxu0 0.0
        %2403 = vmatpush1.msra.mxu0 0.0
        %2404 = vmatprep.subr.mxu0 0.0
        %2405 = vmatpush1.msra.mxu0 0.0
        %2406 = vmatprep.subr.mxu0 0.0
        %2407 = vmatpush1.msra.mxu0 0.0
        %2408 = vmatprep.subr.mxu0 0.0
        %2409 = vmatpush1.msra.mxu0 0.0
        %2410 = vmatprep.subr.mxu0 0.0
        %2411 = vmatpush1.msra.mxu0 %v253
        %2412 = vmatprep.subr.mxu0 0.0
        %2413 = vmatpush1.msra.mxu0 %v252
        %2414 = vmatprep.subr.mxu0 0.0
        %2415 = vmatpush2.msra.mxu0 0.0
        %2416 = vmatprep.subr.mxu0 0.0
        %2417 = vmatpush2.msra.mxu0 0.0
        %2418 = vmatprep.subr.mxu0 0.0
        %2419 = vmatpush2.msra.mxu0 0.0
        %2420 = vmatprep.subr.mxu0 0.0
        %2421 = vmatpush2.msra.mxu0 0.0
        %2422 = vmatprep.subr.mxu0 0.0
        %2423 = vmatpush2.msra.mxu0 0.0
        %2424 = vmatprep.subr.mxu0 0.0
        %2425 = vmatpush2.msra.mxu0 0.0
        %2426 = vmatprep.subr.mxu0 0.0
        %2427 = vmatpush2.msra.mxu0 0.0
        %2428 = vmatprep.subr.mxu0 0.0
        %2429 = vmatpush2.msra.mxu0 0.0
        %2430 = vmatprep.subr.mxu0 0.0
        %2431 = vmatpush2.msra.mxu0 0.0
        %2432 = vmatprep.subr.mxu0 0.0
        %2433 = vmatpush2.msra.mxu0 0.0
        %2434 = vmatprep.subr.mxu0 0.0
        %2435 = vmatpush2.msra.mxu0 0.0
        %2436 = vmatprep.subr.mxu0 0.0
        %2437 = vmatpush2.msra.mxu0 0.0
        %2438 = vmatprep.subr.mxu0 0.0
        %2439 = vmatpush2.msra.mxu0 0.0
        %2440 = vmatprep.subr.mxu0 0.0
        %2441 = vmatpush2.msra.mxu0 0.0
        %2442 = vmatprep.subr.mxu0 0.0
        %2443 = vmatpush2.msra.mxu0 0.0
        %2444 = vmatprep.subr.mxu0 0.0
        %2445 = vmatpush2.msra.mxu0 0.0
        %2446 = vmatprep.mubr.f32.mxu0 0.0
        %2447 = vmatmul.mubr.f32.gmra.mxu0 %v2225
        %v2448 = vpop.f32.mrf.mxu0
        %v2449 = vadd.f32 0.0, %v2448
        %v2450 = vpop.f32.mrf.mxu0
        %2451 = vdwg.mxu0
        %2452 = vmatprep.subr.mxu0 0.0
        %2453 = vmatpush1.msra.mxu0 0.0
        %2454 = vmatprep.subr.mxu0 0.0
        %2455 = vmatpush1.msra.mxu0 0.0
        %2456 = vmatprep.subr.mxu0 0.0
        %2457 = vmatpush1.msra.mxu0 0.0
        %2458 = vmatprep.subr.mxu0 0.0
        %2459 = vmatpush1.msra.mxu0 0.0
        %2460 = vmatprep.subr.mxu0 0.0
        %2461 = vmatpush1.msra.mxu0 0.0
        %2462 = vmatprep.subr.mxu0 0.0
        %2463 = vmatpush1.msra.mxu0 0.0
        %2464 = vmatprep.subr.mxu0 0.0
        %2465 = vmatpush1.msra.mxu0 0.0
        %2466 = vmatprep.subr.mxu0 0.0
        %2467 = vmatpush1.msra.mxu0 0.0
        %2468 = vmatprep.subr.mxu0 0.0
        %2469 = vmatpush1.msra.mxu0 0.0
        %2470 = vmatprep.subr.mxu0 0.0
        %2471 = vmatpush1.msra.mxu0 0.0
        %2472 = vmatprep.subr.mxu0 0.0
        %2473 = vmatpush1.msra.mxu0 0.0
        %2474 = vmatprep.subr.mxu0 0.0
        %2475 = vmatpush1.msra.mxu0 0.0
        %2476 = vmatprep.subr.mxu0 0.0
        %2477 = vmatpush1.msra.mxu0 0.0
        %2478 = vmatprep.subr.mxu0 0.0
        %2479 = vmatpush1.msra.mxu0 0.0
        %2480 = vmatprep.subr.mxu0 0.0
        %2481 = vmatpush1.msra.mxu0 %v253
        %2482 = vmatprep.subr.mxu0 0.0
        %2483 = vmatpush1.msra.mxu0 %v252
        %2484 = vmatprep.subr.mxu0 0.0
        %2485 = vmatpush2.msra.mxu0 0.0
        %2486 = vmatprep.subr.mxu0 0.0
        %2487 = vmatpush2.msra.mxu0 0.0
        %2488 = vmatprep.subr.mxu0 0.0
        %2489 = vmatpush2.msra.mxu0 0.0
        %2490 = vmatprep.subr.mxu0 0.0
        %2491 = vmatpush2.msra.mxu0 0.0
        %2492 = vmatprep.subr.mxu0 0.0
        %2493 = vmatpush2.msra.mxu0 0.0
        %2494 = vmatprep.subr.mxu0 0.0
        %2495 = vmatpush2.msra.mxu0 0.0
        %2496 = vmatprep.subr.mxu0 0.0
        %2497 = vmatpush2.msra.mxu0 0.0
        %2498 = vmatprep.subr.mxu0 0.0
        %2499 = vmatpush2.msra.mxu0 0.0
        %2500 = vmatprep.subr.mxu0 0.0
        %2501 = vmatpush2.msra.mxu0 0.0
        %2502 = vmatprep.subr.mxu0 0.0
        %2503 = vmatpush2.msra.mxu0 0.0
        %2504 = vmatprep.subr.mxu0 0.0
        %2505 = vmatpush2.msra.mxu0 0.0
        %2506 = vmatprep.subr.mxu0 0.0
        %2507 = vmatpush2.msra.mxu0 0.0
        %2508 = vmatprep.subr.mxu0 0.0
        %2509 = vmatpush2.msra.mxu0 0.0
        %2510 = vmatprep.subr.mxu0 0.0
        %2511 = vmatpush2.msra.mxu0 0.0
        %2512 = vmatprep.subr.mxu0 0.0
        %2513 = vmatpush2.msra.mxu0 0.0
        %2514 = vmatprep.subr.mxu0 0.0
        %2515 = vmatpush2.msra.mxu0 0.0
        %2516 = vmatprep.mubr.f32.mxu0 0.0
        %2517 = vmatmul.mubr.f32.gmra.mxu0 %v2298
        %v2518 = vpop.f32.mrf.mxu0
        %v2519 = vadd.f32 %v2449, %v2518
        %v2520 = vpop.f32.mrf.mxu0
        %2521 = vdwg.mxu0
        %s2522 = sld [smem:[#allocation2 + $0x9]]
        %v2523 = vstv %s2522
        %v2524 = vmul.f32 %v2523, %v2519
        %v2525 = vadd.f32 %v2373, %v2524
        %s2526 = sld [smem:[#allocation2 + $0x15]]
        %v2527 = vstv %s2526
        %v2528 = vmul.f32 %v2527, %v2519
        %v2529 = vadd.f32 %v2377, %v2528
        %s2530 = sld [smem:[#allocation2 + $0x21]]
        %v2531 = vstv %s2530
        %v2532 = vmul.f32 %v2531, %v2519
        %v2533 = vadd.f32 %v2381, %v2532
        %2534 = vmatprep.subr.mxu0 0.0
        %2535 = vmatpush1.msra.mxu0 0.0
        %2536 = vmatprep.subr.mxu0 0.0
        %2537 = vmatpush1.msra.mxu0 0.0
        %2538 = vmatprep.subr.mxu0 0.0
        %2539 = vmatpush1.msra.mxu0 0.0
        %2540 = vmatprep.subr.mxu0 0.0
        %2541 = vmatpush1.msra.mxu0 0.0
        %2542 = vmatprep.subr.mxu0 0.0
        %2543 = vmatpush1.msra.mxu0 0.0
        %2544 = vmatprep.subr.mxu0 0.0
        %2545 = vmatpush1.msra.mxu0 0.0
        %2546 = vmatprep.subr.mxu0 0.0
        %2547 = vmatpush1.msra.mxu0 0.0
        %2548 = vmatprep.subr.mxu0 0.0
        %2549 = vmatpush1.msra.mxu0 0.0
        %2550 = vmatprep.subr.mxu0 0.0
        %2551 = vmatpush1.msra.mxu0 0.0
        %2552 = vmatprep.subr.mxu0 0.0
        %2553 = vmatpush1.msra.mxu0 0.0
        %2554 = vmatprep.subr.mxu0 0.0
        %2555 = vmatpush1.msra.mxu0 0.0
        %2556 = vmatprep.subr.mxu0 0.0
        %2557 = vmatpush1.msra.mxu0 0.0
        %2558 = vmatprep.subr.mxu0 0.0
        %2559 = vmatpush1.msra.mxu0 0.0
        %2560 = vmatprep.subr.mxu0 0.0
        %2561 = vmatpush1.msra.mxu0 0.0
        %2562 = vmatprep.subr.mxu0 0.0
        %2563 = vmatpush1.msra.mxu0 %v2081
        %2564 = vmatprep.subr.mxu0 0.0
        %2565 = vmatpush1.msra.mxu0 %v2080
        %2566 = vmatprep.subr.mxu0 0.0
        %2567 = vmatpush2.msra.mxu0 0.0
        %2568 = vmatprep.subr.mxu0 0.0
        %2569 = vmatpush2.msra.mxu0 0.0
        %2570 = vmatprep.subr.mxu0 0.0
        %2571 = vmatpush2.msra.mxu0 0.0
        %2572 = vmatprep.subr.mxu0 0.0
        %2573 = vmatpush2.msra.mxu0 0.0
        %2574 = vmatprep.subr.mxu0 0.0
        %2575 = vmatpush2.msra.mxu0 0.0
        %2576 = vmatprep.subr.mxu0 0.0
        %2577 = vmatpush2.msra.mxu0 0.0
        %2578 = vmatprep.subr.mxu0 0.0
        %2579 = vmatpush2.msra.mxu0 0.0
        %2580 = vmatprep.subr.mxu0 0.0
        %2581 = vmatpush2.msra.mxu0 0.0
        %2582 = vmatprep.subr.mxu0 0.0
        %2583 = vmatpush2.msra.mxu0 0.0
        %2584 = vmatprep.subr.mxu0 0.0
        %2585 = vmatpush2.msra.mxu0 0.0
        %2586 = vmatprep.subr.mxu0 0.0
        %2587 = vmatpush2.msra.mxu0 0.0
        %2588 = vmatprep.subr.mxu0 0.0
        %2589 = vmatpush2.msra.mxu0 0.0
        %2590 = vmatprep.subr.mxu0 0.0
        %2591 = vmatpush2.msra.mxu0 0.0
        %2592 = vmatprep.subr.mxu0 0.0
        %2593 = vmatpush2.msra.mxu0 0.0
        %2594 = vmatprep.subr.mxu0 0.0
        %2595 = vmatpush2.msra.mxu0 0.0
        %2596 = vmatprep.subr.mxu0 0.0
        %2597 = vmatpush2.msra.mxu0 0.0
        %2598 = vmatprep.mubr.f32.mxu0 0.0
        %2599 = vmatmul.mubr.f32.gmra.mxu0 %v716
        %v2600 = vpop.f32.mrf.mxu0
        %v2601 = vadd.f32 0.0, %v2600
        %v2602 = vpop.f32.mrf.mxu0
        %2603 = vdwg.mxu0
        %2604 = vmatprep.subr.mxu0 0.0
        %2605 = vmatpush1.msra.mxu0 0.0
        %2606 = vmatprep.subr.mxu0 0.0
        %2607 = vmatpush1.msra.mxu0 0.0
        %2608 = vmatprep.subr.mxu0 0.0
        %2609 = vmatpush1.msra.mxu0 0.0
        %2610 = vmatprep.subr.mxu0 0.0
        %2611 = vmatpush1.msra.mxu0 0.0
        %2612 = vmatprep.subr.mxu0 0.0
        %2613 = vmatpush1.msra.mxu0 0.0
        %2614 = vmatprep.subr.mxu0 0.0
        %2615 = vmatpush1.msra.mxu0 0.0
        %2616 = vmatprep.subr.mxu0 0.0
        %2617 = vmatpush1.msra.mxu0 0.0
        %2618 = vmatprep.subr.mxu0 0.0
        %2619 = vmatpush1.msra.mxu0 0.0
        %2620 = vmatprep.subr.mxu0 0.0
        %2621 = vmatpush1.msra.mxu0 0.0
        %2622 = vmatprep.subr.mxu0 0.0
        %2623 = vmatpush1.msra.mxu0 0.0
        %2624 = vmatprep.subr.mxu0 0.0
        %2625 = vmatpush1.msra.mxu0 0.0
        %2626 = vmatprep.subr.mxu0 0.0
        %2627 = vmatpush1.msra.mxu0 0.0
        %2628 = vmatprep.subr.mxu0 0.0
        %2629 = vmatpush1.msra.mxu0 0.0
        %2630 = vmatprep.subr.mxu0 0.0
        %2631 = vmatpush1.msra.mxu0 0.0
        %2632 = vmatprep.subr.mxu0 0.0
        %2633 = vmatpush1.msra.mxu0 %v2083
        %2634 = vmatprep.subr.mxu0 0.0
        %2635 = vmatpush1.msra.mxu0 %v2082
        %2636 = vmatprep.subr.mxu0 0.0
        %2637 = vmatpush2.msra.mxu0 0.0
        %2638 = vmatprep.subr.mxu0 0.0
        %2639 = vmatpush2.msra.mxu0 0.0
        %2640 = vmatprep.subr.mxu0 0.0
        %2641 = vmatpush2.msra.mxu0 0.0
        %2642 = vmatprep.subr.mxu0 0.0
        %2643 = vmatpush2.msra.mxu0 0.0
        %2644 = vmatprep.subr.mxu0 0.0
        %2645 = vmatpush2.msra.mxu0 0.0
        %2646 = vmatprep.subr.mxu0 0.0
        %2647 = vmatpush2.msra.mxu0 0.0
        %2648 = vmatprep.subr.mxu0 0.0
        %2649 = vmatpush2.msra.mxu0 0.0
        %2650 = vmatprep.subr.mxu0 0.0
        %2651 = vmatpush2.msra.mxu0 0.0
        %2652 = vmatprep.subr.mxu0 0.0
        %2653 = vmatpush2.msra.mxu0 0.0
        %2654 = vmatprep.subr.mxu0 0.0
        %2655 = vmatpush2.msra.mxu0 0.0
        %2656 = vmatprep.subr.mxu0 0.0
        %2657 = vmatpush2.msra.mxu0 0.0
        %2658 = vmatprep.subr.mxu0 0.0
        %2659 = vmatpush2.msra.mxu0 0.0
        %2660 = vmatprep.subr.mxu0 0.0
        %2661 = vmatpush2.msra.mxu0 0.0
        %2662 = vmatprep.subr.mxu0 0.0
        %2663 = vmatpush2.msra.mxu0 0.0
        %2664 = vmatprep.subr.mxu0 0.0
        %2665 = vmatpush2.msra.mxu0 0.0
        %2666 = vmatprep.subr.mxu0 0.0
        %2667 = vmatpush2.msra.mxu0 0.0
        %2668 = vmatprep.mubr.f32.mxu0 0.0
        %2669 = vmatmul.mubr.f32.gmra.mxu0 %v716
        %v2670 = vpop.f32.mrf.mxu0
        %v2671 = vadd.f32 0.0, %v2670
        %v2672 = vpop.f32.mrf.mxu0
        %2673 = vdwg.mxu0
        %v2675 = vsel %vm261, %v2671, 0
        %2677 = vmatprep.subr.mxu0 0.0
        %2678 = vmatpush1.msra.mxu0 0.0
        %2679 = vmatprep.subr.mxu0 0.0
        %2680 = vmatpush1.msra.mxu0 0.0
        %2681 = vmatprep.subr.mxu0 0.0
        %2682 = vmatpush1.msra.mxu0 0.0
        %2683 = vmatprep.subr.mxu0 0.0
        %2684 = vmatpush1.msra.mxu0 0.0
        %2685 = vmatprep.subr.mxu0 0.0
        %2686 = vmatpush1.msra.mxu0 0.0
        %2687 = vmatprep.subr.mxu0 0.0
        %2688 = vmatpush1.msra.mxu0 0.0
        %2689 = vmatprep.subr.mxu0 0.0
        %2690 = vmatpush1.msra.mxu0 0.0
        %2691 = vmatprep.subr.mxu0 0.0
        %2692 = vmatpush1.msra.mxu0 0.0
        %2693 = vmatprep.subr.mxu0 0.0
        %2694 = vmatpush1.msra.mxu0 0.0
        %2695 = vmatprep.subr.mxu0 0.0
        %2696 = vmatpush1.msra.mxu0 0.0
        %2697 = vmatprep.subr.mxu0 0.0
        %2698 = vmatpush1.msra.mxu0 0.0
        %2699 = vmatprep.subr.mxu0 0.0
        %2700 = vmatpush1.msra.mxu0 0.0
        %2701 = vmatprep.subr.mxu0 0.0
        %2702 = vmatpush1.msra.mxu0 0.0
        %2703 = vmatprep.subr.mxu0 0.0
        %2704 = vmatpush1.msra.mxu0 0.0
        %2705 = vmatprep.subr.mxu0 0.0
        %2706 = vmatpush1.msra.mxu0 %v248
        %2707 = vmatprep.subr.mxu0 0.0
        %2708 = vmatpush1.msra.mxu0 %v247
        %2709 = vmatprep.subr.mxu0 0.0
        %2710 = vmatpush2.msra.mxu0 0.0
        %2711 = vmatprep.subr.mxu0 0.0
        %2712 = vmatpush2.msra.mxu0 0.0
        %2713 = vmatprep.subr.mxu0 0.0
        %2714 = vmatpush2.msra.mxu0 0.0
        %2715 = vmatprep.subr.mxu0 0.0
        %2716 = vmatpush2.msra.mxu0 0.0
        %2717 = vmatprep.subr.mxu0 0.0
        %2718 = vmatpush2.msra.mxu0 0.0
        %2719 = vmatprep.subr.mxu0 0.0
        %2720 = vmatpush2.msra.mxu0 0.0
        %2721 = vmatprep.subr.mxu0 0.0
        %2722 = vmatpush2.msra.mxu0 0.0
        %2723 = vmatprep.subr.mxu0 0.0
        %2724 = vmatpush2.msra.mxu0 0.0
        %2725 = vmatprep.subr.mxu0 0.0
        %2726 = vmatpush2.msra.mxu0 0.0
        %2727 = vmatprep.subr.mxu0 0.0
        %2728 = vmatpush2.msra.mxu0 0.0
        %2729 = vmatprep.subr.mxu0 0.0
        %2730 = vmatpush2.msra.mxu0 0.0
        %2731 = vmatprep.subr.mxu0 0.0
        %2732 = vmatpush2.msra.mxu0 0.0
        %2733 = vmatprep.subr.mxu0 0.0
        %2734 = vmatpush2.msra.mxu0 0.0
        %2735 = vmatprep.subr.mxu0 0.0
        %2736 = vmatpush2.msra.mxu0 0.0
        %2737 = vmatprep.subr.mxu0 0.0
        %2738 = vmatpush2.msra.mxu0 0.0
        %2739 = vmatprep.subr.mxu0 0.0
        %2740 = vmatpush2.msra.mxu0 0.0
        %2741 = vmatprep.mubr.f32.mxu0 0.0
        %2742 = vmatmul.mubr.f32.gmra.mxu0 %v2675
        %v2743 = vpop.f32.mrf.mxu0
        %v2744 = vadd.f32 0.0, %v2743
        %v2745 = vpop.f32.mrf.mxu0
        %2746 = vdwg.mxu0
        %v2748 = vsel %vm261, %v2601, 0
        %2750 = vmatprep.subr.mxu0 0.0
        %2751 = vmatpush1.msra.mxu0 0.0
        %2752 = vmatprep.subr.mxu0 0.0
        %2753 = vmatpush1.msra.mxu0 0.0
        %2754 = vmatprep.subr.mxu0 0.0
        %2755 = vmatpush1.msra.mxu0 0.0
        %2756 = vmatprep.subr.mxu0 0.0
        %2757 = vmatpush1.msra.mxu0 0.0
        %2758 = vmatprep.subr.mxu0 0.0
        %2759 = vmatpush1.msra.mxu0 0.0
        %2760 = vmatprep.subr.mxu0 0.0
        %2761 = vmatpush1.msra.mxu0 0.0
        %2762 = vmatprep.subr.mxu0 0.0
        %2763 = vmatpush1.msra.mxu0 0.0
        %2764 = vmatprep.subr.mxu0 0.0
        %2765 = vmatpush1.msra.mxu0 0.0
        %2766 = vmatprep.subr.mxu0 0.0
        %2767 = vmatpush1.msra.mxu0 0.0
        %2768 = vmatprep.subr.mxu0 0.0
        %2769 = vmatpush1.msra.mxu0 0.0
        %2770 = vmatprep.subr.mxu0 0.0
        %2771 = vmatpush1.msra.mxu0 0.0
        %2772 = vmatprep.subr.mxu0 0.0
        %2773 = vmatpush1.msra.mxu0 0.0
        %2774 = vmatprep.subr.mxu0 0.0
        %2775 = vmatpush1.msra.mxu0 0.0
        %2776 = vmatprep.subr.mxu0 0.0
        %2777 = vmatpush1.msra.mxu0 0.0
        %2778 = vmatprep.subr.mxu0 0.0
        %2779 = vmatpush1.msra.mxu0 %v248
        %2780 = vmatprep.subr.mxu0 0.0
        %2781 = vmatpush1.msra.mxu0 %v247
        %2782 = vmatprep.subr.mxu0 0.0
        %2783 = vmatpush2.msra.mxu0 0.0
        %2784 = vmatprep.subr.mxu0 0.0
        %2785 = vmatpush2.msra.mxu0 0.0
        %2786 = vmatprep.subr.mxu0 0.0
        %2787 = vmatpush2.msra.mxu0 0.0
        %2788 = vmatprep.subr.mxu0 0.0
        %2789 = vmatpush2.msra.mxu0 0.0
        %2790 = vmatprep.subr.mxu0 0.0
        %2791 = vmatpush2.msra.mxu0 0.0
        %2792 = vmatprep.subr.mxu0 0.0
        %2793 = vmatpush2.msra.mxu0 0.0
        %2794 = vmatprep.subr.mxu0 0.0
        %2795 = vmatpush2.msra.mxu0 0.0
        %2796 = vmatprep.subr.mxu0 0.0
        %2797 = vmatpush2.msra.mxu0 0.0
        %2798 = vmatprep.subr.mxu0 0.0
        %2799 = vmatpush2.msra.mxu0 0.0
        %2800 = vmatprep.subr.mxu0 0.0
        %2801 = vmatpush2.msra.mxu0 0.0
        %2802 = vmatprep.subr.mxu0 0.0
        %2803 = vmatpush2.msra.mxu0 0.0
        %2804 = vmatprep.subr.mxu0 0.0
        %2805 = vmatpush2.msra.mxu0 0.0
        %2806 = vmatprep.subr.mxu0 0.0
        %2807 = vmatpush2.msra.mxu0 0.0
        %2808 = vmatprep.subr.mxu0 0.0
        %2809 = vmatpush2.msra.mxu0 0.0
        %2810 = vmatprep.subr.mxu0 0.0
        %2811 = vmatpush2.msra.mxu0 0.0
        %2812 = vmatprep.subr.mxu0 0.0
        %2813 = vmatpush2.msra.mxu0 0.0
        %2814 = vmatprep.mubr.f32.mxu0 0.0
        %2815 = vmatmul.mubr.f32.gmra.mxu0 %v2748
        %v2816 = vpop.f32.mrf.mxu0
        %v2817 = vadd.f32 %v2744, %v2816
        %v2818 = vpop.f32.mrf.mxu0
        %2819 = vdwg.mxu0
        %s2820 = sld [smem:[#allocation2 + $0xa]]
        %v2821 = vstv %s2820
        %v2822 = vmul.f32 %v2821, %v2817
        %v2823 = vadd.f32 %v2525, %v2822
        %s2824 = sld [smem:[#allocation2 + $0x16]]
        %v2825 = vstv %s2824
        %v2826 = vmul.f32 %v2825, %v2817
        %v2827 = vadd.f32 %v2529, %v2826
        %s2828 = sld [smem:[#allocation2 + $0x22]]
        %v2829 = vstv %s2828
        %v2830 = vmul.f32 %v2829, %v2817
        %v2831 = vadd.f32 %v2533, %v2830
        %2832 = vmatprep.subr.mxu0 0.0
        %2833 = vmatpush1.msra.mxu0 0.0
        %2834 = vmatprep.subr.mxu0 0.0
        %2835 = vmatpush1.msra.mxu0 0.0
        %2836 = vmatprep.subr.mxu0 0.0
        %2837 = vmatpush1.msra.mxu0 0.0
        %2838 = vmatprep.subr.mxu0 0.0
        %2839 = vmatpush1.msra.mxu0 0.0
        %2840 = vmatprep.subr.mxu0 0.0
        %2841 = vmatpush1.msra.mxu0 0.0
        %2842 = vmatprep.subr.mxu0 0.0
        %2843 = vmatpush1.msra.mxu0 0.0
        %2844 = vmatprep.subr.mxu0 0.0
        %2845 = vmatpush1.msra.mxu0 0.0
        %2846 = vmatprep.subr.mxu0 0.0
        %2847 = vmatpush1.msra.mxu0 0.0
        %2848 = vmatprep.subr.mxu0 0.0
        %2849 = vmatpush1.msra.mxu0 0.0
        %2850 = vmatprep.subr.mxu0 0.0
        %2851 = vmatpush1.msra.mxu0 0.0
        %2852 = vmatprep.subr.mxu0 0.0
        %2853 = vmatpush1.msra.mxu0 0.0
        %2854 = vmatprep.subr.mxu0 0.0
        %2855 = vmatpush1.msra.mxu0 0.0
        %2856 = vmatprep.subr.mxu0 0.0
        %2857 = vmatpush1.msra.mxu0 0.0
        %2858 = vmatprep.subr.mxu0 0.0
        %2859 = vmatpush1.msra.mxu0 0.0
        %2860 = vmatprep.subr.mxu0 0.0
        %2861 = vmatpush1.msra.mxu0 %v253
        %2862 = vmatprep.subr.mxu0 0.0
        %2863 = vmatpush1.msra.mxu0 %v252
        %2864 = vmatprep.subr.mxu0 0.0
        %2865 = vmatpush2.msra.mxu0 0.0
        %2866 = vmatprep.subr.mxu0 0.0
        %2867 = vmatpush2.msra.mxu0 0.0
        %2868 = vmatprep.subr.mxu0 0.0
        %2869 = vmatpush2.msra.mxu0 0.0
        %2870 = vmatprep.subr.mxu0 0.0
        %2871 = vmatpush2.msra.mxu0 0.0
        %2872 = vmatprep.subr.mxu0 0.0
        %2873 = vmatpush2.msra.mxu0 0.0
        %2874 = vmatprep.subr.mxu0 0.0
        %2875 = vmatpush2.msra.mxu0 0.0
        %2876 = vmatprep.subr.mxu0 0.0
        %2877 = vmatpush2.msra.mxu0 0.0
        %2878 = vmatprep.subr.mxu0 0.0
        %2879 = vmatpush2.msra.mxu0 0.0
        %2880 = vmatprep.subr.mxu0 0.0
        %2881 = vmatpush2.msra.mxu0 0.0
        %2882 = vmatprep.subr.mxu0 0.0
        %2883 = vmatpush2.msra.mxu0 0.0
        %2884 = vmatprep.subr.mxu0 0.0
        %2885 = vmatpush2.msra.mxu0 0.0
        %2886 = vmatprep.subr.mxu0 0.0
        %2887 = vmatpush2.msra.mxu0 0.0
        %2888 = vmatprep.subr.mxu0 0.0
        %2889 = vmatpush2.msra.mxu0 0.0
        %2890 = vmatprep.subr.mxu0 0.0
        %2891 = vmatpush2.msra.mxu0 0.0
        %2892 = vmatprep.subr.mxu0 0.0
        %2893 = vmatpush2.msra.mxu0 0.0
        %2894 = vmatprep.subr.mxu0 0.0
        %2895 = vmatpush2.msra.mxu0 0.0
        %2896 = vmatprep.mubr.f32.mxu0 0.0
        %2897 = vmatmul.mubr.f32.gmra.mxu0 %v2675
        %v2898 = vpop.f32.mrf.mxu0
        %v2899 = vadd.f32 0.0, %v2898
        %v2900 = vpop.f32.mrf.mxu0
        %2901 = vdwg.mxu0
        %2902 = vmatprep.subr.mxu0 0.0
        %2903 = vmatpush1.msra.mxu0 0.0
        %2904 = vmatprep.subr.mxu0 0.0
        %2905 = vmatpush1.msra.mxu0 0.0
        %2906 = vmatprep.subr.mxu0 0.0
        %2907 = vmatpush1.msra.mxu0 0.0
        %2908 = vmatprep.subr.mxu0 0.0
        %2909 = vmatpush1.msra.mxu0 0.0
        %2910 = vmatprep.subr.mxu0 0.0
        %2911 = vmatpush1.msra.mxu0 0.0
        %2912 = vmatprep.subr.mxu0 0.0
        %2913 = vmatpush1.msra.mxu0 0.0
        %2914 = vmatprep.subr.mxu0 0.0
        %2915 = vmatpush1.msra.mxu0 0.0
        %2916 = vmatprep.subr.mxu0 0.0
        %2917 = vmatpush1.msra.mxu0 0.0
        %2918 = vmatprep.subr.mxu0 0.0
        %2919 = vmatpush1.msra.mxu0 0.0
        %2920 = vmatprep.subr.mxu0 0.0
        %2921 = vmatpush1.msra.mxu0 0.0
        %2922 = vmatprep.subr.mxu0 0.0
        %2923 = vmatpush1.msra.mxu0 0.0
        %2924 = vmatprep.subr.mxu0 0.0
        %2925 = vmatpush1.msra.mxu0 0.0
        %2926 = vmatprep.subr.mxu0 0.0
        %2927 = vmatpush1.msra.mxu0 0.0
        %2928 = vmatprep.subr.mxu0 0.0
        %2929 = vmatpush1.msra.mxu0 0.0
        %2930 = vmatprep.subr.mxu0 0.0
        %2931 = vmatpush1.msra.mxu0 %v253
        %2932 = vmatprep.subr.mxu0 0.0
        %2933 = vmatpush1.msra.mxu0 %v252
        %2934 = vmatprep.subr.mxu0 0.0
        %2935 = vmatpush2.msra.mxu0 0.0
        %2936 = vmatprep.subr.mxu0 0.0
        %2937 = vmatpush2.msra.mxu0 0.0
        %2938 = vmatprep.subr.mxu0 0.0
        %2939 = vmatpush2.msra.mxu0 0.0
        %2940 = vmatprep.subr.mxu0 0.0
        %2941 = vmatpush2.msra.mxu0 0.0
        %2942 = vmatprep.subr.mxu0 0.0
        %2943 = vmatpush2.msra.mxu0 0.0
        %2944 = vmatprep.subr.mxu0 0.0
        %2945 = vmatpush2.msra.mxu0 0.0
        %2946 = vmatprep.subr.mxu0 0.0
        %2947 = vmatpush2.msra.mxu0 0.0
        %2948 = vmatprep.subr.mxu0 0.0
        %2949 = vmatpush2.msra.mxu0 0.0
        %2950 = vmatprep.subr.mxu0 0.0
        %2951 = vmatpush2.msra.mxu0 0.0
        %2952 = vmatprep.subr.mxu0 0.0
        %2953 = vmatpush2.msra.mxu0 0.0
        %2954 = vmatprep.subr.mxu0 0.0
        %2955 = vmatpush2.msra.mxu0 0.0
        %2956 = vmatprep.subr.mxu0 0.0
        %2957 = vmatpush2.msra.mxu0 0.0
        %2958 = vmatprep.subr.mxu0 0.0
        %2959 = vmatpush2.msra.mxu0 0.0
        %2960 = vmatprep.subr.mxu0 0.0
        %2961 = vmatpush2.msra.mxu0 0.0
        %2962 = vmatprep.subr.mxu0 0.0
        %2963 = vmatpush2.msra.mxu0 0.0
        %2964 = vmatprep.subr.mxu0 0.0
        %2965 = vmatpush2.msra.mxu0 0.0
        %2966 = vmatprep.mubr.f32.mxu0 0.0
        %2967 = vmatmul.mubr.f32.gmra.mxu0 %v2748
        %v2968 = vpop.f32.mrf.mxu0
        %v2969 = vadd.f32 %v2899, %v2968
        %v2970 = vpop.f32.mrf.mxu0
        %2971 = vdwg.mxu0
        %s2972 = sld [smem:[#allocation2 + $0xb]]
        %v2973 = vstv %s2972
        %v2974 = vmul.f32 %v2973, %v2969
        %v2975 = vadd.f32 %v2823, %v2974
        %s2976 = sld [smem:[#allocation2 + $0x17]]
        %v2977 = vstv %s2976
        %v2978 = vmul.f32 %v2977, %v2969
        %v2979 = vadd.f32 %v2827, %v2978
        %s2980 = sld [smem:[#allocation2 + $0x23]]
        %v2981 = vstv %s2980
        %v2982 = vmul.f32 %v2981, %v2969
        %v2983 = vadd.f32 %v2831, %v2982
        %s2984 = sld [smem:[#allocation7]]
        %v2985 = vstv %s2984
        %v2986 = vadd.f32 %v2975, %v2985
        %vm2987 = vcmask 64512
        %2988 = vst.msk [vmem:[%s231] sm:$0xff] %vm2987, %v2986
        %s2989 = sld [smem:[#allocation7 + $0x1]]
        %v2990 = vstv %s2989
        %v2991 = vadd.f32 %v2979, %v2990
        %s2992 = scalar_lea.vmem %s231, 8 [#allocation9]
        %2993 = vst.msk [vmem:[%s2992] sm:$0xff] %vm2987, %v2991
        %s2994 = sld [smem:[#allocation7 + $0x2]]
        %v2995 = vstv %s2994
        %v2996 = vadd.f32 %v2983, %v2995
        %s2997 = scalar_lea.vmem %s231, 16 [#allocation9]
        %2998 = vst.msk [vmem:[%s2997] sm:$0xff] %vm2987, %v2996
        %s2999 = sand.u32 %s114, 1
        %s3000 = scalar_lea.sflag [#allocation4], %s2999
        %s3001 = sand.u32 %s114, 1
        %s3002 = smul.addr %s3001, 24
        %s3003 = scalar_lea.vmem [#allocation9], %s3002
        // Predicated region
        $region45: #{tpu_custom_call.1} parent=31 // pred_check
          %p3004 = pneg %p124
        $region46: #{tpu_custom_call.1} parent=31 // pred_check_branch
          %3006 = sbr.rel (%p3004) target = $region48
        $region47: #{tpu_custom_call.1} parent=31 // pred_region
          %s3008 = ssub.s32 384, 384
          %3009 = vsyncadd %s3000, %s3008
          %s3010 = smul.addr %s26, 3
          %s3011 = sadd.s32 %s27, %s3010
          %s3012 = smul.addr %s3011, 128
          %s3013 = scalar_lea.hbm %s3, %s3012
          %s3014 = sshll.u32 %s3003, 4
          %s3015 = int_to_ptr.vmem [resolvable:$true] %s3014
          %3020 = dma.vmem_to_hbm [thread:$0]  %s3015, 384, %s3013, %s3000, 128, 128, 8
        $region48: #{tpu_custom_call.1} parent=31 // pred_fallthru
          _
      $region32: #{tpu_custom_call.1} parent=5 // pred_fallthru
        _
      %p3021 = scmp.le.s32.totalorder 2, %s17
      // Predicated region
      $region49: #{tpu_custom_call.1} parent=5 // pred_check
        %p3022 = pneg %p3021
      $region50: #{tpu_custom_call.1} parent=5 // pred_check_branch
        %3024 = sbr.rel (%p3022) target = $region52
      $region51: #{tpu_custom_call.1} parent=5 // pred_region
        %s3025 = ssub.s32 %s17, 2
        // Predicated region
        $region53: #{tpu_custom_call.1} parent=51 // pred_check
          %p3026 = pneg %p130
        $region54: #{tpu_custom_call.1} parent=51 // pred_check_branch
          %3028 = sbr.rel (%p3026) target = $region56
        $region55: #{tpu_custom_call.1} parent=51 // pred_region
          %s3029 = sand.u32 %s115, 1
          %s3030 = scalar_lea.sflag [#allocation4], %s3029
          %s3031 = sand.u32 %s115, 1
          %s3032 = smul.addr %s3031, 24
          %s3033 = scalar_lea.vmem [#allocation9], %s3032
          %3034 = dma.done %s3030, 384
        $region56: #{tpu_custom_call.1} parent=51 // pred_fallthru
          _
      $region52: #{tpu_custom_call.1} parent=5 // pred_fallthru
        _
    $region6: #{tpu_custom_call.1} parent=1 // loop_footer
      %s21 = sadd.s32 1, %s17
    $region7: #{tpu_custom_call.1} parent=1 // loop_footer_branch
      %16 = sbr.rel target = $region3
    $region8: #{tpu_custom_call.1} parent=1 // loop_exit
      _
    %3035 = vsyncpa [#allocation3], 1
    %s3036 = scalar_lea.sflag [#allocation3], 1
    %3037 = vsyncpa %s3036, 1
    %3038 = vsyncpa [#allocation4], 1
    %s3039 = scalar_lea.sflag [#allocation4], 1
    %3040 = vsyncpa %s3039, 1
    %3041 = vsyncpa [#allocation5], 1
    %s3042 = scalar_lea.sflag [#allocation5], 1
    %3043 = vsyncpa %s3042, 1
    %3044 = vsyncpa [#allocation6], 1
    %s3045 = scalar_lea.sflag [#allocation6], 1
    %3046 = vsyncpa %s3045, 1

</llo_original>
